<compile_context>
chip_gen: v7x
topology: tpu7x:2x2x1
jax: 0.10.0
libtpu: 0.0.40
codegen_flags: <defaults>
</compile_context>

<pallas_src>
import jax
import jax.numpy as jnp
from jax import lax
from jax.experimental import pallas as pl
from jax.experimental.pallas import tpu as pltpu


# ---------------------------------------------------------------------------
# Fused Bottleneck kernel (batch_tile images per grid step).
# ---------------------------------------------------------------------------
def _bottleneck_kernel(x_ref, w1_ref, w2_ref, w3_ref,
                       b1_ref, b2_ref, b3_ref,
                       o_ref, pad_ref):
    BT, H, W, Cin = x_ref.shape
    Cmid = w1_ref.shape[1]
    Cout = w3_ref.shape[1]
    cdt = w1_ref.dtype                          # MXU input (compute) dtype

    x = x_ref[...]                              # (BT, H, W, Cin)
    x2d = x.reshape(BT * H * W, Cin)

    # ---- conv1 (1x1, BN1 scale pre-folded) + bias + ReLU -------------------
    y1 = jnp.dot(x2d, w1_ref[...], preferred_element_type=jnp.float32)
    y1 = jnp.maximum(y1 + b1_ref[...], 0.0)

    # ---- conv2 (3x3, stride 1, pad 1) + BN2 + ReLU -------------------------
    # Persistent padded scratch: zero only the 1-wide border (cheap, safe for
    # "parallel" grid sharding), then store the interior.  No concat copies.
    pad_ref[:, 0:1, :, :] = jnp.zeros((BT, 1, W + 2, Cmid), cdt)
    pad_ref[:, H + 1:H + 2, :, :] = jnp.zeros((BT, 1, W + 2, Cmid), cdt)
    pad_ref[:, :, 0:1, :] = jnp.zeros((BT, H + 2, 1, Cmid), cdt)
    pad_ref[:, :, W + 1:W + 2, :] = jnp.zeros((BT, H + 2, 1, Cmid), cdt)
    pad_ref[:, 1:H + 1, 1:W + 1, :] = y1.reshape(BT, H, W, Cmid).astype(cdt)

    # 9 direct MXU matmuls from shifted windows of the padded scratch.
    # First tap assigns the accumulator (no zero-fill pass).
    acc = None
    for kh in range(3):                         # static unroll
        for kw in range(3):
            win = pad_ref[:, kh:kh + H, kw:kw + W, :]
            win = win.reshape(BT * H * W, Cmid)
            part = jnp.dot(win, w2_ref[kh * 3 + kw],
                           preferred_element_type=jnp.float32)
            acc = part if acc is None else acc + part
    y2 = jnp.maximum(acc + b2_ref[...], 0.0)

    # ---- conv3 (1x1) + bias + residual add + ReLU --------------------------
    # Residual adds the resident x block directly (promotes elementwise).
    y3 = jnp.dot(y2.astype(cdt), w3_ref[...],
                 preferred_element_type=jnp.float32)
    y3 = jnp.maximum(y3 + b3_ref[...] + x2d, 0.0)
    o_ref[...] = y3.reshape(BT, H, W, Cout).astype(o_ref.dtype)


# ---------------------------------------------------------------------------
# Wrapper
# ---------------------------------------------------------------------------
def _fold_bn(gamma, beta, mean, var, eps=1e-5):
    scale = (gamma / jnp.sqrt(var + eps)).astype(jnp.float32)
    bias = (beta - mean * scale).astype(jnp.float32)
    return scale, bias                           # (C,), (C,)


def _vmem_limit_bytes(BT, H, W, Cin, Cmid, Cout, cdt):
    cb = jnp.dtype(cdt).itemsize
    blk = BT * H * W * (Cin + Cout) * cb                     # in + out block
    scratch = BT * (H + 2) * (W + 2) * Cmid * cb             # padded scratch
    temps = BT * H * W * (3 * Cmid + 2 * Cout) * 4           # fp32 temps
    weights = (Cin * Cmid + 9 * Cmid * Cmid + Cmid * Cout) * cb
    est = 2 * blk + scratch + temps + weights                # 2x: double-buffer
    return int(min(max(32 * 1024 * 1024, 2 * est), 64 * 1024 * 1024))


def bottleneck_forward_nhwc(x_nhwc, params, compute_dtype=jnp.bfloat16,
                            batch_tile=1):
    """Fused Bottleneck forward in NHWC.  Output dtype == compute_dtype."""
    N, H, W, Cin = x_nhwc.shape
    w1, w2, w3 = params["w1"], params["w2"], params["w3"]
    Cmid, Cout = w1.shape[1], w3.shape[1]
    assert Cin == Cout, (
        "Bottleneck with downsample=None requires inplanes == planes*expansion")
    assert N % batch_tile == 0, "batch must be divisible by batch_tile"

    s1, b1 = _fold_bn(*params["bn1"])
    s2, b2 = _fold_bn(*params["bn2"])
    s3, b3 = _fold_bn(*params["bn3"])

    # Fold BN scales into the conv weights (per output channel).
    cdt = compute_dtype
    w1_c = (w1 * s1[None, :]).astype(cdt)                            # (Cin,Cmid)
    w2_c = (w2 * s2[None, None, None, :]).reshape(9, Cmid, Cmid).astype(cdt)
    w3_c = (w3 * s3[None, :]).astype(cdt)                            # (Cmid,Cout)
    b1_c, b2_c, b3_c = b1[None, :], b2[None, :], b3[None, :]         # (1, C) f32

    x_c = x_nhwc.astype(cdt)
    BT = batch_tile
    rep2 = lambda n: (0, 0)

    out = pl.pallas_call(
        _bottleneck_kernel,
        out_shape=jax.ShapeDtypeStruct((N, H, W, Cout), cdt),   # compute-dtype out
        grid=(N // BT,),
        in_specs=[
            pl.BlockSpec((BT, H, W, Cin), lambda n: (n, 0, 0, 0)),   # x
            pl.BlockSpec((Cin, Cmid), rep2),                         # w1 (scaled)
            pl.BlockSpec((9, Cmid, Cmid), lambda n: (0, 0, 0)),      # w2 (scaled)
            pl.BlockSpec((Cmid, Cout), rep2),                        # w3 (scaled)
            pl.BlockSpec((1, Cmid), rep2),                           # b1
            pl.BlockSpec((1, Cmid), rep2),                           # b2
            pl.BlockSpec((1, Cout), rep2),                           # b3
        ],
        out_specs=pl.BlockSpec((BT, H, W, Cout), lambda n: (n, 0, 0, 0)),
        scratch_shapes=[pltpu.VMEM((BT, H + 2, W + 2, Cmid), cdt)],
        compiler_params=pltpu.CompilerParams(
            dimension_semantics=("parallel",),
            vmem_limit_bytes=_vmem_limit_bytes(BT, H, W, Cin, Cmid, Cout, cdt)),
    )(x_c, w1_c, w2_c, w3_c, b1_c, b2_c, b3_c)
    return out


def bottleneck_forward(x_nchw, params, compute_dtype=jnp.bfloat16,
                       batch_tile=1):
    """PyTorch-layout (NCHW) entry point.  Output dtype == compute_dtype."""
    # TODO(synk): keep the surrounding graph NHWC to drop these two transposes.
    x = jnp.transpose(x_nchw, (0, 2, 3, 1))                  # NCHW -> NHWC
    out = bottleneck_forward_nhwc(x, params, compute_dtype, batch_tile)
    return jnp.transpose(out, (0, 3, 1, 2))                  # NHWC -> NCHW


# ---------------------------------------------------------------------------
# Pure-JAX reference (same inference-BN semantics) for verification.
# ---------------------------------------------------------------------------
def bottleneck_reference(x_nchw, params):
    x = jnp.transpose(x_nchw, (0, 2, 3, 1))
    s1, b1 = _fold_bn(*params["bn1"])
    s2, b2 = _fold_bn(*params["bn2"])
    s3, b3 = _fold_bn(*params["bn3"])
    dn = ("NHWC", "HWIO", "NHWC")

    w1 = params["w1"][None, None]                            # (1,1,Cin,width)
    out = lax.conv_general_dilated(x, w1, (1, 1), "VALID", dimension_numbers=dn)
    out = jnp.maximum(out * s1 + b1, 0.0)

    out = lax.conv_general_dilated(out, params["w2"], (1, 1), [(1, 1), (1, 1)],
                                   dimension_numbers=dn)
    out = jnp.maximum(out * s2 + b2, 0.0)

    w3 = params["w3"][None, None]
    out = lax.conv_general_dilated(out, w3, (1, 1), "VALID", dimension_numbers=dn)
    out = jnp.maximum(out * s3 + b3 + x, 0.0)
    return jnp.transpose(out, (0, 3, 1, 2))


# ---------------------------------------------------------------------------
# Deterministic parameter init + run
# ---------------------------------------------------------------------------
def make_params(key, inplanes, planes, base_width=64, groups=1, expansion=4):
    width = int(planes * (base_width / 64.0)) * groups
    cout = planes * expansion
    ks = jax.random.split(key, 6)

    def bn(k, c):
        g = 1.0 + 0.1 * jax.random.normal(k, (c,), jnp.float32)
        kb, km, kv = jax.random.split(k, 3)
        beta = 0.1 * jax.random.normal(kb, (c,), jnp.float32)
        mean = 0.1 * jax.random.normal(km, (c,), jnp.float32)
        var = jnp.abs(jax.random.normal(kv, (c,), jnp.float32)) + 0.5
        return (g, beta, mean, var)

    return {
        "w1": 0.1 * jax.random.normal(ks[0], (inplanes, width), jnp.float32),
        "w2": 0.1 * jax.random.normal(ks[1], (3, 3, width, width), jnp.float32),
        "w3": 0.1 * jax.random.normal(ks[2], (width, cout), jnp.float32),
        "bn1": bn(ks[3], width),
        "bn2": bn(ks[4], width),
        "bn3": bn(ks[5], cout),
    }


if __name__ == "__main__":
    key = jax.random.PRNGKey(0)
    kx, kp = jax.random.split(key)

    # Bottleneck(inplanes=16, planes=4): width=4, out channels=16, no downsample.
    N, inplanes, H, W = 2, 16, 16, 16
    planes = 4
    x = jax.random.normal(kx, (N, inplanes, H, W), jnp.float32)  # NCHW (PyTorch)
    params = make_params(kp, inplanes, planes)

    ref = bottleneck_reference(x, params)

    # fp32 compute path, one image per grid step (exercises scratch reuse and
    # the border re-zero across grid steps).  Strict check against reference.
    out_f32 = jax.block_until_ready(
        bottleneck_forward(x, params, compute_dtype=jnp.float32, batch_tile=1))
    assert out_f32.shape == (N, planes * 4, H, W), out_f32.shape
    assert out_f32.dtype == jnp.float32
    assert jnp.allclose(out_f32, ref, atol=1e-3, rtol=1e-3), (
        float(jnp.max(jnp.abs(out_f32 - ref))))

    # bf16 fast path (default) with batch_tile=2 (deep-stage batching path);
    # bf16 output per review -> looser tolerance.
    out_bf16 = jax.block_until_ready(
        bottleneck_forward(x, params, compute_dtype=jnp.bfloat16, batch_tile=2))
    assert out_bf16.dtype == jnp.bfloat16
    err = float(jnp.max(jnp.abs(out_bf16.astype(jnp.float32) - ref)))
    assert err < 0.1, err

    print("KERNEL_OK")
</pallas_src>

<mosaic_0001>
module attributes {stable_mosaic.version = 11 : i64} {
  func.func @_bottleneck_kernel(%arg0: i32, %arg1: memref<1x16x16x16xf32, #tpu.memory_space<vmem>>, %arg2: memref<16x4xf32, #tpu.memory_space<vmem>>, %arg3: memref<9x4x4xf32, #tpu.memory_space<vmem>>, %arg4: memref<4x16xf32, #tpu.memory_space<vmem>>, %arg5: memref<1x4xf32, #tpu.memory_space<vmem>>, %arg6: memref<1x4xf32, #tpu.memory_space<vmem>>, %arg7: memref<1x16xf32, #tpu.memory_space<vmem>>, %arg8: memref<1x16x16x16xf32, #tpu.memory_space<vmem>>, %arg9: memref<1x18x18x4xf32, #tpu.memory_space<vmem>>) attributes {dimension_semantics = [#tpu.dimension_semantics<parallel>], iteration_bounds = array<i64: 2>, scalar_prefetch = 0 : i64, scratch_operands = 1 : i64, tpu.core_type = #tpu.core_type<tc>, window_params = [{transform_indices = @transform_0, window_bounds = array<i64: 1, 16, 16, 16>}, {pipeline_mode = #tpu.pipeline_mode<synchronous>, transform_indices = @transform_1, window_bounds = array<i64: 16, 4>}, {pipeline_mode = #tpu.pipeline_mode<synchronous>, transform_indices = @transform_2, window_bounds = array<i64: 9, 4, 4>}, {pipeline_mode = #tpu.pipeline_mode<synchronous>, transform_indices = @transform_3, window_bounds = array<i64: 4, 16>}, {pipeline_mode = #tpu.pipeline_mode<synchronous>, transform_indices = @transform_4, window_bounds = array<i64: 1, 4>}, {pipeline_mode = #tpu.pipeline_mode<synchronous>, transform_indices = @transform_5, window_bounds = array<i64: 1, 4>}, {pipeline_mode = #tpu.pipeline_mode<synchronous>, transform_indices = @transform_6, window_bounds = array<i64: 1, 16>}, {transform_indices = @transform_7, window_bounds = array<i64: 1, 16, 16, 16>}]} {
    %c0 = arith.constant 0 : index
    %c0_0 = arith.constant 0 : index
    %c0_1 = arith.constant 0 : index
    %c0_2 = arith.constant 0 : index
    %0 = vector.load %arg1[%c0, %c0_0, %c0_1, %c0_2] : memref<1x16x16x16xf32, #tpu.memory_space<vmem>>, vector<1x16x16x16xf32>
    %1 = vector.shape_cast %0 : vector<1x16x16x16xf32> to vector<256x16xf32>
    %c0_3 = arith.constant 0 : index
    %c0_4 = arith.constant 0 : index
    %2 = vector.load %arg2[%c0_3, %c0_4] : memref<16x4xf32, #tpu.memory_space<vmem>>, vector<16x4xf32>
    %cst = arith.constant dense<0.000000e+00> : vector<256x4xf32>
    %3 = tpu.matmul %1, %2, %cst {dimension_numbers = #tpu.dot_dimension_numbers<[1], [0], [0], [1], [0, 0, 1, 1], [], []>} : vector<256x16xf32>, vector<16x4xf32>, vector<256x4xf32> -> vector<256x4xf32>
    %c0_5 = arith.constant 0 : index
    %c0_6 = arith.constant 0 : index
    %4 = vector.load %arg5[%c0_5, %c0_6] : memref<1x4xf32, #tpu.memory_space<vmem>>, vector<1x4xf32>
    %5 = vector.broadcast %4 : vector<1x4xf32> to vector<256x4xf32>
    %6 = arith.addf %3, %5 : vector<256x4xf32>
    %cst_7 = arith.constant 0.000000e+00 : f32
    %7 = vector.broadcast %cst_7 : f32 to vector<256x4xf32>
    %8 = arith.maximumf %6, %7 : vector<256x4xf32>
    %cst_8 = arith.constant 0.000000e+00 : f32
    %9 = vector.broadcast %cst_8 : f32 to vector<1x1x18x4xf32>
    %c0_9 = arith.constant 0 : index
    %c0_10 = arith.constant 0 : index
    %c0_11 = arith.constant 0 : index
    %c0_12 = arith.constant 0 : index
    %10 = vector.load %arg9[%c0_9, %c0_10, %c0_11, %c0_12] : memref<1x18x18x4xf32, #tpu.memory_space<vmem>>, vector<1x1x18x4xf32>
    tpu.vector_store %arg9[%c0_9, %c0_10, %c0_11, %c0_12], %9 {strides = array<i32>} : memref<1x18x18x4xf32, #tpu.memory_space<vmem>>, vector<1x1x18x4xf32>,
    %cst_13 = arith.constant 0.000000e+00 : f32
    %11 = vector.broadcast %cst_13 : f32 to vector<1x1x18x4xf32>
    %c0_14 = arith.constant 0 : index
    %c17 = arith.constant 17 : index
    %c0_15 = arith.constant 0 : index
    %c0_16 = arith.constant 0 : index
    %12 = vector.load %arg9[%c0_14, %c17, %c0_15, %c0_16] : memref<1x18x18x4xf32, #tpu.memory_space<vmem>>, vector<1x1x18x4xf32>
    tpu.vector_store %arg9[%c0_14, %c17, %c0_15, %c0_16], %11 {strides = array<i32>} : memref<1x18x18x4xf32, #tpu.memory_space<vmem>>, vector<1x1x18x4xf32>,
    %cst_17 = arith.constant 0.000000e+00 : f32
    %13 = vector.broadcast %cst_17 : f32 to vector<1x18x1x4xf32>
    %c0_18 = arith.constant 0 : index
    %c0_19 = arith.constant 0 : index
    %c0_20 = arith.constant 0 : index
    %c0_21 = arith.constant 0 : index
    %14 = vector.load %arg9[%c0_18, %c0_19, %c0_20, %c0_21] : memref<1x18x18x4xf32, #tpu.memory_space<vmem>>, vector<1x18x1x4xf32>
    tpu.vector_store %arg9[%c0_18, %c0_19, %c0_20, %c0_21], %13 {strides = array<i32>} : memref<1x18x18x4xf32, #tpu.memory_space<vmem>>, vector<1x18x1x4xf32>,
    %cst_22 = arith.constant 0.000000e+00 : f32
    %15 = vector.broadcast %cst_22 : f32 to vector<1x18x1x4xf32>
    %c0_23 = arith.constant 0 : index
    %c0_24 = arith.constant 0 : index
    %c17_25 = arith.constant 17 : index
    %c0_26 = arith.constant 0 : index
    %16 = vector.load %arg9[%c0_23, %c0_24, %c17_25, %c0_26] : memref<1x18x18x4xf32, #tpu.memory_space<vmem>>, vector<1x18x1x4xf32>
    tpu.vector_store %arg9[%c0_23, %c0_24, %c17_25, %c0_26], %15 {strides = array<i32>} : memref<1x18x18x4xf32, #tpu.memory_space<vmem>>, vector<1x18x1x4xf32>,
    %17 = vector.shape_cast %8 : vector<256x4xf32> to vector<1x16x16x4xf32>
    %c0_27 = arith.constant 0 : index
    %c1 = arith.constant 1 : index
    %c1_28 = arith.constant 1 : index
    %c0_29 = arith.constant 0 : index
    %18 = vector.load %arg9[%c0_27, %c1, %c1_28, %c0_29] : memref<1x18x18x4xf32, #tpu.memory_space<vmem>>, vector<1x16x16x4xf32>
    tpu.vector_store %arg9[%c0_27, %c1, %c1_28, %c0_29], %17 {strides = array<i32>} : memref<1x18x18x4xf32, #tpu.memory_space<vmem>>, vector<1x16x16x4xf32>,
    %c0_30 = arith.constant 0 : index
    %c0_31 = arith.constant 0 : index
    %c0_32 = arith.constant 0 : index
    %c0_33 = arith.constant 0 : index
    %19 = vector.load %arg9[%c0_30, %c0_31, %c0_32, %c0_33] : memref<1x18x18x4xf32, #tpu.memory_space<vmem>>, vector<1x16x16x4xf32>
    %20 = vector.shape_cast %19 : vector<1x16x16x4xf32> to vector<256x4xf32>
    %c0_34 = arith.constant 0 : index
    %c0_35 = arith.constant 0 : index
    %c0_36 = arith.constant 0 : index
    %21 = vector.load %arg3[%c0_34, %c0_35, %c0_36] : memref<9x4x4xf32, #tpu.memory_space<vmem>>, vector<1x4x4xf32>
    %22 = vector.shape_cast %21 : vector<1x4x4xf32> to vector<4x4xf32>
    %cst_37 = arith.constant dense<0.000000e+00> : vector<256x4xf32>
    %23 = tpu.matmul %20, %22, %cst_37 {dimension_numbers = #tpu.dot_dimension_numbers<[1], [0], [0], [1], [0, 0, 1, 1], [], []>} : vector<256x4xf32>, vector<4x4xf32>, vector<256x4xf32> -> vector<256x4xf32>
    %c0_38 = arith.constant 0 : index
    %c0_39 = arith.constant 0 : index
    %c1_40 = arith.constant 1 : index
    %c0_41 = arith.constant 0 : index
    %24 = vector.load %arg9[%c0_38, %c0_39, %c1_40, %c0_41] : memref<1x18x18x4xf32, #tpu.memory_space<vmem>>, vector<1x16x16x4xf32>
    %25 = vector.shape_cast %24 : vector<1x16x16x4xf32> to vector<256x4xf32>
    %c1_42 = arith.constant 1 : index
    %c0_43 = arith.constant 0 : index
    %c0_44 = arith.constant 0 : index
    %26 = vector.load %arg3[%c1_42, %c0_43, %c0_44] : memref<9x4x4xf32, #tpu.memory_space<vmem>>, vector<1x4x4xf32>
    %27 = vector.shape_cast %26 : vector<1x4x4xf32> to vector<4x4xf32>
    %cst_45 = arith.constant dense<0.000000e+00> : vector<256x4xf32>
    %28 = tpu.matmul %25, %27, %cst_45 {dimension_numbers = #tpu.dot_dimension_numbers<[1], [0], [0], [1], [0, 0, 1, 1], [], []>} : vector<256x4xf32>, vector<4x4xf32>, vector<256x4xf32> -> vector<256x4xf32>
    %29 = arith.addf %23, %28 : vector<256x4xf32>
    %c0_46 = arith.constant 0 : index
    %c0_47 = arith.constant 0 : index
    %c2 = arith.constant 2 : index
    %c0_48 = arith.constant 0 : index
    %30 = vector.load %arg9[%c0_46, %c0_47, %c2, %c0_48] : memref<1x18x18x4xf32, #tpu.memory_space<vmem>>, vector<1x16x16x4xf32>
    %31 = vector.shape_cast %30 : vector<1x16x16x4xf32> to vector<256x4xf32>
    %c2_49 = arith.constant 2 : index
    %c0_50 = arith.constant 0 : index
    %c0_51 = arith.constant 0 : index
    %32 = vector.load %arg3[%c2_49, %c0_50, %c0_51] : memref<9x4x4xf32, #tpu.memory_space<vmem>>, vector<1x4x4xf32>
    %33 = vector.shape_cast %32 : vector<1x4x4xf32> to vector<4x4xf32>
    %cst_52 = arith.constant dense<0.000000e+00> : vector<256x4xf32>
    %34 = tpu.matmul %31, %33, %cst_52 {dimension_numbers = #tpu.dot_dimension_numbers<[1], [0], [0], [1], [0, 0, 1, 1], [], []>} : vector<256x4xf32>, vector<4x4xf32>, vector<256x4xf32> -> vector<256x4xf32>
    %35 = arith.addf %29, %34 : vector<256x4xf32>
    %c0_53 = arith.constant 0 : index
    %c1_54 = arith.constant 1 : index
    %c0_55 = arith.constant 0 : index
    %c0_56 = arith.constant 0 : index
    %36 = vector.load %arg9[%c0_53, %c1_54, %c0_55, %c0_56] : memref<1x18x18x4xf32, #tpu.memory_space<vmem>>, vector<1x16x16x4xf32>
    %37 = vector.shape_cast %36 : vector<1x16x16x4xf32> to vector<256x4xf32>
    %c3 = arith.constant 3 : index
    %c0_57 = arith.constant 0 : index
    %c0_58 = arith.constant 0 : index
    %38 = vector.load %arg3[%c3, %c0_57, %c0_58] : memref<9x4x4xf32, #tpu.memory_space<vmem>>, vector<1x4x4xf32>
    %39 = vector.shape_cast %38 : vector<1x4x4xf32> to vector<4x4xf32>
    %cst_59 = arith.constant dense<0.000000e+00> : vector<256x4xf32>
    %40 = tpu.matmul %37, %39, %cst_59 {dimension_numbers = #tpu.dot_dimension_numbers<[1], [0], [0], [1], [0, 0, 1, 1], [], []>} : vector<256x4xf32>, vector<4x4xf32>, vector<256x4xf32> -> vector<256x4xf32>
    %41 = arith.addf %35, %40 : vector<256x4xf32>
    %c0_60 = arith.constant 0 : index
    %c1_61 = arith.constant 1 : index
    %c1_62 = arith.constant 1 : index
    %c0_63 = arith.constant 0 : index
    %42 = vector.load %arg9[%c0_60, %c1_61, %c1_62, %c0_63] : memref<1x18x18x4xf32, #tpu.memory_space<vmem>>, vector<1x16x16x4xf32>
    %43 = vector.shape_cast %42 : vector<1x16x16x4xf32> to vector<256x4xf32>
    %c4 = arith.constant 4 : index
    %c0_64 = arith.constant 0 : index
    %c0_65 = arith.constant 0 : index
    %44 = vector.load %arg3[%c4, %c0_64, %c0_65] : memref<9x4x4xf32, #tpu.memory_space<vmem>>, vector<1x4x4xf32>
    %45 = vector.shape_cast %44 : vector<1x4x4xf32> to vector<4x4xf32>
    %cst_66 = arith.constant dense<0.000000e+00> : vector<256x4xf32>
    %46 = tpu.matmul %43, %45, %cst_66 {dimension_numbers = #tpu.dot_dimension_numbers<[1], [0], [0], [1], [0, 0, 1, 1], [], []>} : vector<256x4xf32>, vector<4x4xf32>, vector<256x4xf32> -> vector<256x4xf32>
    %47 = arith.addf %41, %46 : vector<256x4xf32>
    %c0_67 = arith.constant 0 : index
    %c1_68 = arith.constant 1 : index
    %c2_69 = arith.constant 2 : index
    %c0_70 = arith.constant 0 : index
    %48 = vector.load %arg9[%c0_67, %c1_68, %c2_69, %c0_70] : memref<1x18x18x4xf32, #tpu.memory_space<vmem>>, vector<1x16x16x4xf32>
    %49 = vector.shape_cast %48 : vector<1x16x16x4xf32> to vector<256x4xf32>
    %c5 = arith.constant 5 : index
    %c0_71 = arith.constant 0 : index
    %c0_72 = arith.constant 0 : index
    %50 = vector.load %arg3[%c5, %c0_71, %c0_72] : memref<9x4x4xf32, #tpu.memory_space<vmem>>, vector<1x4x4xf32>
    %51 = vector.shape_cast %50 : vector<1x4x4xf32> to vector<4x4xf32>
    %cst_73 = arith.constant dense<0.000000e+00> : vector<256x4xf32>
    %52 = tpu.matmul %49, %51, %cst_73 {dimension_numbers = #tpu.dot_dimension_numbers<[1], [0], [0], [1], [0, 0, 1, 1], [], []>} : vector<256x4xf32>, vector<4x4xf32>, vector<256x4xf32> -> vector<256x4xf32>
    %53 = arith.addf %47, %52 : vector<256x4xf32>
    %c0_74 = arith.constant 0 : index
    %c2_75 = arith.constant 2 : index
    %c0_76 = arith.constant 0 : index
    %c0_77 = arith.constant 0 : index
    %54 = vector.load %arg9[%c0_74, %c2_75, %c0_76, %c0_77] : memref<1x18x18x4xf32, #tpu.memory_space<vmem>>, vector<1x16x16x4xf32>
    %55 = vector.shape_cast %54 : vector<1x16x16x4xf32> to vector<256x4xf32>
    %c6 = arith.constant 6 : index
    %c0_78 = arith.constant 0 : index
    %c0_79 = arith.constant 0 : index
    %56 = vector.load %arg3[%c6, %c0_78, %c0_79] : memref<9x4x4xf32, #tpu.memory_space<vmem>>, vector<1x4x4xf32>
    %57 = vector.shape_cast %56 : vector<1x4x4xf32> to vector<4x4xf32>
    %cst_80 = arith.constant dense<0.000000e+00> : vector<256x4xf32>
    %58 = tpu.matmul %55, %57, %cst_80 {dimension_numbers = #tpu.dot_dimension_numbers<[1], [0], [0], [1], [0, 0, 1, 1], [], []>} : vector<256x4xf32>, vector<4x4xf32>, vector<256x4xf32> -> vector<256x4xf32>
    %59 = arith.addf %53, %58 : vector<256x4xf32>
    %c0_81 = arith.constant 0 : index
    %c2_82 = arith.constant 2 : index
    %c1_83 = arith.constant 1 : index
    %c0_84 = arith.constant 0 : index
    %60 = vector.load %arg9[%c0_81, %c2_82, %c1_83, %c0_84] : memref<1x18x18x4xf32, #tpu.memory_space<vmem>>, vector<1x16x16x4xf32>
    %61 = vector.shape_cast %60 : vector<1x16x16x4xf32> to vector<256x4xf32>
    %c7 = arith.constant 7 : index
    %c0_85 = arith.constant 0 : index
    %c0_86 = arith.constant 0 : index
    %62 = vector.load %arg3[%c7, %c0_85, %c0_86] : memref<9x4x4xf32, #tpu.memory_space<vmem>>, vector<1x4x4xf32>
    %63 = vector.shape_cast %62 : vector<1x4x4xf32> to vector<4x4xf32>
    %cst_87 = arith.constant dense<0.000000e+00> : vector<256x4xf32>
    %64 = tpu.matmul %61, %63, %cst_87 {dimension_numbers = #tpu.dot_dimension_numbers<[1], [0], [0], [1], [0, 0, 1, 1], [], []>} : vector<256x4xf32>, vector<4x4xf32>, vector<256x4xf32> -> vector<256x4xf32>
    %65 = arith.addf %59, %64 : vector<256x4xf32>
    %c0_88 = arith.constant 0 : index
    %c2_89 = arith.constant 2 : index
    %c2_90 = arith.constant 2 : index
    %c0_91 = arith.constant 0 : index
    %66 = vector.load %arg9[%c0_88, %c2_89, %c2_90, %c0_91] : memref<1x18x18x4xf32, #tpu.memory_space<vmem>>, vector<1x16x16x4xf32>
    %67 = vector.shape_cast %66 : vector<1x16x16x4xf32> to vector<256x4xf32>
    %c8 = arith.constant 8 : index
    %c0_92 = arith.constant 0 : index
    %c0_93 = arith.constant 0 : index
    %68 = vector.load %arg3[%c8, %c0_92, %c0_93] : memref<9x4x4xf32, #tpu.memory_space<vmem>>, vector<1x4x4xf32>
    %69 = vector.shape_cast %68 : vector<1x4x4xf32> to vector<4x4xf32>
    %cst_94 = arith.constant dense<0.000000e+00> : vector<256x4xf32>
    %70 = tpu.matmul %67, %69, %cst_94 {dimension_numbers = #tpu.dot_dimension_numbers<[1], [0], [0], [1], [0, 0, 1, 1], [], []>} : vector<256x4xf32>, vector<4x4xf32>, vector<256x4xf32> -> vector<256x4xf32>
    %71 = arith.addf %65, %70 : vector<256x4xf32>
    %c0_95 = arith.constant 0 : index
    %c0_96 = arith.constant 0 : index
    %72 = vector.load %arg6[%c0_95, %c0_96] : memref<1x4xf32, #tpu.memory_space<vmem>>, vector<1x4xf32>
    %73 = vector.broadcast %72 : vector<1x4xf32> to vector<256x4xf32>
    %74 = arith.addf %71, %73 : vector<256x4xf32>
    %cst_97 = arith.constant 0.000000e+00 : f32
    %75 = vector.broadcast %cst_97 : f32 to vector<256x4xf32>
    %76 = arith.maximumf %74, %75 : vector<256x4xf32>
    %c0_98 = arith.constant 0 : index
    %c0_99 = arith.constant 0 : index
    %77 = vector.load %arg4[%c0_98, %c0_99] : memref<4x16xf32, #tpu.memory_space<vmem>>, vector<4x16xf32>
    %cst_100 = arith.constant dense<0.000000e+00> : vector<256x16xf32>
    %78 = tpu.matmul %76, %77, %cst_100 {dimension_numbers = #tpu.dot_dimension_numbers<[1], [0], [0], [1], [0, 0, 1, 1], [], []>} : vector<256x4xf32>, vector<4x16xf32>, vector<256x16xf32> -> vector<256x16xf32>
    %c0_101 = arith.constant 0 : index
    %c0_102 = arith.constant 0 : index
    %79 = vector.load %arg7[%c0_101, %c0_102] : memref<1x16xf32, #tpu.memory_space<vmem>>, vector<1x16xf32>
    %80 = vector.broadcast %79 : vector<1x16xf32> to vector<256x16xf32>
    %81 = arith.addf %78, %80 : vector<256x16xf32>
    %82 = arith.addf %81, %1 : vector<256x16xf32>
    %cst_103 = arith.constant 0.000000e+00 : f32
    %83 = vector.broadcast %cst_103 : f32 to vector<256x16xf32>
    %84 = arith.maximumf %82, %83 : vector<256x16xf32>
    %85 = vector.shape_cast %84 : vector<256x16xf32> to vector<1x16x16x16xf32>
    %c0_104 = arith.constant 0 : index
    %c0_105 = arith.constant 0 : index
    %c0_106 = arith.constant 0 : index
    %c0_107 = arith.constant 0 : index
    %86 = vector.load %arg8[%c0_104, %c0_105, %c0_106, %c0_107] : memref<1x16x16x16xf32, #tpu.memory_space<vmem>>, vector<1x16x16x16xf32>
    tpu.vector_store %arg8[%c0_104, %c0_105, %c0_106, %c0_107], %85 {strides = array<i32>} : memref<1x16x16x16xf32, #tpu.memory_space<vmem>>, vector<1x16x16x16xf32>,
    return
  }
  func.func @transform_0(%arg0: i32) -> (i32, i32, i32, i32) {
    %c0_i32 = arith.constant 0 : i32
    %c0_i32_0 = arith.constant 0 : i32
    %c0_i32_1 = arith.constant 0 : i32
    %c0_i32_2 = arith.constant 0 : i32
    return %arg0, %c0_i32, %c0_i32_0, %c0_i32_1 : i32, i32, i32, i32
  }
  func.func @transform_1(%arg0: i32) -> (i32, i32) {
    %c0_i32 = arith.constant 0 : i32
    %c0_i32_0 = arith.constant 0 : i32
    %c0_i32_1 = arith.constant 0 : i32
    return %c0_i32, %c0_i32_0 : i32, i32
  }
  func.func @transform_2(%arg0: i32) -> (i32, i32, i32) {
    %c0_i32 = arith.constant 0 : i32
    %c0_i32_0 = arith.constant 0 : i32
    %c0_i32_1 = arith.constant 0 : i32
    %c0_i32_2 = arith.constant 0 : i32
    return %c0_i32, %c0_i32_0, %c0_i32_1 : i32, i32, i32
  }
  func.func @transform_3(%arg0: i32) -> (i32, i32) {
    %c0_i32 = arith.constant 0 : i32
    %c0_i32_0 = arith.constant 0 : i32
    %c0_i32_1 = arith.constant 0 : i32
    return %c0_i32, %c0_i32_0 : i32, i32
  }
  func.func @transform_4(%arg0: i32) -> (i32, i32) {
    %c0_i32 = arith.constant 0 : i32
    %c0_i32_0 = arith.constant 0 : i32
    %c0_i32_1 = arith.constant 0 : i32
    return %c0_i32, %c0_i32_0 : i32, i32
  }
  func.func @transform_5(%arg0: i32) -> (i32, i32) {
    %c0_i32 = arith.constant 0 : i32
    %c0_i32_0 = arith.constant 0 : i32
    %c0_i32_1 = arith.constant 0 : i32
    return %c0_i32, %c0_i32_0 : i32, i32
  }
  func.func @transform_6(%arg0: i32) -> (i32, i32) {
    %c0_i32 = arith.constant 0 : i32
    %c0_i32_0 = arith.constant 0 : i32
    %c0_i32_1 = arith.constant 0 : i32
    return %c0_i32, %c0_i32_0 : i32, i32
  }
  func.func @transform_7(%arg0: i32) -> (i32, i32, i32, i32) {
    %c0_i32 = arith.constant 0 : i32
    %c0_i32_0 = arith.constant 0 : i32
    %c0_i32_1 = arith.constant 0 : i32
    %c0_i32_2 = arith.constant 0 : i32
    return %arg0, %c0_i32, %c0_i32_0, %c0_i32_1 : i32, i32, i32, i32
  }
}

</mosaic_0001>

<llo_original>
// kernel: tpu_custom_call.1
$region0: #{tpu_custom_call.1}
  #allocation0 [shape = 'u32[]', space=smem, size = 0x4, offset = 0x4, fixed_abs, tag = 'smem constant byte address 0x4 - core index']
  #allocation1 [shape = 'u32[144,128]{1,0:T(1,128)}', space=vmem, size = 0x12000, scoped, tag = 'internal scratch']
  #allocation2 [shape = 'f32[1,18,18,4]{3,2,1,0:T(8,128)}', space=vmem, size = 0x36000, scoped, tag = 'scratch operand']
  %s0 = inlined_call_operand.hbm [shape: f32[2,16,16,16], index: 0, kind: input, shape index: {}]
  %s1 = inlined_call_operand.vmem [shape: f32[16,4], index: 1, kind: input, shape index: {}]
  %s2 = inlined_call_operand.vmem [shape: f32[9,4,4], index: 2, kind: input, shape index: {}]
  %s3 = inlined_call_operand.vmem [shape: f32[4,16], index: 3, kind: input, shape index: {}]
  %s4 = inlined_call_operand.vmem [shape: f32[1,4], index: 4, kind: input, shape index: {}]
  %s5 = inlined_call_operand.vmem [shape: f32[1,4], index: 5, kind: input, shape index: {}]
  %s6 = inlined_call_operand.vmem [shape: f32[1,16], index: 6, kind: input, shape index: {}]
  %s7 = inlined_call_operand.hbm [shape: f32[2,16,16,16], index: 7, kind: output, shape index: {}]
  %s8 = sld [smem:[#allocation0]]
  $region65: #{tpu_custom_call.1} parent=0
    _
  %s10 = ssub.s32 1, %s8
  %s11 = scalar_select 0, %s10, %s8
  $region1: #{tpu_custom_call.1} parent=0
    #allocation3 [shape = 'u8[262144]{0}', space=vmem, size = 0x40000, scoped, tag = 'input window, operand 0']
    #allocation4 [shape = 's32[2]{0}', space=sflag, size = 0x8, scoped, tag = 'scoped memory for tpu_custom_call.1']
    #allocation5 [shape = 's32[2]{0}', space=sflag, size = 0x8, scoped, tag = 'scoped memory for tpu_custom_call.1']
    #allocation6 [shape = 'u8[262144]{0}', space=vmem, size = 0x40000, scoped, tag = 'output window, operand 0']
    %12 = vsyncpa [#allocation4], 0
    %s13 = scalar_lea.sflag [#allocation4], 1
    %14 = vsyncpa %s13, 0
    %15 = vsyncpa [#allocation5], 0
    %s16 = scalar_lea.sflag [#allocation5], 1
    %17 = vsyncpa %s16, 0
    loop: start=0, step=1, limit=4
    $region2: #{tpu_custom_call.1} parent=1 // loop_pre_header
      _
    $region3: #{tpu_custom_call.1} parent=1 // loop_header
      %s19 = sphi 0, %s23
      %p20 = scmp.ge.s32.totalorder %s19, 4
      %s29 = sphi 0, %s31
      %s32 = sphi 0, %s29
      %s33 = sphi 0, %s32
      %s49 = sphi 0, %s33
      %s53 = sphi 0, %s53
      %s55 = sphi 0, %s53
      %s56 = sphi 0, %s55
      %s70 = sphi 0, %s56
      %s74 = sphi 0, %s74
      %s76 = sphi 0, %s74
      %s77 = sphi 0, %s76
      %s91 = sphi 0, %s77
      %s95 = sphi 0, %s95
      %s97 = sphi 0, %s95
      %s98 = sphi 0, %s97
      %s112 = sphi 0, %s98
      %s116 = sphi 0, %s116
      %s118 = sphi 0, %s116
      %s119 = sphi 0, %s118
      %s133 = sphi 0, %s119
      %s137 = sphi 0, %s137
      %s139 = sphi 0, %s137
      %s140 = sphi 0, %s139
      %s154 = sphi 0, %s140
      %s158 = sphi 0, %s158
      %s160 = sphi 0, %s158
      %s161 = sphi 0, %s160
      %s175 = sphi 0, %s161
      %s181 = sphi 0, %s183
      %s184 = sphi 0, %s181
      %s185 = sphi 0, %s184
      %s201 = sphi 0, %s185
    $region4: #{tpu_custom_call.1} parent=1 // loop_header_branch
      %22 = sbr.rel (%p20) target = $region8
    $region5: #{tpu_custom_call.1} parent=1 // loop_body
      %s24 = ssub.s32 %s19, 1
      %s25 = ssub.s32 %s19, 2
      %s26 = sadd.s32 %s19, 1
      %s27 = ssub.s32 %s19, %s26
      %p28 = scmp.eq.s32.totalorder %s27, 0
      %s30 = sadd.s32 %s29, 1
      %s31 = scalar_select %p28, %s29, %s30
      %p34 = pneg %p28
      %p35 = scmp.eq.s32.totalorder %s19, 1
      %p36 = por %p34, %p35
      %p37 = scmp.ne.s32.totalorder %s29, %s32
      %p38 = scmp.eq.s32.totalorder %s19, 0
      %p39 = por %p37, %p38
      %p40 = scmp.ne.s32.totalorder %s29, %s32
      %p41 = scmp.eq.s32.totalorder %s24, 1
      %p42 = por %p40, %p41
      %p43 = scmp.ne.s32.totalorder %s32, %s33
      %p44 = scmp.eq.s32.totalorder %s24, 0
      %p45 = por %p43, %p44
      %p46 = scmp.ne.s32.totalorder %s32, %s33
      %p47 = scmp.eq.s32.totalorder %s25, 1
      %p48 = por %p46, %p47
      %p50 = scmp.ne.s32.totalorder %s33, %s49
      %p51 = scmp.eq.s32.totalorder %s25, 0
      %p52 = por %p50, %p51
      %s54 = sadd.s32 %s53, 1
      %p57 = scmp.eq.s32.totalorder %s19, 1
      %p58 = scmp.ne.s32.totalorder %s53, %s55
      %p59 = scmp.eq.s32.totalorder %s19, 0
      %p60 = por %p58, %p59
      %p61 = scmp.ne.s32.totalorder %s53, %s55
      %p62 = scmp.eq.s32.totalorder %s24, 1
      %p63 = por %p61, %p62
      %p64 = scmp.ne.s32.totalorder %s55, %s56
      %p65 = scmp.eq.s32.totalorder %s24, 0
      %p66 = por %p64, %p65
      %p67 = scmp.ne.s32.totalorder %s55, %s56
      %p68 = scmp.eq.s32.totalorder %s25, 1
      %p69 = por %p67, %p68
      %p71 = scmp.ne.s32.totalorder %s56, %s70
      %p72 = scmp.eq.s32.totalorder %s25, 0
      %p73 = por %p71, %p72
      %s75 = sadd.s32 %s74, 1
      %p78 = scmp.eq.s32.totalorder %s19, 1
      %p79 = scmp.ne.s32.totalorder %s74, %s76
      %p80 = scmp.eq.s32.totalorder %s19, 0
      %p81 = por %p79, %p80
      %p82 = scmp.ne.s32.totalorder %s74, %s76
      %p83 = scmp.eq.s32.totalorder %s24, 1
      %p84 = por %p82, %p83
      %p85 = scmp.ne.s32.totalorder %s76, %s77
      %p86 = scmp.eq.s32.totalorder %s24, 0
      %p87 = por %p85, %p86
      %p88 = scmp.ne.s32.totalorder %s76, %s77
      %p89 = scmp.eq.s32.totalorder %s25, 1
      %p90 = por %p88, %p89
      %p92 = scmp.ne.s32.totalorder %s77, %s91
      %p93 = scmp.eq.s32.totalorder %s25, 0
      %p94 = por %p92, %p93
      %s96 = sadd.s32 %s95, 1
      %p99 = scmp.eq.s32.totalorder %s19, 1
      %p100 = scmp.ne.s32.totalorder %s95, %s97
      %p101 = scmp.eq.s32.totalorder %s19, 0
      %p102 = por %p100, %p101
      %p103 = scmp.ne.s32.totalorder %s95, %s97
      %p104 = scmp.eq.s32.totalorder %s24, 1
      %p105 = por %p103, %p104
      %p106 = scmp.ne.s32.totalorder %s97, %s98
      %p107 = scmp.eq.s32.totalorder %s24, 0
      %p108 = por %p106, %p107
      %p109 = scmp.ne.s32.totalorder %s97, %s98
      %p110 = scmp.eq.s32.totalorder %s25, 1
      %p111 = por %p109, %p110
      %p113 = scmp.ne.s32.totalorder %s98, %s112
      %p114 = scmp.eq.s32.totalorder %s25, 0
      %p115 = por %p113, %p114
      %s117 = sadd.s32 %s116, 1
      %p120 = scmp.eq.s32.totalorder %s19, 1
      %p121 = scmp.ne.s32.totalorder %s116, %s118
      %p122 = scmp.eq.s32.totalorder %s19, 0
      %p123 = por %p121, %p122
      %p124 = scmp.ne.s32.totalorder %s116, %s118
      %p125 = scmp.eq.s32.totalorder %s24, 1
      %p126 = por %p124, %p125
      %p127 = scmp.ne.s32.totalorder %s118, %s119
      %p128 = scmp.eq.s32.totalorder %s24, 0
      %p129 = por %p127, %p128
      %p130 = scmp.ne.s32.totalorder %s118, %s119
      %p131 = scmp.eq.s32.totalorder %s25, 1
      %p132 = por %p130, %p131
      %p134 = scmp.ne.s32.totalorder %s119, %s133
      %p135 = scmp.eq.s32.totalorder %s25, 0
      %p136 = por %p134, %p135
      %s138 = sadd.s32 %s137, 1
      %p141 = scmp.eq.s32.totalorder %s19, 1
      %p142 = scmp.ne.s32.totalorder %s137, %s139
      %p143 = scmp.eq.s32.totalorder %s19, 0
      %p144 = por %p142, %p143
      %p145 = scmp.ne.s32.totalorder %s137, %s139
      %p146 = scmp.eq.s32.totalorder %s24, 1
      %p147 = por %p145, %p146
      %p148 = scmp.ne.s32.totalorder %s139, %s140
      %p149 = scmp.eq.s32.totalorder %s24, 0
      %p150 = por %p148, %p149
      %p151 = scmp.ne.s32.totalorder %s139, %s140
      %p152 = scmp.eq.s32.totalorder %s25, 1
      %p153 = por %p151, %p152
      %p155 = scmp.ne.s32.totalorder %s140, %s154
      %p156 = scmp.eq.s32.totalorder %s25, 0
      %p157 = por %p155, %p156
      %s159 = sadd.s32 %s158, 1
      %p162 = scmp.eq.s32.totalorder %s19, 1
      %p163 = scmp.ne.s32.totalorder %s158, %s160
      %p164 = scmp.eq.s32.totalorder %s19, 0
      %p165 = por %p163, %p164
      %p166 = scmp.ne.s32.totalorder %s158, %s160
      %p167 = scmp.eq.s32.totalorder %s24, 1
      %p168 = por %p166, %p167
      %p169 = scmp.ne.s32.totalorder %s160, %s161
      %p170 = scmp.eq.s32.totalorder %s24, 0
      %p171 = por %p169, %p170
      %p172 = scmp.ne.s32.totalorder %s160, %s161
      %p173 = scmp.eq.s32.totalorder %s25, 1
      %p174 = por %p172, %p173
      %p176 = scmp.ne.s32.totalorder %s161, %s175
      %p177 = scmp.eq.s32.totalorder %s25, 0
      %p178 = por %p176, %p177
      %s179 = ssub.s32 %s19, %s26
      %p180 = scmp.eq.s32.totalorder %s179, 0
      %s182 = sadd.s32 %s181, 1
      %s183 = scalar_select %p180, %s181, %s182
      %p186 = pneg %p180
      %p187 = scmp.eq.s32.totalorder %s19, 1
      %p188 = por %p186, %p187
      %p189 = scmp.ne.s32.totalorder %s181, %s184
      %p190 = scmp.eq.s32.totalorder %s19, 0
      %p191 = por %p189, %p190
      %p192 = scmp.ne.s32.totalorder %s181, %s184
      %p193 = scmp.eq.s32.totalorder %s24, 1
      %p194 = por %p192, %p193
      %p195 = scmp.ne.s32.totalorder %s184, %s185
      %p196 = scmp.eq.s32.totalorder %s24, 0
      %p197 = por %p195, %p196
      %p198 = scmp.ne.s32.totalorder %s184, %s185
      %p199 = scmp.eq.s32.totalorder %s25, 1
      %p200 = por %p198, %p199
      %p202 = scmp.ne.s32.totalorder %s185, %s201
      %p203 = scmp.eq.s32.totalorder %s25, 0
      %p204 = por %p202, %p203
      %p205 = scmp.le.s32.totalorder 1, %s19
      %p206 = scmp.lt.s32.totalorder %s19, 3
      %p207 = pnand %p205, %p206
      %p208 = pneg %p207
      // Predicated region
      $region9: #{tpu_custom_call.1} parent=5 // pred_check
        _
      $region10: #{tpu_custom_call.1} parent=5 // pred_check_branch
        %210 = sbr.rel (%p207) target = $region12
      $region11: #{tpu_custom_call.1} parent=5 // pred_region
        %s211 = ssub.s32 %s19, 1
        // Predicated region
        $region13: #{tpu_custom_call.1} parent=11 // pred_check
          %p212 = pneg %p66
        $region14: #{tpu_custom_call.1} parent=11 // pred_check_branch
          %214 = sbr.rel (%p212) target = $region16
        $region15: #{tpu_custom_call.1} parent=11 // pred_region
          _
        $region16: #{tpu_custom_call.1} parent=11 // pred_fallthru
          _
        // Predicated region
        $region17: #{tpu_custom_call.1} parent=11 // pred_check
          %p215 = pneg %p87
        $region18: #{tpu_custom_call.1} parent=11 // pred_check_branch
          %217 = sbr.rel (%p215) target = $region20
        $region19: #{tpu_custom_call.1} parent=11 // pred_region
          _
        $region20: #{tpu_custom_call.1} parent=11 // pred_fallthru
          _
        // Predicated region
        $region21: #{tpu_custom_call.1} parent=11 // pred_check
          %p218 = pneg %p108
        $region22: #{tpu_custom_call.1} parent=11 // pred_check_branch
          %220 = sbr.rel (%p218) target = $region24
        $region23: #{tpu_custom_call.1} parent=11 // pred_region
          _
        $region24: #{tpu_custom_call.1} parent=11 // pred_fallthru
          _
        // Predicated region
        $region25: #{tpu_custom_call.1} parent=11 // pred_check
          %p221 = pneg %p129
        $region26: #{tpu_custom_call.1} parent=11 // pred_check_branch
          %223 = sbr.rel (%p221) target = $region28
        $region27: #{tpu_custom_call.1} parent=11 // pred_region
          _
        $region28: #{tpu_custom_call.1} parent=11 // pred_fallthru
          _
        // Predicated region
        $region29: #{tpu_custom_call.1} parent=11 // pred_check
          %p224 = pneg %p150
        $region30: #{tpu_custom_call.1} parent=11 // pred_check_branch
          %226 = sbr.rel (%p224) target = $region32
        $region31: #{tpu_custom_call.1} parent=11 // pred_region
          _
        $region32: #{tpu_custom_call.1} parent=11 // pred_fallthru
          _
        // Predicated region
        $region33: #{tpu_custom_call.1} parent=11 // pred_check
          %p227 = pneg %p171
        $region34: #{tpu_custom_call.1} parent=11 // pred_check_branch
          %229 = sbr.rel (%p227) target = $region36
        $region35: #{tpu_custom_call.1} parent=11 // pred_region
          _
        $region36: #{tpu_custom_call.1} parent=11 // pred_fallthru
          _
      $region12: #{tpu_custom_call.1} parent=5 // pred_fallthru
        _
      %p230 = scmp.lt.s32.totalorder %s19, 2
      // Predicated region
      $region37: #{tpu_custom_call.1} parent=5 // pred_check
        %p231 = pneg %p230
      $region38: #{tpu_custom_call.1} parent=5 // pred_check_branch
        %233 = sbr.rel (%p231) target = $region40
      $region39: #{tpu_custom_call.1} parent=5 // pred_region
        // Predicated region
        $region41: #{tpu_custom_call.1} parent=39 // pred_check
          %p234 = pneg %p39
        $region42: #{tpu_custom_call.1} parent=39 // pred_check_branch
          %236 = sbr.rel (%p234) target = $region44
        $region43: #{tpu_custom_call.1} parent=39 // pred_region
          %s237 = sand.u32 %s29, 1
          %s238 = scalar_lea.sflag [#allocation4], %s237
          %s239 = sand.u32 %s29, 1
          %s240 = smul.addr %s239, 256
          %s241 = scalar_lea.vmem [#allocation3], %s240
          %s243 = ssub.s32 4096, 4096
          %244 = vsyncadd %s238, %s243
          %s245 = smul.addr %s19, 32
          %s246 = smul.addr %s245, 128
          %s247 = scalar_lea.hbm %s0, %s246
          %s248 = sshll.u32 %s241, 4
          %s249 = int_to_ptr.vmem [resolvable:$true] %s248
          %254 = dma.hbm_to_vmem [thread:$0]  %s247, 4096, %s249, %s238, 128, 128, 8
        $region44: #{tpu_custom_call.1} parent=39 // pred_fallthru
          _
      $region40: #{tpu_custom_call.1} parent=5 // pred_fallthru
        _
      %p255 = scmp.le.s32.totalorder 1, %s19
      %p256 = scmp.lt.s32.totalorder %s19, 3
      %p257 = pnand %p255, %p256
      %p258 = pneg %p257
      // Predicated region
      $region45: #{tpu_custom_call.1} parent=5 // pred_check
        _
      $region46: #{tpu_custom_call.1} parent=5 // pred_check_branch
        %260 = sbr.rel (%p257) target = $region48
      $region47: #{tpu_custom_call.1} parent=5 // pred_region
        %s261 = ssub.s32 %s19, 1
        %s262 = sand.u32 %s32, 1
        %s263 = scalar_lea.sflag [#allocation4], %s262
        %s264 = sand.u32 %s32, 1
        %s265 = smul.addr %s264, 256
        %s266 = scalar_lea.vmem [#allocation3], %s265
        // Predicated region
        $region49: #{tpu_custom_call.1} parent=47 // pred_check
          %p267 = pneg %p45
        $region50: #{tpu_custom_call.1} parent=47 // pred_check_branch
          %269 = sbr.rel (%p267) target = $region52
        $region51: #{tpu_custom_call.1} parent=47 // pred_region
          %270 = dma.done %s263, 4096
        $region52: #{tpu_custom_call.1} parent=47 // pred_fallthru
          _
        %s271 = sand.u32 %s32, 1
        %s272 = scalar_lea.sflag [#allocation4], %s271
        %s273 = sand.u32 %s32, 1
        %s274 = smul.addr %s273, 256
        %s275 = scalar_lea.vmem [#allocation3], %s274
        %p276 = pneg %p45
        %p277 = pneg %p42
        %p278 = pneg %p66
        %p279 = pneg %p63
        %p280 = pneg %p87
        %p281 = pneg %p84
        %p282 = pneg %p108
        %p283 = pneg %p105
        %p284 = pneg %p129
        %p285 = pneg %p126
        %p286 = pneg %p150
        %p287 = pneg %p147
        %p288 = pneg %p171
        %p289 = pneg %p168
        %p290 = pneg %p197
        %p291 = pneg %p194
        %s292 = sand.u32 %s184, 1
        %s293 = scalar_lea.sflag [#allocation5], %s292
        %s294 = sand.u32 %s184, 1
        %s295 = smul.addr %s294, 256
        %s296 = scalar_lea.vmem [#allocation6], %s295
        %v297 = vld [vmem:[%s266] sm:$0xff]
        %v298 = vld [vmem:[%s266 + $0x8] sm:$0xff]
        %v299 = vld [vmem:[%s266 + $0x10] sm:$0xff]
        %v300 = vld [vmem:[%s266 + $0x18] sm:$0xff]
        %v301 = vld [vmem:[%s266 + $0x20] sm:$0xff]
        %v302 = vld [vmem:[%s266 + $0x28] sm:$0xff]
        %v303 = vld [vmem:[%s266 + $0x30] sm:$0xff]
        %v304 = vld [vmem:[%s266 + $0x38] sm:$0xff]
        %v305 = vld [vmem:[%s266 + $0x40] sm:$0xff]
        %v306 = vld [vmem:[%s266 + $0x48] sm:$0xff]
        %v307 = vld [vmem:[%s266 + $0x50] sm:$0xff]
        %v308 = vld [vmem:[%s266 + $0x58] sm:$0xff]
        %v309 = vld [vmem:[%s266 + $0x60] sm:$0xff]
        %v310 = vld [vmem:[%s266 + $0x68] sm:$0xff]
        %v311 = vld [vmem:[%s266 + $0x70] sm:$0xff]
        %v312 = vld [vmem:[%s266 + $0x78] sm:$0xff]
        %v313 = vld [vmem:[%s266 + $0x80] sm:$0xff]
        %v314 = vld [vmem:[%s266 + $0x88] sm:$0xff]
        %v315 = vld [vmem:[%s266 + $0x90] sm:$0xff]
        %v316 = vld [vmem:[%s266 + $0x98] sm:$0xff]
        %v317 = vld [vmem:[%s266 + $0xa0] sm:$0xff]
        %v318 = vld [vmem:[%s266 + $0xa8] sm:$0xff]
        %v319 = vld [vmem:[%s266 + $0xb0] sm:$0xff]
        %v320 = vld [vmem:[%s266 + $0xb8] sm:$0xff]
        %v321 = vld [vmem:[%s266 + $0xc0] sm:$0xff]
        %v322 = vld [vmem:[%s266 + $0xc8] sm:$0xff]
        %v323 = vld [vmem:[%s266 + $0xd0] sm:$0xff]
        %v324 = vld [vmem:[%s266 + $0xd8] sm:$0xff]
        %v325 = vld [vmem:[%s266 + $0xe0] sm:$0xff]
        %v326 = vld [vmem:[%s266 + $0xe8] sm:$0xff]
        %v327 = vld [vmem:[%s266 + $0xf0] sm:$0xff]
        %v328 = vld [vmem:[%s266 + $0xf8] sm:$0xff]
        %v329 = vld [vmem:[%s1] sm:$0xff]
        %v330 = vld [vmem:[%s1 + $0x8] sm:$0xff]
        %v331 = vld [vmem:[%s4] sm:$0x1]
        %v333 = vlaneseq
        %v334 = vshrl.u32 %v333, 7
        %v335 = vsub.s32 0, %v334
        %v336 = vrot.slane %v331, %v335
        %vm338 = vcmask 130048
        %v340 = vsel %vm338, %v297, 0
        %v343 = vsel %vm338, %v298, 0
        %v346 = vsel %vm338, %v299, 0
        %v349 = vsel %vm338, %v300, 0
        %v352 = vsel %vm338, %v301, 0
        %v355 = vsel %vm338, %v302, 0
        %v358 = vsel %vm338, %v303, 0
        %v361 = vsel %vm338, %v304, 0
        %v364 = vsel %vm338, %v305, 0
        %v367 = vsel %vm338, %v306, 0
        %v370 = vsel %vm338, %v307, 0
        %v373 = vsel %vm338, %v308, 0
        %v376 = vsel %vm338, %v309, 0
        %v379 = vsel %vm338, %v310, 0
        %v382 = vsel %vm338, %v311, 0
        %v385 = vsel %vm338, %v312, 0
        %v388 = vsel %vm338, %v313, 0
        %v391 = vsel %vm338, %v314, 0
        %v394 = vsel %vm338, %v315, 0
        %v397 = vsel %vm338, %v316, 0
        %v400 = vsel %vm338, %v317, 0
        %v403 = vsel %vm338, %v318, 0
        %v406 = vsel %vm338, %v319, 0
        %v409 = vsel %vm338, %v320, 0
        %v412 = vsel %vm338, %v321, 0
        %v415 = vsel %vm338, %v322, 0
        %v418 = vsel %vm338, %v323, 0
        %v421 = vsel %vm338, %v324, 0
        %v424 = vsel %vm338, %v325, 0
        %v427 = vsel %vm338, %v326, 0
        %v430 = vsel %vm338, %v327, 0
        %v433 = vsel %vm338, %v328, 0
        %435 = vmatprep.subr.mxu0 0.0
        %436 = vmatpush1.msra.mxu0 %v329
        %437 = vmatprep.subr.mxu0 0.0
        %438 = vmatpush1.msra.mxu0 %v330
        %439 = vmatprep.subr.mxu0 0.0
        %440 = vmatpush1.msra.mxu0 0.0
        %441 = vmatprep.subr.mxu0 0.0
        %442 = vmatpush1.msra.mxu0 0.0
        %443 = vmatprep.subr.mxu0 0.0
        %444 = vmatpush1.msra.mxu0 0.0
        %445 = vmatprep.subr.mxu0 0.0
        %446 = vmatpush1.msra.mxu0 0.0
        %447 = vmatprep.subr.mxu0 0.0
        %448 = vmatpush1.msra.mxu0 0.0
        %449 = vmatprep.subr.mxu0 0.0
        %450 = vmatpush1.msra.mxu0 0.0
        %451 = vmatprep.subr.mxu0 0.0
        %452 = vmatpush1.msra.mxu0 0.0
        %453 = vmatprep.subr.mxu0 0.0
        %454 = vmatpush1.msra.mxu0 0.0
        %455 = vmatprep.subr.mxu0 0.0
        %456 = vmatpush1.msra.mxu0 0.0
        %457 = vmatprep.subr.mxu0 0.0
        %458 = vmatpush1.msra.mxu0 0.0
        %459 = vmatprep.subr.mxu0 0.0
        %460 = vmatpush1.msra.mxu0 0.0
        %461 = vmatprep.subr.mxu0 0.0
        %462 = vmatpush1.msra.mxu0 0.0
        %463 = vmatprep.subr.mxu0 0.0
        %464 = vmatpush1.msra.mxu0 0.0
        %465 = vmatprep.subr.mxu0 0.0
        %466 = vmatpush1.msra.mxu0 0.0
        %467 = vmatprep.subr.mxu0 0.0
        %468 = vmatpush1.msra.mxu0 0.0
        %469 = vmatprep.subr.mxu0 0.0
        %470 = vmatpush1.msra.mxu0 0.0
        %471 = vmatprep.subr.mxu0 0.0
        %472 = vmatpush1.msra.mxu0 0.0
        %473 = vmatprep.subr.mxu0 0.0
        %474 = vmatpush1.msra.mxu0 0.0
        %475 = vmatprep.subr.mxu0 0.0
        %476 = vmatpush1.msra.mxu0 0.0
        %477 = vmatprep.subr.mxu0 0.0
        %478 = vmatpush1.msra.mxu0 0.0
        %479 = vmatprep.subr.mxu0 0.0
        %480 = vmatpush1.msra.mxu0 0.0
        %481 = vmatprep.subr.mxu0 0.0
        %482 = vmatpush1.msra.mxu0 0.0
        %483 = vmatprep.subr.mxu0 0.0
        %484 = vmatpush1.msra.mxu0 0.0
        %485 = vmatprep.subr.mxu0 0.0
        %486 = vmatpush1.msra.mxu0 0.0
        %487 = vmatprep.subr.mxu0 0.0
        %488 = vmatpush1.msra.mxu0 0.0
        %489 = vmatprep.subr.mxu0 0.0
        %490 = vmatpush1.msra.mxu0 0.0
        %491 = vmatprep.subr.mxu0 0.0
        %492 = vmatpush1.msra.mxu0 0.0
        %493 = vmatprep.subr.mxu0 0.0
        %494 = vmatpush1.msra.mxu0 0.0
        %495 = vmatprep.subr.mxu0 0.0
        %496 = vmatpush1.msra.mxu0 0.0
        %497 = vmatprep.subr.mxu0 0.0
        %498 = vmatpush1.msra.mxu0 0.0
        %499 = vmatprep.mubr.f32.mxu0 0.0
        %500 = vmatmul.mubr.f32.gmra.mrb[0].mxu0 %v340
        %v501 = vpop.f32.mrb[0].mxu0
        %v502 = vadd.f32 %v336, %v501
        %v503 = vpop.f32.mrb[0].mxu0
        %504 = vmatprep.mubr.f32.mxu0 0.0
        %505 = vmatmul.mubr.f32.gmra.mrb[0].mxu0 %v343
        %v506 = vpop.f32.mrb[0].mxu0
        %v507 = vadd.f32 %v336, %v506
        %v508 = vpop.f32.mrb[0].mxu0
        %509 = vmatprep.mubr.f32.mxu0 0.0
        %510 = vmatmul.mubr.f32.gmra.mrb[0].mxu0 %v346
        %v511 = vpop.f32.mrb[0].mxu0
        %v512 = vadd.f32 %v336, %v511
        %v513 = vpop.f32.mrb[0].mxu0
        %514 = vmatprep.mubr.f32.mxu0 0.0
        %515 = vmatmul.mubr.f32.gmra.mrb[0].mxu0 %v349
        %v516 = vpop.f32.mrb[0].mxu0
        %v517 = vadd.f32 %v336, %v516
        %v518 = vpop.f32.mrb[0].mxu0
        %519 = vmatprep.mubr.f32.mxu0 0.0
        %520 = vmatmul.mubr.f32.gmra.mrb[0].mxu0 %v352
        %v521 = vpop.f32.mrb[0].mxu0
        %v522 = vadd.f32 %v336, %v521
        %v523 = vpop.f32.mrb[0].mxu0
        %524 = vmatprep.mubr.f32.mxu0 0.0
        %525 = vmatmul.mubr.f32.gmra.mrb[0].mxu0 %v355
        %v526 = vpop.f32.mrb[0].mxu0
        %v527 = vadd.f32 %v336, %v526
        %v528 = vpop.f32.mrb[0].mxu0
        %529 = vmatprep.mubr.f32.mxu0 0.0
        %530 = vmatmul.mubr.f32.gmra.mrb[0].mxu0 %v358
        %v531 = vpop.f32.mrb[0].mxu0
        %v532 = vadd.f32 %v336, %v531
        %v533 = vpop.f32.mrb[0].mxu0
        %534 = vmatprep.mubr.f32.mxu0 0.0
        %535 = vmatmul.mubr.f32.gmra.mrb[0].mxu0 %v361
        %v536 = vpop.f32.mrb[0].mxu0
        %v537 = vadd.f32 %v336, %v536
        %v538 = vpop.f32.mrb[0].mxu0
        %539 = vmatprep.mubr.f32.mxu0 0.0
        %540 = vmatmul.mubr.f32.gmra.mrb[0].mxu0 %v364
        %v541 = vpop.f32.mrb[0].mxu0
        %v542 = vadd.f32 %v336, %v541
        %v543 = vpop.f32.mrb[0].mxu0
        %544 = vmatprep.mubr.f32.mxu0 0.0
        %545 = vmatmul.mubr.f32.gmra.mrb[0].mxu0 %v367
        %v546 = vpop.f32.mrb[0].mxu0
        %v547 = vadd.f32 %v336, %v546
        %v548 = vpop.f32.mrb[0].mxu0
        %549 = vmatprep.mubr.f32.mxu0 0.0
        %550 = vmatmul.mubr.f32.gmra.mrb[0].mxu0 %v370
        %v551 = vpop.f32.mrb[0].mxu0
        %v552 = vadd.f32 %v336, %v551
        %v553 = vpop.f32.mrb[0].mxu0
        %554 = vmatprep.mubr.f32.mxu0 0.0
        %555 = vmatmul.mubr.f32.gmra.mrb[0].mxu0 %v373
        %v556 = vpop.f32.mrb[0].mxu0
        %v557 = vadd.f32 %v336, %v556
        %v558 = vpop.f32.mrb[0].mxu0
        %559 = vmatprep.mubr.f32.mxu0 0.0
        %560 = vmatmul.mubr.f32.gmra.mrb[0].mxu0 %v376
        %v561 = vpop.f32.mrb[0].mxu0
        %v562 = vadd.f32 %v336, %v561
        %v563 = vpop.f32.mrb[0].mxu0
        %564 = vmatprep.mubr.f32.mxu0 0.0
        %565 = vmatmul.mubr.f32.gmra.mrb[0].mxu0 %v379
        %v566 = vpop.f32.mrb[0].mxu0
        %v567 = vadd.f32 %v336, %v566
        %v568 = vpop.f32.mrb[0].mxu0
        %569 = vmatprep.mubr.f32.mxu0 0.0
        %570 = vmatmul.mubr.f32.gmra.mrb[0].mxu0 %v382
        %v571 = vpop.f32.mrb[0].mxu0
        %v572 = vadd.f32 %v336, %v571
        %v573 = vpop.f32.mrb[0].mxu0
        %574 = vmatprep.mubr.f32.mxu0 0.0
        %575 = vmatmul.mubr.f32.gmra.mrb[0].mxu0 %v385
        %v576 = vpop.f32.mrb[0].mxu0
        %v577 = vadd.f32 %v336, %v576
        %v578 = vpop.f32.mrb[0].mxu0
        %579 = vmatprep.mubr.f32.mxu0 0.0
        %580 = vmatmul.mubr.f32.gmra.mrb[0].mxu0 %v388
        %v581 = vpop.f32.mrb[0].mxu0
        %v582 = vadd.f32 %v336, %v581
        %v583 = vpop.f32.mrb[0].mxu0
        %584 = vmatprep.mubr.f32.mxu0 0.0
        %585 = vmatmul.mubr.f32.gmra.mrb[0].mxu0 %v391
        %v586 = vpop.f32.mrb[0].mxu0
        %v587 = vadd.f32 %v336, %v586
        %v588 = vpop.f32.mrb[0].mxu0
        %589 = vmatprep.mubr.f32.mxu0 0.0
        %590 = vmatmul.mubr.f32.gmra.mrb[0].mxu0 %v394
        %v591 = vpop.f32.mrb[0].mxu0
        %v592 = vadd.f32 %v336, %v591
        %v593 = vpop.f32.mrb[0].mxu0
        %594 = vmatprep.mubr.f32.mxu0 0.0
        %595 = vmatmul.mubr.f32.gmra.mrb[0].mxu0 %v397
        %v596 = vpop.f32.mrb[0].mxu0
        %v597 = vadd.f32 %v336, %v596
        %v598 = vpop.f32.mrb[0].mxu0
        %599 = vmatprep.mubr.f32.mxu0 0.0
        %600 = vmatmul.mubr.f32.gmra.mrb[0].mxu0 %v400
        %v601 = vpop.f32.mrb[0].mxu0
        %v602 = vadd.f32 %v336, %v601
        %v603 = vpop.f32.mrb[0].mxu0
        %604 = vmatprep.mubr.f32.mxu0 0.0
        %605 = vmatmul.mubr.f32.gmra.mrb[0].mxu0 %v403
        %v606 = vpop.f32.mrb[0].mxu0
        %v607 = vadd.f32 %v336, %v606
        %v608 = vpop.f32.mrb[0].mxu0
        %609 = vmatprep.mubr.f32.mxu0 0.0
        %610 = vmatmul.mubr.f32.gmra.mrb[0].mxu0 %v406
        %v611 = vpop.f32.mrb[0].mxu0
        %v612 = vadd.f32 %v336, %v611
        %v613 = vpop.f32.mrb[0].mxu0
        %614 = vmatprep.mubr.f32.mxu0 0.0
        %615 = vmatmul.mubr.f32.gmra.mrb[0].mxu0 %v409
        %v616 = vpop.f32.mrb[0].mxu0
        %v617 = vadd.f32 %v336, %v616
        %v618 = vpop.f32.mrb[0].mxu0
        %619 = vmatprep.mubr.f32.mxu0 0.0
        %620 = vmatmul.mubr.f32.gmra.mrb[0].mxu0 %v412
        %v621 = vpop.f32.mrb[0].mxu0
        %v622 = vadd.f32 %v336, %v621
        %v623 = vpop.f32.mrb[0].mxu0
        %624 = vmatprep.mubr.f32.mxu0 0.0
        %625 = vmatmul.mubr.f32.gmra.mrb[0].mxu0 %v415
        %v626 = vpop.f32.mrb[0].mxu0
        %v627 = vadd.f32 %v336, %v626
        %v628 = vpop.f32.mrb[0].mxu0
        %629 = vmatprep.mubr.f32.mxu0 0.0
        %630 = vmatmul.mubr.f32.gmra.mrb[0].mxu0 %v418
        %v631 = vpop.f32.mrb[0].mxu0
        %v632 = vadd.f32 %v336, %v631
        %v633 = vpop.f32.mrb[0].mxu0
        %634 = vmatprep.mubr.f32.mxu0 0.0
        %635 = vmatmul.mubr.f32.gmra.mrb[0].mxu0 %v421
        %v636 = vpop.f32.mrb[0].mxu0
        %v637 = vadd.f32 %v336, %v636
        %v638 = vpop.f32.mrb[0].mxu0
        %639 = vmatprep.mubr.f32.mxu0 0.0
        %640 = vmatmul.mubr.f32.gmra.mrb[0].mxu0 %v424
        %v641 = vpop.f32.mrb[0].mxu0
        %v642 = vadd.f32 %v336, %v641
        %v643 = vpop.f32.mrb[0].mxu0
        %644 = vmatprep.mubr.f32.mxu0 0.0
        %645 = vmatmul.mubr.f32.gmra.mrb[0].mxu0 %v427
        %v646 = vpop.f32.mrb[0].mxu0
        %v647 = vadd.f32 %v336, %v646
        %v648 = vpop.f32.mrb[0].mxu0
        %649 = vmatprep.mubr.f32.mxu0 0.0
        %650 = vmatmul.mubr.f32.gmra.mrb[0].mxu0 %v430
        %v651 = vpop.f32.mrb[0].mxu0
        %v652 = vadd.f32 %v336, %v651
        %v653 = vpop.f32.mrb[0].mxu0
        %654 = vmatprep.mubr.f32.mxu0 0.0
        %655 = vmatmul.mubr.f32.gmra.mrb[0].mxu0 %v433
        %v656 = vpop.f32.mrb[0].mxu0
        %v657 = vadd.f32 %v336, %v656
        %v658 = vpop.f32.mrb[0].mxu0
        %659 = vdwg.mxu0
        %v660 = vmax.f32 %v502, 0.0
        %v661 = vmax.f32 %v507, 0.0
        %v662 = vmax.f32 %v512, 0.0
        %v663 = vmax.f32 %v517, 0.0
        %v664 = vmax.f32 %v522, 0.0
        %v665 = vmax.f32 %v527, 0.0
        %v666 = vmax.f32 %v532, 0.0
        %v667 = vmax.f32 %v537, 0.0
        %v668 = vmax.f32 %v542, 0.0
        %v669 = vmax.f32 %v547, 0.0
        %v670 = vmax.f32 %v552, 0.0
        %v671 = vmax.f32 %v557, 0.0
        %v672 = vmax.f32 %v562, 0.0
        %v673 = vmax.f32 %v567, 0.0
        %v674 = vmax.f32 %v572, 0.0
        %v675 = vmax.f32 %v577, 0.0
        %v676 = vmax.f32 %v582, 0.0
        %v677 = vmax.f32 %v587, 0.0
        %v678 = vmax.f32 %v592, 0.0
        %v679 = vmax.f32 %v597, 0.0
        %v680 = vmax.f32 %v602, 0.0
        %v681 = vmax.f32 %v607, 0.0
        %v682 = vmax.f32 %v612, 0.0
        %v683 = vmax.f32 %v617, 0.0
        %v684 = vmax.f32 %v622, 0.0
        %v685 = vmax.f32 %v627, 0.0
        %v686 = vmax.f32 %v632, 0.0
        %v687 = vmax.f32 %v637, 0.0
        %v688 = vmax.f32 %v642, 0.0
        %v689 = vmax.f32 %v647, 0.0
        %v690 = vmax.f32 %v652, 0.0
        %v691 = vmax.f32 %v657, 0.0
        %vm692 = vcmask 31744
        %693 = vst.msk [vmem:[#allocation2] sm:$0xff] %vm692, 0.0
        %694 = vst.msk [vmem:[#allocation2 + $0x8] sm:$0xff] %vm692, 0.0
        %vm695 = vcmask 25600
        %696 = vst.msk [vmem:[#allocation2 + $0x10] sm:$0x3] %vm695, 0.0
        %s697 = scalar_lea.vmem [#allocation2], 408
        %698 = vst.msk [vmem:[%s697] sm:$0xff] %vm692, 0.0
        %699 = vst.msk [vmem:[%s697 + $0x8] sm:$0xff] %vm692, 0.0
        %700 = vst.msk [vmem:[%s697 + $0x10] sm:$0x3] %vm695, 0.0
        %vm701 = vcmask 24576
        %702 = vst.msk [vmem:[#allocation2] sm:$0x1] %vm701, 0.0
        %703 = vst.msk [vmem:[#allocation2 + $0x18] sm:$0x1] %vm701, 0.0
        %704 = vst.msk [vmem:[#allocation2 + $0x30] sm:$0x1] %vm701, 0.0
        %705 = vst.msk [vmem:[#allocation2 + $0x48] sm:$0x1] %vm701, 0.0
        %706 = vst.msk [vmem:[#allocation2 + $0x60] sm:$0x1] %vm701, 0.0
        %707 = vst.msk [vmem:[#allocation2 + $0x78] sm:$0x1] %vm701, 0.0
        %708 = vst.msk [vmem:[#allocation2 + $0x90] sm:$0x1] %vm701, 0.0
        %709 = vst.msk [vmem:[#allocation2 + $0xa8] sm:$0x1] %vm701, 0.0
        %710 = vst.msk [vmem:[#allocation2 + $0xc0] sm:$0x1] %vm701, 0.0
        %711 = vst.msk [vmem:[#allocation2 + $0xd8] sm:$0x1] %vm701, 0.0
        %712 = vst.msk [vmem:[#allocation2 + $0xf0] sm:$0x1] %vm701, 0.0
        %713 = vst.msk [vmem:[#allocation2 + $0x108] sm:$0x1] %vm701, 0.0
        %714 = vst.msk [vmem:[#allocation2 + $0x120] sm:$0x1] %vm701, 0.0
        %715 = vst.msk [vmem:[#allocation2 + $0x138] sm:$0x1] %vm701, 0.0
        %716 = vst.msk [vmem:[#allocation2 + $0x150] sm:$0x1] %vm701, 0.0
        %717 = vst.msk [vmem:[#allocation2 + $0x168] sm:$0x1] %vm701, 0.0
        %718 = vst.msk [vmem:[#allocation2 + $0x180] sm:$0x1] %vm701, 0.0
        %719 = vst.msk [vmem:[#allocation2 + $0x198] sm:$0x1] %vm701, 0.0
        %720 = vst.msk [vmem:[#allocation2 + $0x11] sm:$0x1] %vm701, 0.0
        %721 = vst.msk [vmem:[#allocation2 + $0x29] sm:$0x1] %vm701, 0.0
        %722 = vst.msk [vmem:[#allocation2 + $0x41] sm:$0x1] %vm701, 0.0
        %723 = vst.msk [vmem:[#allocation2 + $0x59] sm:$0x1] %vm701, 0.0
        %724 = vst.msk [vmem:[#allocation2 + $0x71] sm:$0x1] %vm701, 0.0
        %725 = vst.msk [vmem:[#allocation2 + $0x89] sm:$0x1] %vm701, 0.0
        %726 = vst.msk [vmem:[#allocation2 + $0xa1] sm:$0x1] %vm701, 0.0
        %727 = vst.msk [vmem:[#allocation2 + $0xb9] sm:$0x1] %vm701, 0.0
        %728 = vst.msk [vmem:[#allocation2 + $0xd1] sm:$0x1] %vm701, 0.0
        %729 = vst.msk [vmem:[#allocation2 + $0xe9] sm:$0x1] %vm701, 0.0
        %730 = vst.msk [vmem:[#allocation2 + $0x101] sm:$0x1] %vm701, 0.0
        %731 = vst.msk [vmem:[#allocation2 + $0x119] sm:$0x1] %vm701, 0.0
        %732 = vst.msk [vmem:[#allocation2 + $0x131] sm:$0x1] %vm701, 0.0
        %733 = vst.msk [vmem:[#allocation2 + $0x149] sm:$0x1] %vm701, 0.0
        %734 = vst.msk [vmem:[#allocation2 + $0x161] sm:$0x1] %vm701, 0.0
        %735 = vst.msk [vmem:[#allocation2 + $0x179] sm:$0x1] %vm701, 0.0
        %736 = vst.msk [vmem:[#allocation2 + $0x191] sm:$0x1] %vm701, 0.0
        %737 = vst.msk [vmem:[#allocation2 + $0x1a9] sm:$0x1] %vm701, 0.0
        %s738 = scalar_lea.vmem [#allocation2], 24
        %739 = vst.msk [vmem:[%s738 + $0x1] sm:$0xff] %vm692, %v660
        %740 = vst.msk [vmem:[%s738 + $0x9] sm:$0xff] %vm692, %v661
        %741 = vst.msk [vmem:[%s738 + $0x19] sm:$0xff] %vm692, %v662
        %742 = vst.msk [vmem:[%s738 + $0x21] sm:$0xff] %vm692, %v663
        %743 = vst.msk [vmem:[%s738 + $0x31] sm:$0xff] %vm692, %v664
        %744 = vst.msk [vmem:[%s738 + $0x39] sm:$0xff] %vm692, %v665
        %745 = vst.msk [vmem:[%s738 + $0x49] sm:$0xff] %vm692, %v666
        %746 = vst.msk [vmem:[%s738 + $0x51] sm:$0xff] %vm692, %v667
        %747 = vst.msk [vmem:[%s738 + $0x61] sm:$0xff] %vm692, %v668
        %748 = vst.msk [vmem:[%s738 + $0x69] sm:$0xff] %vm692, %v669
        %749 = vst.msk [vmem:[%s738 + $0x79] sm:$0xff] %vm692, %v670
        %750 = vst.msk [vmem:[%s738 + $0x81] sm:$0xff] %vm692, %v671
        %751 = vst.msk [vmem:[%s738 + $0x91] sm:$0xff] %vm692, %v672
        %752 = vst.msk [vmem:[%s738 + $0x99] sm:$0xff] %vm692, %v673
        %753 = vst.msk [vmem:[%s738 + $0xa9] sm:$0xff] %vm692, %v674
        %754 = vst.msk [vmem:[%s738 + $0xb1] sm:$0xff] %vm692, %v675
        %755 = vst.msk [vmem:[%s738 + $0xc1] sm:$0xff] %vm692, %v676
        %756 = vst.msk [vmem:[%s738 + $0xc9] sm:$0xff] %vm692, %v677
        %757 = vst.msk [vmem:[%s738 + $0xd9] sm:$0xff] %vm692, %v678
        %758 = vst.msk [vmem:[%s738 + $0xe1] sm:$0xff] %vm692, %v679
        %759 = vst.msk [vmem:[%s738 + $0xf1] sm:$0xff] %vm692, %v680
        %760 = vst.msk [vmem:[%s738 + $0xf9] sm:$0xff] %vm692, %v681
        %761 = vst.msk [vmem:[%s738 + $0x109] sm:$0xff] %vm692, %v682
        %762 = vst.msk [vmem:[%s738 + $0x111] sm:$0xff] %vm692, %v683
        %763 = vst.msk [vmem:[%s738 + $0x121] sm:$0xff] %vm692, %v684
        %764 = vst.msk [vmem:[%s738 + $0x129] sm:$0xff] %vm692, %v685
        %765 = vst.msk [vmem:[%s738 + $0x139] sm:$0xff] %vm692, %v686
        %766 = vst.msk [vmem:[%s738 + $0x141] sm:$0xff] %vm692, %v687
        %767 = vst.msk [vmem:[%s738 + $0x151] sm:$0xff] %vm692, %v688
        %768 = vst.msk [vmem:[%s738 + $0x159] sm:$0xff] %vm692, %v689
        %769 = vst.msk [vmem:[%s738 + $0x169] sm:$0xff] %vm692, %v690
        %770 = vst.msk [vmem:[%s738 + $0x171] sm:$0xff] %vm692, %v691
        %v771 = vld [vmem:[#allocation2] sm:$0xff]
        %v772 = vld [vmem:[#allocation2 + $0x8] sm:$0xff]
        %v773 = vld [vmem:[#allocation2 + $0x18] sm:$0xff]
        %v774 = vld [vmem:[#allocation2 + $0x20] sm:$0xff]
        %v775 = vld [vmem:[#allocation2 + $0x30] sm:$0xff]
        %v776 = vld [vmem:[#allocation2 + $0x38] sm:$0xff]
        %v777 = vld [vmem:[#allocation2 + $0x48] sm:$0xff]
        %v778 = vld [vmem:[#allocation2 + $0x50] sm:$0xff]
        %v779 = vld [vmem:[#allocation2 + $0x60] sm:$0xff]
        %v780 = vld [vmem:[#allocation2 + $0x68] sm:$0xff]
        %v781 = vld [vmem:[#allocation2 + $0x78] sm:$0xff]
        %v782 = vld [vmem:[#allocation2 + $0x80] sm:$0xff]
        %v783 = vld [vmem:[#allocation2 + $0x90] sm:$0xff]
        %v784 = vld [vmem:[#allocation2 + $0x98] sm:$0xff]
        %v785 = vld [vmem:[#allocation2 + $0xa8] sm:$0xff]
        %v786 = vld [vmem:[#allocation2 + $0xb0] sm:$0xff]
        %v787 = vld [vmem:[#allocation2 + $0xc0] sm:$0xff]
        %v788 = vld [vmem:[#allocation2 + $0xc8] sm:$0xff]
        %v789 = vld [vmem:[#allocation2 + $0xd8] sm:$0xff]
        %v790 = vld [vmem:[#allocation2 + $0xe0] sm:$0xff]
        %v791 = vld [vmem:[#allocation2 + $0xf0] sm:$0xff]
        %v792 = vld [vmem:[#allocation2 + $0xf8] sm:$0xff]
        %v793 = vld [vmem:[#allocation2 + $0x108] sm:$0xff]
        %v794 = vld [vmem:[#allocation2 + $0x110] sm:$0xff]
        %v795 = vld [vmem:[#allocation2 + $0x120] sm:$0xff]
        %v796 = vld [vmem:[#allocation2 + $0x128] sm:$0xff]
        %v797 = vld [vmem:[#allocation2 + $0x138] sm:$0xff]
        %v798 = vld [vmem:[#allocation2 + $0x140] sm:$0xff]
        %v799 = vld [vmem:[#allocation2 + $0x150] sm:$0xff]
        %v800 = vld [vmem:[#allocation2 + $0x158] sm:$0xff]
        %v801 = vld [vmem:[#allocation2 + $0x168] sm:$0xff]
        %v802 = vld [vmem:[#allocation2 + $0x170] sm:$0xff]
        %v803 = vld [vmem:[%s2] sm:$0xf]
        %v804 = vld [vmem:[#allocation2 + $0x1] sm:$0xff]
        %v805 = vld [vmem:[#allocation2 + $0x9] sm:$0xff]
        %v806 = vld [vmem:[#allocation2 + $0x19] sm:$0xff]
        %v807 = vld [vmem:[#allocation2 + $0x21] sm:$0xff]
        %v808 = vld [vmem:[#allocation2 + $0x31] sm:$0xff]
        %v809 = vld [vmem:[#allocation2 + $0x39] sm:$0xff]
        %v810 = vld [vmem:[#allocation2 + $0x49] sm:$0xff]
        %v811 = vld [vmem:[#allocation2 + $0x51] sm:$0xff]
        %v812 = vld [vmem:[#allocation2 + $0x61] sm:$0xff]
        %v813 = vld [vmem:[#allocation2 + $0x69] sm:$0xff]
        %v814 = vld [vmem:[#allocation2 + $0x79] sm:$0xff]
        %v815 = vld [vmem:[#allocation2 + $0x81] sm:$0xff]
        %v816 = vld [vmem:[#allocation2 + $0x91] sm:$0xff]
        %v817 = vld [vmem:[#allocation2 + $0x99] sm:$0xff]
        %v818 = vld [vmem:[#allocation2 + $0xa9] sm:$0xff]
        %v819 = vld [vmem:[#allocation2 + $0xb1] sm:$0xff]
        %v820 = vld [vmem:[#allocation2 + $0xc1] sm:$0xff]
        %v821 = vld [vmem:[#allocation2 + $0xc9] sm:$0xff]
        %v822 = vld [vmem:[#allocation2 + $0xd9] sm:$0xff]
        %v823 = vld [vmem:[#allocation2 + $0xe1] sm:$0xff]
        %v824 = vld [vmem:[#allocation2 + $0xf1] sm:$0xff]
        %v825 = vld [vmem:[#allocation2 + $0xf9] sm:$0xff]
        %v826 = vld [vmem:[#allocation2 + $0x109] sm:$0xff]
        %v827 = vld [vmem:[#allocation2 + $0x111] sm:$0xff]
        %v828 = vld [vmem:[#allocation2 + $0x121] sm:$0xff]
        %v829 = vld [vmem:[#allocation2 + $0x129] sm:$0xff]
        %v830 = vld [vmem:[#allocation2 + $0x139] sm:$0xff]
        %v831 = vld [vmem:[#allocation2 + $0x141] sm:$0xff]
        %v832 = vld [vmem:[#allocation2 + $0x151] sm:$0xff]
        %v833 = vld [vmem:[#allocation2 + $0x159] sm:$0xff]
        %v834 = vld [vmem:[#allocation2 + $0x169] sm:$0xff]
        %v835 = vld [vmem:[#allocation2 + $0x171] sm:$0xff]
        %s836 = scalar_lea.vmem %s2, 4
        %v837 = vld [vmem:[%s836] sm:$0xf]
        %v839 = vsel %vm692, %v804, 0
        %v842 = vsel %vm692, %v805, 0
        %v845 = vsel %vm692, %v806, 0
        %v848 = vsel %vm692, %v807, 0
        %v851 = vsel %vm692, %v808, 0
        %v854 = vsel %vm692, %v809, 0
        %v857 = vsel %vm692, %v810, 0
        %v860 = vsel %vm692, %v811, 0
        %v863 = vsel %vm692, %v812, 0
        %v866 = vsel %vm692, %v813, 0
        %v869 = vsel %vm692, %v814, 0
        %v872 = vsel %vm692, %v815, 0
        %v875 = vsel %vm692, %v816, 0
        %v878 = vsel %vm692, %v817, 0
        %v881 = vsel %vm692, %v818, 0
        %v884 = vsel %vm692, %v819, 0
        %v887 = vsel %vm692, %v820, 0
        %v890 = vsel %vm692, %v821, 0
        %v893 = vsel %vm692, %v822, 0
        %v896 = vsel %vm692, %v823, 0
        %v899 = vsel %vm692, %v824, 0
        %v902 = vsel %vm692, %v825, 0
        %v905 = vsel %vm692, %v826, 0
        %v908 = vsel %vm692, %v827, 0
        %v911 = vsel %vm692, %v828, 0
        %v914 = vsel %vm692, %v829, 0
        %v917 = vsel %vm692, %v830, 0
        %v920 = vsel %vm692, %v831, 0
        %v923 = vsel %vm692, %v832, 0
        %v926 = vsel %vm692, %v833, 0
        %v929 = vsel %vm692, %v834, 0
        %v932 = vsel %vm692, %v835, 0
        %vm934 = vcmask 1043456
        %v936 = vsel %vm934, %v837, 0
        %938 = vmatprep.subr.mxu0 0.0
        %939 = vmatpush1.msra.mxu0 %v936
        %940 = vmatprep.subr.mxu0 0.0
        %941 = vmatpush1.msra.mxu0 0.0
        %942 = vmatprep.subr.mxu0 0.0
        %943 = vmatpush1.msra.mxu0 0.0
        %944 = vmatprep.subr.mxu0 0.0
        %945 = vmatpush1.msra.mxu0 0.0
        %946 = vmatprep.subr.mxu0 0.0
        %947 = vmatpush1.msra.mxu0 0.0
        %948 = vmatprep.subr.mxu0 0.0
        %949 = vmatpush1.msra.mxu0 0.0
        %950 = vmatprep.subr.mxu0 0.0
        %951 = vmatpush1.msra.mxu0 0.0
        %952 = vmatprep.subr.mxu0 0.0
        %953 = vmatpush1.msra.mxu0 0.0
        %954 = vmatprep.subr.mxu0 0.0
        %955 = vmatpush1.msra.mxu0 0.0
        %956 = vmatprep.subr.mxu0 0.0
        %957 = vmatpush1.msra.mxu0 0.0
        %958 = vmatprep.subr.mxu0 0.0
        %959 = vmatpush1.msra.mxu0 0.0
        %960 = vmatprep.subr.mxu0 0.0
        %961 = vmatpush1.msra.mxu0 0.0
        %962 = vmatprep.subr.mxu0 0.0
        %963 = vmatpush1.msra.mxu0 0.0
        %964 = vmatprep.subr.mxu0 0.0
        %965 = vmatpush1.msra.mxu0 0.0
        %966 = vmatprep.subr.mxu0 0.0
        %967 = vmatpush1.msra.mxu0 0.0
        %968 = vmatprep.subr.mxu0 0.0
        %969 = vmatpush1.msra.mxu0 0.0
        %970 = vmatprep.subr.mxu0 0.0
        %971 = vmatpush1.msra.mxu0 0.0
        %972 = vmatprep.subr.mxu0 0.0
        %973 = vmatpush1.msra.mxu0 0.0
        %974 = vmatprep.subr.mxu0 0.0
        %975 = vmatpush1.msra.mxu0 0.0
        %976 = vmatprep.subr.mxu0 0.0
        %977 = vmatpush1.msra.mxu0 0.0
        %978 = vmatprep.subr.mxu0 0.0
        %979 = vmatpush1.msra.mxu0 0.0
        %980 = vmatprep.subr.mxu0 0.0
        %981 = vmatpush1.msra.mxu0 0.0
        %982 = vmatprep.subr.mxu0 0.0
        %983 = vmatpush1.msra.mxu0 0.0
        %984 = vmatprep.subr.mxu0 0.0
        %985 = vmatpush1.msra.mxu0 0.0
        %986 = vmatprep.subr.mxu0 0.0
        %987 = vmatpush1.msra.mxu0 0.0
        %988 = vmatprep.subr.mxu0 0.0
        %989 = vmatpush1.msra.mxu0 0.0
        %990 = vmatprep.subr.mxu0 0.0
        %991 = vmatpush1.msra.mxu0 0.0
        %992 = vmatprep.subr.mxu0 0.0
        %993 = vmatpush1.msra.mxu0 0.0
        %994 = vmatprep.subr.mxu0 0.0
        %995 = vmatpush1.msra.mxu0 0.0
        %996 = vmatprep.subr.mxu0 0.0
        %997 = vmatpush1.msra.mxu0 0.0
        %998 = vmatprep.subr.mxu0 0.0
        %999 = vmatpush1.msra.mxu0 0.0
        %1000 = vmatprep.subr.mxu0 0.0
        %1001 = vmatpush1.msra.mxu0 0.0
        %1002 = vmatprep.mubr.f32.mxu0 0.0
        %1003 = vmatmul.mubr.f32.gmra.mrb[0].mxu0 %v839
        %v1004 = vpop.f32.mrb[0].mxu0
        %v1005 = vadd.f32 0.0, %v1004
        %v1006 = vpop.f32.mrb[0].mxu0
        %1007 = vmatprep.mubr.f32.mxu0 0.0
        %1008 = vmatmul.mubr.f32.gmra.mrb[0].mxu0 %v842
        %v1009 = vpop.f32.mrb[0].mxu0
        %v1010 = vadd.f32 0.0, %v1009
        %v1011 = vpop.f32.mrb[0].mxu0
        %1012 = vmatprep.mubr.f32.mxu0 0.0
        %1013 = vmatmul.mubr.f32.gmra.mrb[0].mxu0 %v845
        %v1014 = vpop.f32.mrb[0].mxu0
        %v1015 = vadd.f32 0.0, %v1014
        %v1016 = vpop.f32.mrb[0].mxu0
        %1017 = vmatprep.mubr.f32.mxu0 0.0
        %1018 = vmatmul.mubr.f32.gmra.mrb[0].mxu0 %v848
        %v1019 = vpop.f32.mrb[0].mxu0
        %v1020 = vadd.f32 0.0, %v1019
        %v1021 = vpop.f32.mrb[0].mxu0
        %1022 = vmatprep.mubr.f32.mxu0 0.0
        %1023 = vmatmul.mubr.f32.gmra.mrb[0].mxu0 %v851
        %v1024 = vpop.f32.mrb[0].mxu0
        %v1025 = vadd.f32 0.0, %v1024
        %v1026 = vpop.f32.mrb[0].mxu0
        %1027 = vmatprep.mubr.f32.mxu0 0.0
        %1028 = vmatmul.mubr.f32.gmra.mrb[0].mxu0 %v854
        %v1029 = vpop.f32.mrb[0].mxu0
        %v1030 = vadd.f32 0.0, %v1029
        %v1031 = vpop.f32.mrb[0].mxu0
        %1032 = vmatprep.mubr.f32.mxu0 0.0
        %1033 = vmatmul.mubr.f32.gmra.mrb[0].mxu0 %v857
        %v1034 = vpop.f32.mrb[0].mxu0
        %v1035 = vadd.f32 0.0, %v1034
        %v1036 = vpop.f32.mrb[0].mxu0
        %1037 = vmatprep.mubr.f32.mxu0 0.0
        %1038 = vmatmul.mubr.f32.gmra.mrb[0].mxu0 %v860
        %v1039 = vpop.f32.mrb[0].mxu0
        %v1040 = vadd.f32 0.0, %v1039
        %v1041 = vpop.f32.mrb[0].mxu0
        %1042 = vmatprep.mubr.f32.mxu0 0.0
        %1043 = vmatmul.mubr.f32.gmra.mrb[0].mxu0 %v863
        %v1044 = vpop.f32.mrb[0].mxu0
        %v1045 = vadd.f32 0.0, %v1044
        %v1046 = vpop.f32.mrb[0].mxu0
        %1047 = vmatprep.mubr.f32.mxu0 0.0
        %1048 = vmatmul.mubr.f32.gmra.mrb[0].mxu0 %v866
        %v1049 = vpop.f32.mrb[0].mxu0
        %v1050 = vadd.f32 0.0, %v1049
        %v1051 = vpop.f32.mrb[0].mxu0
        %1052 = vmatprep.mubr.f32.mxu0 0.0
        %1053 = vmatmul.mubr.f32.gmra.mrb[0].mxu0 %v869
        %v1054 = vpop.f32.mrb[0].mxu0
        %v1055 = vadd.f32 0.0, %v1054
        %v1056 = vpop.f32.mrb[0].mxu0
        %1057 = vmatprep.mubr.f32.mxu0 0.0
        %1058 = vmatmul.mubr.f32.gmra.mrb[0].mxu0 %v872
        %v1059 = vpop.f32.mrb[0].mxu0
        %v1060 = vadd.f32 0.0, %v1059
        %v1061 = vpop.f32.mrb[0].mxu0
        %1062 = vmatprep.mubr.f32.mxu0 0.0
        %1063 = vmatmul.mubr.f32.gmra.mrb[0].mxu0 %v875
        %v1064 = vpop.f32.mrb[0].mxu0
        %v1065 = vadd.f32 0.0, %v1064
        %v1066 = vpop.f32.mrb[0].mxu0
        %1067 = vmatprep.mubr.f32.mxu0 0.0
        %1068 = vmatmul.mubr.f32.gmra.mrb[0].mxu0 %v878
        %v1069 = vpop.f32.mrb[0].mxu0
        %v1070 = vadd.f32 0.0, %v1069
        %v1071 = vpop.f32.mrb[0].mxu0
        %1072 = vmatprep.mubr.f32.mxu0 0.0
        %1073 = vmatmul.mubr.f32.gmra.mrb[0].mxu0 %v881
        %v1074 = vpop.f32.mrb[0].mxu0
        %v1075 = vadd.f32 0.0, %v1074
        %v1076 = vpop.f32.mrb[0].mxu0
        %1077 = vmatprep.mubr.f32.mxu0 0.0
        %1078 = vmatmul.mubr.f32.gmra.mrb[0].mxu0 %v884
        %v1079 = vpop.f32.mrb[0].mxu0
        %v1080 = vadd.f32 0.0, %v1079
        %v1081 = vpop.f32.mrb[0].mxu0
        %1082 = vmatprep.mubr.f32.mxu0 0.0
        %1083 = vmatmul.mubr.f32.gmra.mrb[0].mxu0 %v887
        %v1084 = vpop.f32.mrb[0].mxu0
        %v1085 = vadd.f32 0.0, %v1084
        %v1086 = vpop.f32.mrb[0].mxu0
        %1087 = vmatprep.mubr.f32.mxu0 0.0
        %1088 = vmatmul.mubr.f32.gmra.mrb[0].mxu0 %v890
        %v1089 = vpop.f32.mrb[0].mxu0
        %v1090 = vadd.f32 0.0, %v1089
        %v1091 = vpop.f32.mrb[0].mxu0
        %1092 = vmatprep.mubr.f32.mxu0 0.0
        %1093 = vmatmul.mubr.f32.gmra.mrb[0].mxu0 %v893
        %v1094 = vpop.f32.mrb[0].mxu0
        %v1095 = vadd.f32 0.0, %v1094
        %v1096 = vpop.f32.mrb[0].mxu0
        %1097 = vmatprep.mubr.f32.mxu0 0.0
        %1098 = vmatmul.mubr.f32.gmra.mrb[0].mxu0 %v896
        %v1099 = vpop.f32.mrb[0].mxu0
        %v1100 = vadd.f32 0.0, %v1099
        %v1101 = vpop.f32.mrb[0].mxu0
        %1102 = vmatprep.mubr.f32.mxu0 0.0
        %1103 = vmatmul.mubr.f32.gmra.mrb[0].mxu0 %v899
        %v1104 = vpop.f32.mrb[0].mxu0
        %v1105 = vadd.f32 0.0, %v1104
        %v1106 = vpop.f32.mrb[0].mxu0
        %1107 = vmatprep.mubr.f32.mxu0 0.0
        %1108 = vmatmul.mubr.f32.gmra.mrb[0].mxu0 %v902
        %v1109 = vpop.f32.mrb[0].mxu0
        %v1110 = vadd.f32 0.0, %v1109
        %v1111 = vpop.f32.mrb[0].mxu0
        %1112 = vmatprep.mubr.f32.mxu0 0.0
        %1113 = vmatmul.mubr.f32.gmra.mrb[0].mxu0 %v905
        %v1114 = vpop.f32.mrb[0].mxu0
        %v1115 = vadd.f32 0.0, %v1114
        %v1116 = vpop.f32.mrb[0].mxu0
        %1117 = vmatprep.mubr.f32.mxu0 0.0
        %1118 = vmatmul.mubr.f32.gmra.mrb[0].mxu0 %v908
        %v1119 = vpop.f32.mrb[0].mxu0
        %v1120 = vadd.f32 0.0, %v1119
        %v1121 = vpop.f32.mrb[0].mxu0
        %1122 = vmatprep.mubr.f32.mxu0 0.0
        %1123 = vmatmul.mubr.f32.gmra.mrb[0].mxu0 %v911
        %v1124 = vpop.f32.mrb[0].mxu0
        %v1125 = vadd.f32 0.0, %v1124
        %v1126 = vpop.f32.mrb[0].mxu0
        %1127 = vmatprep.mubr.f32.mxu0 0.0
        %1128 = vmatmul.mubr.f32.gmra.mrb[0].mxu0 %v914
        %v1129 = vpop.f32.mrb[0].mxu0
        %v1130 = vadd.f32 0.0, %v1129
        %v1131 = vpop.f32.mrb[0].mxu0
        %1132 = vmatprep.mubr.f32.mxu0 0.0
        %1133 = vmatmul.mubr.f32.gmra.mrb[0].mxu0 %v917
        %v1134 = vpop.f32.mrb[0].mxu0
        %v1135 = vadd.f32 0.0, %v1134
        %v1136 = vpop.f32.mrb[0].mxu0
        %1137 = vmatprep.mubr.f32.mxu0 0.0
        %1138 = vmatmul.mubr.f32.gmra.mrb[0].mxu0 %v920
        %v1139 = vpop.f32.mrb[0].mxu0
        %v1140 = vadd.f32 0.0, %v1139
        %v1141 = vpop.f32.mrb[0].mxu0
        %1142 = vmatprep.mubr.f32.mxu0 0.0
        %1143 = vmatmul.mubr.f32.gmra.mrb[0].mxu0 %v923
        %v1144 = vpop.f32.mrb[0].mxu0
        %v1145 = vadd.f32 0.0, %v1144
        %v1146 = vpop.f32.mrb[0].mxu0
        %1147 = vmatprep.mubr.f32.mxu0 0.0
        %1148 = vmatmul.mubr.f32.gmra.mrb[0].mxu0 %v926
        %v1149 = vpop.f32.mrb[0].mxu0
        %v1150 = vadd.f32 0.0, %v1149
        %v1151 = vpop.f32.mrb[0].mxu0
        %1152 = vmatprep.mubr.f32.mxu0 0.0
        %1153 = vmatmul.mubr.f32.gmra.mrb[0].mxu0 %v929
        %v1154 = vpop.f32.mrb[0].mxu0
        %v1155 = vadd.f32 0.0, %v1154
        %v1156 = vpop.f32.mrb[0].mxu0
        %1157 = vmatprep.mubr.f32.mxu0 0.0
        %1158 = vmatmul.mubr.f32.gmra.mrb[0].mxu0 %v932
        %v1159 = vpop.f32.mrb[0].mxu0
        %v1160 = vadd.f32 0.0, %v1159
        %v1161 = vpop.f32.mrb[0].mxu0
        %1162 = vdwg.mxu0
        %v1164 = vsel %vm692, %v771, 0
        %v1167 = vsel %vm692, %v772, 0
        %v1170 = vsel %vm692, %v773, 0
        %v1173 = vsel %vm692, %v774, 0
        %v1176 = vsel %vm692, %v775, 0
        %v1179 = vsel %vm692, %v776, 0
        %v1182 = vsel %vm692, %v777, 0
        %v1185 = vsel %vm692, %v778, 0
        %v1188 = vsel %vm692, %v779, 0
        %v1191 = vsel %vm692, %v780, 0
        %v1194 = vsel %vm692, %v781, 0
        %v1197 = vsel %vm692, %v782, 0
        %v1200 = vsel %vm692, %v783, 0
        %v1203 = vsel %vm692, %v784, 0
        %v1206 = vsel %vm692, %v785, 0
        %v1209 = vsel %vm692, %v786, 0
        %v1212 = vsel %vm692, %v787, 0
        %v1215 = vsel %vm692, %v788, 0
        %v1218 = vsel %vm692, %v789, 0
        %v1221 = vsel %vm692, %v790, 0
        %v1224 = vsel %vm692, %v791, 0
        %v1227 = vsel %vm692, %v792, 0
        %v1230 = vsel %vm692, %v793, 0
        %v1233 = vsel %vm692, %v794, 0
        %v1236 = vsel %vm692, %v795, 0
        %v1239 = vsel %vm692, %v796, 0
        %v1242 = vsel %vm692, %v797, 0
        %v1245 = vsel %vm692, %v798, 0
        %v1248 = vsel %vm692, %v799, 0
        %v1251 = vsel %vm692, %v800, 0
        %v1254 = vsel %vm692, %v801, 0
        %v1257 = vsel %vm692, %v802, 0
        %v1260 = vsel %vm934, %v803, 0
        %1262 = vmatprep.subr.mxu0 0.0
        %1263 = vmatpush1.msra.mxu0 %v1260
        %1264 = vmatprep.subr.mxu0 0.0
        %1265 = vmatpush1.msra.mxu0 0.0
        %1266 = vmatprep.subr.mxu0 0.0
        %1267 = vmatpush1.msra.mxu0 0.0
        %1268 = vmatprep.subr.mxu0 0.0
        %1269 = vmatpush1.msra.mxu0 0.0
        %1270 = vmatprep.subr.mxu0 0.0
        %1271 = vmatpush1.msra.mxu0 0.0
        %1272 = vmatprep.subr.mxu0 0.0
        %1273 = vmatpush1.msra.mxu0 0.0
        %1274 = vmatprep.subr.mxu0 0.0
        %1275 = vmatpush1.msra.mxu0 0.0
        %1276 = vmatprep.subr.mxu0 0.0
        %1277 = vmatpush1.msra.mxu0 0.0
        %1278 = vmatprep.subr.mxu0 0.0
        %1279 = vmatpush1.msra.mxu0 0.0
        %1280 = vmatprep.subr.mxu0 0.0
        %1281 = vmatpush1.msra.mxu0 0.0
        %1282 = vmatprep.subr.mxu0 0.0
        %1283 = vmatpush1.msra.mxu0 0.0
        %1284 = vmatprep.subr.mxu0 0.0
        %1285 = vmatpush1.msra.mxu0 0.0
        %1286 = vmatprep.subr.mxu0 0.0
        %1287 = vmatpush1.msra.mxu0 0.0
        %1288 = vmatprep.subr.mxu0 0.0
        %1289 = vmatpush1.msra.mxu0 0.0
        %1290 = vmatprep.subr.mxu0 0.0
        %1291 = vmatpush1.msra.mxu0 0.0
        %1292 = vmatprep.subr.mxu0 0.0
        %1293 = vmatpush1.msra.mxu0 0.0
        %1294 = vmatprep.subr.mxu0 0.0
        %1295 = vmatpush1.msra.mxu0 0.0
        %1296 = vmatprep.subr.mxu0 0.0
        %1297 = vmatpush1.msra.mxu0 0.0
        %1298 = vmatprep.subr.mxu0 0.0
        %1299 = vmatpush1.msra.mxu0 0.0
        %1300 = vmatprep.subr.mxu0 0.0
        %1301 = vmatpush1.msra.mxu0 0.0
        %1302 = vmatprep.subr.mxu0 0.0
        %1303 = vmatpush1.msra.mxu0 0.0
        %1304 = vmatprep.subr.mxu0 0.0
        %1305 = vmatpush1.msra.mxu0 0.0
        %1306 = vmatprep.subr.mxu0 0.0
        %1307 = vmatpush1.msra.mxu0 0.0
        %1308 = vmatprep.subr.mxu0 0.0
        %1309 = vmatpush1.msra.mxu0 0.0
        %1310 = vmatprep.subr.mxu0 0.0
        %1311 = vmatpush1.msra.mxu0 0.0
        %1312 = vmatprep.subr.mxu0 0.0
        %1313 = vmatpush1.msra.mxu0 0.0
        %1314 = vmatprep.subr.mxu0 0.0
        %1315 = vmatpush1.msra.mxu0 0.0
        %1316 = vmatprep.subr.mxu0 0.0
        %1317 = vmatpush1.msra.mxu0 0.0
        %1318 = vmatprep.subr.mxu0 0.0
        %1319 = vmatpush1.msra.mxu0 0.0
        %1320 = vmatprep.subr.mxu0 0.0
        %1321 = vmatpush1.msra.mxu0 0.0
        %1322 = vmatprep.subr.mxu0 0.0
        %1323 = vmatpush1.msra.mxu0 0.0
        %1324 = vmatprep.subr.mxu0 0.0
        %1325 = vmatpush1.msra.mxu0 0.0
        %1326 = vmatprep.mubr.f32.mxu0 0.0
        %1327 = vmatmul.mubr.f32.gmra.mrb[0].mxu0 %v1164
        %v1328 = vpop.f32.mrb[0].mxu0
        %v1329 = vadd.f32 %v1005, %v1328
        %v1330 = vpop.f32.mrb[0].mxu0
        %1331 = vmatprep.mubr.f32.mxu0 0.0
        %1332 = vmatmul.mubr.f32.gmra.mrb[0].mxu0 %v1167
        %v1333 = vpop.f32.mrb[0].mxu0
        %v1334 = vadd.f32 %v1010, %v1333
        %v1335 = vpop.f32.mrb[0].mxu0
        %1336 = vmatprep.mubr.f32.mxu0 0.0
        %1337 = vmatmul.mubr.f32.gmra.mrb[0].mxu0 %v1170
        %v1338 = vpop.f32.mrb[0].mxu0
        %v1339 = vadd.f32 %v1015, %v1338
        %v1340 = vpop.f32.mrb[0].mxu0
        %1341 = vmatprep.mubr.f32.mxu0 0.0
        %1342 = vmatmul.mubr.f32.gmra.mrb[0].mxu0 %v1173
        %v1343 = vpop.f32.mrb[0].mxu0
        %v1344 = vadd.f32 %v1020, %v1343
        %v1345 = vpop.f32.mrb[0].mxu0
        %1346 = vmatprep.mubr.f32.mxu0 0.0
        %1347 = vmatmul.mubr.f32.gmra.mrb[0].mxu0 %v1176
        %v1348 = vpop.f32.mrb[0].mxu0
        %v1349 = vadd.f32 %v1025, %v1348
        %v1350 = vpop.f32.mrb[0].mxu0
        %1351 = vmatprep.mubr.f32.mxu0 0.0
        %1352 = vmatmul.mubr.f32.gmra.mrb[0].mxu0 %v1179
        %v1353 = vpop.f32.mrb[0].mxu0
        %v1354 = vadd.f32 %v1030, %v1353
        %v1355 = vpop.f32.mrb[0].mxu0
        %1356 = vmatprep.mubr.f32.mxu0 0.0
        %1357 = vmatmul.mubr.f32.gmra.mrb[0].mxu0 %v1182
        %v1358 = vpop.f32.mrb[0].mxu0
        %v1359 = vadd.f32 %v1035, %v1358
        %v1360 = vpop.f32.mrb[0].mxu0
        %1361 = vmatprep.mubr.f32.mxu0 0.0
        %1362 = vmatmul.mubr.f32.gmra.mrb[0].mxu0 %v1185
        %v1363 = vpop.f32.mrb[0].mxu0
        %v1364 = vadd.f32 %v1040, %v1363
        %v1365 = vpop.f32.mrb[0].mxu0
        %1366 = vmatprep.mubr.f32.mxu0 0.0
        %1367 = vmatmul.mubr.f32.gmra.mrb[0].mxu0 %v1188
        %v1368 = vpop.f32.mrb[0].mxu0
        %v1369 = vadd.f32 %v1045, %v1368
        %v1370 = vpop.f32.mrb[0].mxu0
        %1371 = vmatprep.mubr.f32.mxu0 0.0
        %1372 = vmatmul.mubr.f32.gmra.mrb[0].mxu0 %v1191
        %v1373 = vpop.f32.mrb[0].mxu0
        %v1374 = vadd.f32 %v1050, %v1373
        %v1375 = vpop.f32.mrb[0].mxu0
        %1376 = vmatprep.mubr.f32.mxu0 0.0
        %1377 = vmatmul.mubr.f32.gmra.mrb[0].mxu0 %v1194
        %v1378 = vpop.f32.mrb[0].mxu0
        %v1379 = vadd.f32 %v1055, %v1378
        %v1380 = vpop.f32.mrb[0].mxu0
        %1381 = vmatprep.mubr.f32.mxu0 0.0
        %1382 = vmatmul.mubr.f32.gmra.mrb[0].mxu0 %v1197
        %v1383 = vpop.f32.mrb[0].mxu0
        %v1384 = vadd.f32 %v1060, %v1383
        %v1385 = vpop.f32.mrb[0].mxu0
        %1386 = vmatprep.mubr.f32.mxu0 0.0
        %1387 = vmatmul.mubr.f32.gmra.mrb[0].mxu0 %v1200
        %v1388 = vpop.f32.mrb[0].mxu0
        %v1389 = vadd.f32 %v1065, %v1388
        %v1390 = vpop.f32.mrb[0].mxu0
        %1391 = vmatprep.mubr.f32.mxu0 0.0
        %1392 = vmatmul.mubr.f32.gmra.mrb[0].mxu0 %v1203
        %v1393 = vpop.f32.mrb[0].mxu0
        %v1394 = vadd.f32 %v1070, %v1393
        %v1395 = vpop.f32.mrb[0].mxu0
        %1396 = vmatprep.mubr.f32.mxu0 0.0
        %1397 = vmatmul.mubr.f32.gmra.mrb[0].mxu0 %v1206
        %v1398 = vpop.f32.mrb[0].mxu0
        %v1399 = vadd.f32 %v1075, %v1398
        %v1400 = vpop.f32.mrb[0].mxu0
        %1401 = vmatprep.mubr.f32.mxu0 0.0
        %1402 = vmatmul.mubr.f32.gmra.mrb[0].mxu0 %v1209
        %v1403 = vpop.f32.mrb[0].mxu0
        %v1404 = vadd.f32 %v1080, %v1403
        %v1405 = vpop.f32.mrb[0].mxu0
        %1406 = vmatprep.mubr.f32.mxu0 0.0
        %1407 = vmatmul.mubr.f32.gmra.mrb[0].mxu0 %v1212
        %v1408 = vpop.f32.mrb[0].mxu0
        %v1409 = vadd.f32 %v1085, %v1408
        %v1410 = vpop.f32.mrb[0].mxu0
        %1411 = vmatprep.mubr.f32.mxu0 0.0
        %1412 = vmatmul.mubr.f32.gmra.mrb[0].mxu0 %v1215
        %v1413 = vpop.f32.mrb[0].mxu0
        %v1414 = vadd.f32 %v1090, %v1413
        %v1415 = vpop.f32.mrb[0].mxu0
        %1416 = vmatprep.mubr.f32.mxu0 0.0
        %1417 = vmatmul.mubr.f32.gmra.mrb[0].mxu0 %v1218
        %v1418 = vpop.f32.mrb[0].mxu0
        %v1419 = vadd.f32 %v1095, %v1418
        %v1420 = vpop.f32.mrb[0].mxu0
        %1421 = vmatprep.mubr.f32.mxu0 0.0
        %1422 = vmatmul.mubr.f32.gmra.mrb[0].mxu0 %v1221
        %v1423 = vpop.f32.mrb[0].mxu0
        %v1424 = vadd.f32 %v1100, %v1423
        %v1425 = vpop.f32.mrb[0].mxu0
        %1426 = vmatprep.mubr.f32.mxu0 0.0
        %1427 = vmatmul.mubr.f32.gmra.mrb[0].mxu0 %v1224
        %v1428 = vpop.f32.mrb[0].mxu0
        %v1429 = vadd.f32 %v1105, %v1428
        %v1430 = vpop.f32.mrb[0].mxu0
        %1431 = vmatprep.mubr.f32.mxu0 0.0
        %1432 = vmatmul.mubr.f32.gmra.mrb[0].mxu0 %v1227
        %v1433 = vpop.f32.mrb[0].mxu0
        %v1434 = vadd.f32 %v1110, %v1433
        %v1435 = vpop.f32.mrb[0].mxu0
        %1436 = vmatprep.mubr.f32.mxu0 0.0
        %1437 = vmatmul.mubr.f32.gmra.mrb[0].mxu0 %v1230
        %v1438 = vpop.f32.mrb[0].mxu0
        %v1439 = vadd.f32 %v1115, %v1438
        %v1440 = vpop.f32.mrb[0].mxu0
        %1441 = vmatprep.mubr.f32.mxu0 0.0
        %1442 = vmatmul.mubr.f32.gmra.mrb[0].mxu0 %v1233
        %v1443 = vpop.f32.mrb[0].mxu0
        %v1444 = vadd.f32 %v1120, %v1443
        %v1445 = vpop.f32.mrb[0].mxu0
        %1446 = vmatprep.mubr.f32.mxu0 0.0
        %1447 = vmatmul.mubr.f32.gmra.mrb[0].mxu0 %v1236
        %v1448 = vpop.f32.mrb[0].mxu0
        %v1449 = vadd.f32 %v1125, %v1448
        %v1450 = vpop.f32.mrb[0].mxu0
        %1451 = vmatprep.mubr.f32.mxu0 0.0
        %1452 = vmatmul.mubr.f32.gmra.mrb[0].mxu0 %v1239
        %v1453 = vpop.f32.mrb[0].mxu0
        %v1454 = vadd.f32 %v1130, %v1453
        %v1455 = vpop.f32.mrb[0].mxu0
        %1456 = vmatprep.mubr.f32.mxu0 0.0
        %1457 = vmatmul.mubr.f32.gmra.mrb[0].mxu0 %v1242
        %v1458 = vpop.f32.mrb[0].mxu0
        %v1459 = vadd.f32 %v1135, %v1458
        %v1460 = vpop.f32.mrb[0].mxu0
        %1461 = vmatprep.mubr.f32.mxu0 0.0
        %1462 = vmatmul.mubr.f32.gmra.mrb[0].mxu0 %v1245
        %v1463 = vpop.f32.mrb[0].mxu0
        %v1464 = vadd.f32 %v1140, %v1463
        %v1465 = vpop.f32.mrb[0].mxu0
        %1466 = vmatprep.mubr.f32.mxu0 0.0
        %1467 = vmatmul.mubr.f32.gmra.mrb[0].mxu0 %v1248
        %v1468 = vpop.f32.mrb[0].mxu0
        %v1469 = vadd.f32 %v1145, %v1468
        %v1470 = vpop.f32.mrb[0].mxu0
        %1471 = vmatprep.mubr.f32.mxu0 0.0
        %1472 = vmatmul.mubr.f32.gmra.mrb[0].mxu0 %v1251
        %v1473 = vpop.f32.mrb[0].mxu0
        %v1474 = vadd.f32 %v1150, %v1473
        %v1475 = vpop.f32.mrb[0].mxu0
        %1476 = vmatprep.mubr.f32.mxu0 0.0
        %1477 = vmatmul.mubr.f32.gmra.mrb[0].mxu0 %v1254
        %v1478 = vpop.f32.mrb[0].mxu0
        %v1479 = vadd.f32 %v1155, %v1478
        %v1480 = vpop.f32.mrb[0].mxu0
        %1481 = vmatprep.mubr.f32.mxu0 0.0
        %1482 = vmatmul.mubr.f32.gmra.mrb[0].mxu0 %v1257
        %v1483 = vpop.f32.mrb[0].mxu0
        %v1484 = vadd.f32 %v1160, %v1483
        %v1485 = vpop.f32.mrb[0].mxu0
        %1486 = vdwg.mxu0
        %v1487 = vld [vmem:[#allocation2 + $0x2] sm:$0xff]
        %v1488 = vld [vmem:[#allocation2 + $0xa] sm:$0xff]
        %v1489 = vld [vmem:[#allocation2 + $0x1a] sm:$0xff]
        %v1490 = vld [vmem:[#allocation2 + $0x22] sm:$0xff]
        %v1491 = vld [vmem:[#allocation2 + $0x32] sm:$0xff]
        %v1492 = vld [vmem:[#allocation2 + $0x3a] sm:$0xff]
        %v1493 = vld [vmem:[#allocation2 + $0x4a] sm:$0xff]
        %v1494 = vld [vmem:[#allocation2 + $0x52] sm:$0xff]
        %v1495 = vld [vmem:[#allocation2 + $0x62] sm:$0xff]
        %v1496 = vld [vmem:[#allocation2 + $0x6a] sm:$0xff]
        %v1497 = vld [vmem:[#allocation2 + $0x7a] sm:$0xff]
        %v1498 = vld [vmem:[#allocation2 + $0x82] sm:$0xff]
        %v1499 = vld [vmem:[#allocation2 + $0x92] sm:$0xff]
        %v1500 = vld [vmem:[#allocation2 + $0x9a] sm:$0xff]
        %v1501 = vld [vmem:[#allocation2 + $0xaa] sm:$0xff]
        %v1502 = vld [vmem:[#allocation2 + $0xb2] sm:$0xff]
        %v1503 = vld [vmem:[#allocation2 + $0xc2] sm:$0xff]
        %v1504 = vld [vmem:[#allocation2 + $0xca] sm:$0xff]
        %v1505 = vld [vmem:[#allocation2 + $0xda] sm:$0xff]
        %v1506 = vld [vmem:[#allocation2 + $0xe2] sm:$0xff]
        %v1507 = vld [vmem:[#allocation2 + $0xf2] sm:$0xff]
        %v1508 = vld [vmem:[#allocation2 + $0xfa] sm:$0xff]
        %v1509 = vld [vmem:[#allocation2 + $0x10a] sm:$0xff]
        %v1510 = vld [vmem:[#allocation2 + $0x112] sm:$0xff]
        %v1511 = vld [vmem:[#allocation2 + $0x122] sm:$0xff]
        %v1512 = vld [vmem:[#allocation2 + $0x12a] sm:$0xff]
        %v1513 = vld [vmem:[#allocation2 + $0x13a] sm:$0xff]
        %v1514 = vld [vmem:[#allocation2 + $0x142] sm:$0xff]
        %v1515 = vld [vmem:[#allocation2 + $0x152] sm:$0xff]
        %v1516 = vld [vmem:[#allocation2 + $0x15a] sm:$0xff]
        %v1517 = vld [vmem:[#allocation2 + $0x16a] sm:$0xff]
        %v1518 = vld [vmem:[#allocation2 + $0x172] sm:$0xff]
        %s1519 = scalar_lea.vmem %s2, 8
        %v1520 = vld [vmem:[%s1519] sm:$0xf]
        %v1522 = vsel %vm692, %v1487, 0
        %v1525 = vsel %vm692, %v1488, 0
        %v1528 = vsel %vm692, %v1489, 0
        %v1531 = vsel %vm692, %v1490, 0
        %v1534 = vsel %vm692, %v1491, 0
        %v1537 = vsel %vm692, %v1492, 0
        %v1540 = vsel %vm692, %v1493, 0
        %v1543 = vsel %vm692, %v1494, 0
        %v1546 = vsel %vm692, %v1495, 0
        %v1549 = vsel %vm692, %v1496, 0
        %v1552 = vsel %vm692, %v1497, 0
        %v1555 = vsel %vm692, %v1498, 0
        %v1558 = vsel %vm692, %v1499, 0
        %v1561 = vsel %vm692, %v1500, 0
        %v1564 = vsel %vm692, %v1501, 0
        %v1567 = vsel %vm692, %v1502, 0
        %v1570 = vsel %vm692, %v1503, 0
        %v1573 = vsel %vm692, %v1504, 0
        %v1576 = vsel %vm692, %v1505, 0
        %v1579 = vsel %vm692, %v1506, 0
        %v1582 = vsel %vm692, %v1507, 0
        %v1585 = vsel %vm692, %v1508, 0
        %v1588 = vsel %vm692, %v1509, 0
        %v1591 = vsel %vm692, %v1510, 0
        %v1594 = vsel %vm692, %v1511, 0
        %v1597 = vsel %vm692, %v1512, 0
        %v1600 = vsel %vm692, %v1513, 0
        %v1603 = vsel %vm692, %v1514, 0
        %v1606 = vsel %vm692, %v1515, 0
        %v1609 = vsel %vm692, %v1516, 0
        %v1612 = vsel %vm692, %v1517, 0
        %v1615 = vsel %vm692, %v1518, 0
        %v1618 = vsel %vm934, %v1520, 0
        %1620 = vmatprep.subr.mxu0 0.0
        %1621 = vmatpush1.msra.mxu0 %v1618
        %1622 = vmatprep.subr.mxu0 0.0
        %1623 = vmatpush1.msra.mxu0 0.0
        %1624 = vmatprep.subr.mxu0 0.0
        %1625 = vmatpush1.msra.mxu0 0.0
        %1626 = vmatprep.subr.mxu0 0.0
        %1627 = vmatpush1.msra.mxu0 0.0
        %1628 = vmatprep.subr.mxu0 0.0
        %1629 = vmatpush1.msra.mxu0 0.0
        %1630 = vmatprep.subr.mxu0 0.0
        %1631 = vmatpush1.msra.mxu0 0.0
        %1632 = vmatprep.subr.mxu0 0.0
        %1633 = vmatpush1.msra.mxu0 0.0
        %1634 = vmatprep.subr.mxu0 0.0
        %1635 = vmatpush1.msra.mxu0 0.0
        %1636 = vmatprep.subr.mxu0 0.0
        %1637 = vmatpush1.msra.mxu0 0.0
        %1638 = vmatprep.subr.mxu0 0.0
        %1639 = vmatpush1.msra.mxu0 0.0
        %1640 = vmatprep.subr.mxu0 0.0
        %1641 = vmatpush1.msra.mxu0 0.0
        %1642 = vmatprep.subr.mxu0 0.0
        %1643 = vmatpush1.msra.mxu0 0.0
        %1644 = vmatprep.subr.mxu0 0.0
        %1645 = vmatpush1.msra.mxu0 0.0
        %1646 = vmatprep.subr.mxu0 0.0
        %1647 = vmatpush1.msra.mxu0 0.0
        %1648 = vmatprep.subr.mxu0 0.0
        %1649 = vmatpush1.msra.mxu0 0.0
        %1650 = vmatprep.subr.mxu0 0.0
        %1651 = vmatpush1.msra.mxu0 0.0
        %1652 = vmatprep.subr.mxu0 0.0
        %1653 = vmatpush1.msra.mxu0 0.0
        %1654 = vmatprep.subr.mxu0 0.0
        %1655 = vmatpush1.msra.mxu0 0.0
        %1656 = vmatprep.subr.mxu0 0.0
        %1657 = vmatpush1.msra.mxu0 0.0
        %1658 = vmatprep.subr.mxu0 0.0
        %1659 = vmatpush1.msra.mxu0 0.0
        %1660 = vmatprep.subr.mxu0 0.0
        %1661 = vmatpush1.msra.mxu0 0.0
        %1662 = vmatprep.subr.mxu0 0.0
        %1663 = vmatpush1.msra.mxu0 0.0
        %1664 = vmatprep.subr.mxu0 0.0
        %1665 = vmatpush1.msra.mxu0 0.0
        %1666 = vmatprep.subr.mxu0 0.0
        %1667 = vmatpush1.msra.mxu0 0.0
        %1668 = vmatprep.subr.mxu0 0.0
        %1669 = vmatpush1.msra.mxu0 0.0
        %1670 = vmatprep.subr.mxu0 0.0
        %1671 = vmatpush1.msra.mxu0 0.0
        %1672 = vmatprep.subr.mxu0 0.0
        %1673 = vmatpush1.msra.mxu0 0.0
        %1674 = vmatprep.subr.mxu0 0.0
        %1675 = vmatpush1.msra.mxu0 0.0
        %1676 = vmatprep.subr.mxu0 0.0
        %1677 = vmatpush1.msra.mxu0 0.0
        %1678 = vmatprep.subr.mxu0 0.0
        %1679 = vmatpush1.msra.mxu0 0.0
        %1680 = vmatprep.subr.mxu0 0.0
        %1681 = vmatpush1.msra.mxu0 0.0
        %1682 = vmatprep.subr.mxu0 0.0
        %1683 = vmatpush1.msra.mxu0 0.0
        %1684 = vmatprep.mubr.f32.mxu0 0.0
        %1685 = vmatmul.mubr.f32.gmra.mrb[0].mxu0 %v1522
        %v1686 = vpop.f32.mrb[0].mxu0
        %v1687 = vadd.f32 0.0, %v1686
        %v1688 = vpop.f32.mrb[0].mxu0
        %1689 = vmatprep.mubr.f32.mxu0 0.0
        %1690 = vmatmul.mubr.f32.gmra.mrb[0].mxu0 %v1525
        %v1691 = vpop.f32.mrb[0].mxu0
        %v1692 = vadd.f32 0.0, %v1691
        %v1693 = vpop.f32.mrb[0].mxu0
        %1694 = vmatprep.mubr.f32.mxu0 0.0
        %1695 = vmatmul.mubr.f32.gmra.mrb[0].mxu0 %v1528
        %v1696 = vpop.f32.mrb[0].mxu0
        %v1697 = vadd.f32 0.0, %v1696
        %v1698 = vpop.f32.mrb[0].mxu0
        %1699 = vmatprep.mubr.f32.mxu0 0.0
        %1700 = vmatmul.mubr.f32.gmra.mrb[0].mxu0 %v1531
        %v1701 = vpop.f32.mrb[0].mxu0
        %v1702 = vadd.f32 0.0, %v1701
        %v1703 = vpop.f32.mrb[0].mxu0
        %1704 = vmatprep.mubr.f32.mxu0 0.0
        %1705 = vmatmul.mubr.f32.gmra.mrb[0].mxu0 %v1534
        %v1706 = vpop.f32.mrb[0].mxu0
        %v1707 = vadd.f32 0.0, %v1706
        %v1708 = vpop.f32.mrb[0].mxu0
        %1709 = vmatprep.mubr.f32.mxu0 0.0
        %1710 = vmatmul.mubr.f32.gmra.mrb[0].mxu0 %v1537
        %v1711 = vpop.f32.mrb[0].mxu0
        %v1712 = vadd.f32 0.0, %v1711
        %v1713 = vpop.f32.mrb[0].mxu0
        %1714 = vmatprep.mubr.f32.mxu0 0.0
        %1715 = vmatmul.mubr.f32.gmra.mrb[0].mxu0 %v1540
        %v1716 = vpop.f32.mrb[0].mxu0
        %v1717 = vadd.f32 0.0, %v1716
        %v1718 = vpop.f32.mrb[0].mxu0
        %1719 = vmatprep.mubr.f32.mxu0 0.0
        %1720 = vmatmul.mubr.f32.gmra.mrb[0].mxu0 %v1543
        %v1721 = vpop.f32.mrb[0].mxu0
        %v1722 = vadd.f32 0.0, %v1721
        %v1723 = vpop.f32.mrb[0].mxu0
        %1724 = vmatprep.mubr.f32.mxu0 0.0
        %1725 = vmatmul.mubr.f32.gmra.mrb[0].mxu0 %v1546
        %v1726 = vpop.f32.mrb[0].mxu0
        %v1727 = vadd.f32 0.0, %v1726
        %v1728 = vpop.f32.mrb[0].mxu0
        %1729 = vmatprep.mubr.f32.mxu0 0.0
        %1730 = vmatmul.mubr.f32.gmra.mrb[0].mxu0 %v1549
        %v1731 = vpop.f32.mrb[0].mxu0
        %v1732 = vadd.f32 0.0, %v1731
        %v1733 = vpop.f32.mrb[0].mxu0
        %1734 = vmatprep.mubr.f32.mxu0 0.0
        %1735 = vmatmul.mubr.f32.gmra.mrb[0].mxu0 %v1552
        %v1736 = vpop.f32.mrb[0].mxu0
        %v1737 = vadd.f32 0.0, %v1736
        %v1738 = vpop.f32.mrb[0].mxu0
        %1739 = vmatprep.mubr.f32.mxu0 0.0
        %1740 = vmatmul.mubr.f32.gmra.mrb[0].mxu0 %v1555
        %v1741 = vpop.f32.mrb[0].mxu0
        %v1742 = vadd.f32 0.0, %v1741
        %v1743 = vpop.f32.mrb[0].mxu0
        %1744 = vmatprep.mubr.f32.mxu0 0.0
        %1745 = vmatmul.mubr.f32.gmra.mrb[0].mxu0 %v1558
        %v1746 = vpop.f32.mrb[0].mxu0
        %v1747 = vadd.f32 0.0, %v1746
        %v1748 = vpop.f32.mrb[0].mxu0
        %1749 = vmatprep.mubr.f32.mxu0 0.0
        %1750 = vmatmul.mubr.f32.gmra.mrb[0].mxu0 %v1561
        %v1751 = vpop.f32.mrb[0].mxu0
        %v1752 = vadd.f32 0.0, %v1751
        %v1753 = vpop.f32.mrb[0].mxu0
        %1754 = vmatprep.mubr.f32.mxu0 0.0
        %1755 = vmatmul.mubr.f32.gmra.mrb[0].mxu0 %v1564
        %v1756 = vpop.f32.mrb[0].mxu0
        %v1757 = vadd.f32 0.0, %v1756
        %v1758 = vpop.f32.mrb[0].mxu0
        %1759 = vmatprep.mubr.f32.mxu0 0.0
        %1760 = vmatmul.mubr.f32.gmra.mrb[0].mxu0 %v1567
        %v1761 = vpop.f32.mrb[0].mxu0
        %v1762 = vadd.f32 0.0, %v1761
        %v1763 = vpop.f32.mrb[0].mxu0
        %1764 = vmatprep.mubr.f32.mxu0 0.0
        %1765 = vmatmul.mubr.f32.gmra.mrb[0].mxu0 %v1570
        %v1766 = vpop.f32.mrb[0].mxu0
        %v1767 = vadd.f32 0.0, %v1766
        %v1768 = vpop.f32.mrb[0].mxu0
        %1769 = vmatprep.mubr.f32.mxu0 0.0
        %1770 = vmatmul.mubr.f32.gmra.mrb[0].mxu0 %v1573
        %v1771 = vpop.f32.mrb[0].mxu0
        %v1772 = vadd.f32 0.0, %v1771
        %v1773 = vpop.f32.mrb[0].mxu0
        %1774 = vmatprep.mubr.f32.mxu0 0.0
        %1775 = vmatmul.mubr.f32.gmra.mrb[0].mxu0 %v1576
        %v1776 = vpop.f32.mrb[0].mxu0
        %v1777 = vadd.f32 0.0, %v1776
        %v1778 = vpop.f32.mrb[0].mxu0
        %1779 = vmatprep.mubr.f32.mxu0 0.0
        %1780 = vmatmul.mubr.f32.gmra.mrb[0].mxu0 %v1579
        %v1781 = vpop.f32.mrb[0].mxu0
        %v1782 = vadd.f32 0.0, %v1781
        %v1783 = vpop.f32.mrb[0].mxu0
        %1784 = vmatprep.mubr.f32.mxu0 0.0
        %1785 = vmatmul.mubr.f32.gmra.mrb[0].mxu0 %v1582
        %v1786 = vpop.f32.mrb[0].mxu0
        %v1787 = vadd.f32 0.0, %v1786
        %v1788 = vpop.f32.mrb[0].mxu0
        %1789 = vmatprep.mubr.f32.mxu0 0.0
        %1790 = vmatmul.mubr.f32.gmra.mrb[0].mxu0 %v1585
        %v1791 = vpop.f32.mrb[0].mxu0
        %v1792 = vadd.f32 0.0, %v1791
        %v1793 = vpop.f32.mrb[0].mxu0
        %1794 = vmatprep.mubr.f32.mxu0 0.0
        %1795 = vmatmul.mubr.f32.gmra.mrb[0].mxu0 %v1588
        %v1796 = vpop.f32.mrb[0].mxu0
        %v1797 = vadd.f32 0.0, %v1796
        %v1798 = vpop.f32.mrb[0].mxu0
        %1799 = vmatprep.mubr.f32.mxu0 0.0
        %1800 = vmatmul.mubr.f32.gmra.mrb[0].mxu0 %v1591
        %v1801 = vpop.f32.mrb[0].mxu0
        %v1802 = vadd.f32 0.0, %v1801
        %v1803 = vpop.f32.mrb[0].mxu0
        %1804 = vmatprep.mubr.f32.mxu0 0.0
        %1805 = vmatmul.mubr.f32.gmra.mrb[0].mxu0 %v1594
        %v1806 = vpop.f32.mrb[0].mxu0
        %v1807 = vadd.f32 0.0, %v1806
        %v1808 = vpop.f32.mrb[0].mxu0
        %1809 = vmatprep.mubr.f32.mxu0 0.0
        %1810 = vmatmul.mubr.f32.gmra.mrb[0].mxu0 %v1597
        %v1811 = vpop.f32.mrb[0].mxu0
        %v1812 = vadd.f32 0.0, %v1811
        %v1813 = vpop.f32.mrb[0].mxu0
        %1814 = vmatprep.mubr.f32.mxu0 0.0
        %1815 = vmatmul.mubr.f32.gmra.mrb[0].mxu0 %v1600
        %v1816 = vpop.f32.mrb[0].mxu0
        %v1817 = vadd.f32 0.0, %v1816
        %v1818 = vpop.f32.mrb[0].mxu0
        %1819 = vmatprep.mubr.f32.mxu0 0.0
        %1820 = vmatmul.mubr.f32.gmra.mrb[0].mxu0 %v1603
        %v1821 = vpop.f32.mrb[0].mxu0
        %v1822 = vadd.f32 0.0, %v1821
        %v1823 = vpop.f32.mrb[0].mxu0
        %1824 = vmatprep.mubr.f32.mxu0 0.0
        %1825 = vmatmul.mubr.f32.gmra.mrb[0].mxu0 %v1606
        %v1826 = vpop.f32.mrb[0].mxu0
        %v1827 = vadd.f32 0.0, %v1826
        %v1828 = vpop.f32.mrb[0].mxu0
        %1829 = vmatprep.mubr.f32.mxu0 0.0
        %1830 = vmatmul.mubr.f32.gmra.mrb[0].mxu0 %v1609
        %v1831 = vpop.f32.mrb[0].mxu0
        %v1832 = vadd.f32 0.0, %v1831
        %v1833 = vpop.f32.mrb[0].mxu0
        %1834 = vmatprep.mubr.f32.mxu0 0.0
        %1835 = vmatmul.mubr.f32.gmra.mrb[0].mxu0 %v1612
        %v1836 = vpop.f32.mrb[0].mxu0
        %v1837 = vadd.f32 0.0, %v1836
        %v1838 = vpop.f32.mrb[0].mxu0
        %1839 = vmatprep.mubr.f32.mxu0 0.0
        %1840 = vmatmul.mubr.f32.gmra.mrb[0].mxu0 %v1615
        %v1841 = vpop.f32.mrb[0].mxu0
        %v1842 = vadd.f32 0.0, %v1841
        %v1843 = vpop.f32.mrb[0].mxu0
        %1844 = vdwg.mxu0
        %v1845 = vadd.f32 %v1329, %v1687
        %v1846 = vadd.f32 %v1334, %v1692
        %v1847 = vadd.f32 %v1339, %v1697
        %v1848 = vadd.f32 %v1344, %v1702
        %v1849 = vadd.f32 %v1349, %v1707
        %v1850 = vadd.f32 %v1354, %v1712
        %v1851 = vadd.f32 %v1359, %v1717
        %v1852 = vadd.f32 %v1364, %v1722
        %v1853 = vadd.f32 %v1369, %v1727
        %v1854 = vadd.f32 %v1374, %v1732
        %v1855 = vadd.f32 %v1379, %v1737
        %v1856 = vadd.f32 %v1384, %v1742
        %v1857 = vadd.f32 %v1389, %v1747
        %v1858 = vadd.f32 %v1394, %v1752
        %v1859 = vadd.f32 %v1399, %v1757
        %v1860 = vadd.f32 %v1404, %v1762
        %v1861 = vadd.f32 %v1409, %v1767
        %v1862 = vadd.f32 %v1414, %v1772
        %v1863 = vadd.f32 %v1419, %v1777
        %v1864 = vadd.f32 %v1424, %v1782
        %v1865 = vadd.f32 %v1429, %v1787
        %v1866 = vadd.f32 %v1434, %v1792
        %v1867 = vadd.f32 %v1439, %v1797
        %v1868 = vadd.f32 %v1444, %v1802
        %v1869 = vadd.f32 %v1449, %v1807
        %v1870 = vadd.f32 %v1454, %v1812
        %v1871 = vadd.f32 %v1459, %v1817
        %v1872 = vadd.f32 %v1464, %v1822
        %v1873 = vadd.f32 %v1469, %v1827
        %v1874 = vadd.f32 %v1474, %v1832
        %v1875 = vadd.f32 %v1479, %v1837
        %v1876 = vadd.f32 %v1484, %v1842
        %v1877 = vld [vmem:[%s738] sm:$0xff]
        %v1878 = vld [vmem:[%s738 + $0x8] sm:$0xff]
        %v1879 = vld [vmem:[%s738 + $0x18] sm:$0xff]
        %v1880 = vld [vmem:[%s738 + $0x20] sm:$0xff]
        %v1881 = vld [vmem:[%s738 + $0x30] sm:$0xff]
        %v1882 = vld [vmem:[%s738 + $0x38] sm:$0xff]
        %v1883 = vld [vmem:[%s738 + $0x48] sm:$0xff]
        %v1884 = vld [vmem:[%s738 + $0x50] sm:$0xff]
        %v1885 = vld [vmem:[%s738 + $0x60] sm:$0xff]
        %v1886 = vld [vmem:[%s738 + $0x68] sm:$0xff]
        %v1887 = vld [vmem:[%s738 + $0x78] sm:$0xff]
        %v1888 = vld [vmem:[%s738 + $0x80] sm:$0xff]
        %v1889 = vld [vmem:[%s738 + $0x90] sm:$0xff]
        %v1890 = vld [vmem:[%s738 + $0x98] sm:$0xff]
        %v1891 = vld [vmem:[%s738 + $0xa8] sm:$0xff]
        %v1892 = vld [vmem:[%s738 + $0xb0] sm:$0xff]
        %v1893 = vld [vmem:[%s738 + $0xc0] sm:$0xff]
        %v1894 = vld [vmem:[%s738 + $0xc8] sm:$0xff]
        %v1895 = vld [vmem:[%s738 + $0xd8] sm:$0xff]
        %v1896 = vld [vmem:[%s738 + $0xe0] sm:$0xff]
        %v1897 = vld [vmem:[%s738 + $0xf0] sm:$0xff]
        %v1898 = vld [vmem:[%s738 + $0xf8] sm:$0xff]
        %v1899 = vld [vmem:[%s738 + $0x108] sm:$0xff]
        %v1900 = vld [vmem:[%s738 + $0x110] sm:$0xff]
        %v1901 = vld [vmem:[%s738 + $0x120] sm:$0xff]
        %v1902 = vld [vmem:[%s738 + $0x128] sm:$0xff]
        %v1903 = vld [vmem:[%s738 + $0x138] sm:$0xff]
        %v1904 = vld [vmem:[%s738 + $0x140] sm:$0xff]
        %v1905 = vld [vmem:[%s738 + $0x150] sm:$0xff]
        %v1906 = vld [vmem:[%s738 + $0x158] sm:$0xff]
        %v1907 = vld [vmem:[%s738 + $0x168] sm:$0xff]
        %v1908 = vld [vmem:[%s738 + $0x170] sm:$0xff]
        %s1909 = scalar_lea.vmem %s2, 12
        %v1910 = vld [vmem:[%s1909] sm:$0xf]
        %v1912 = vsel %vm692, %v1877, 0
        %v1915 = vsel %vm692, %v1878, 0
        %v1918 = vsel %vm692, %v1879, 0
        %v1921 = vsel %vm692, %v1880, 0
        %v1924 = vsel %vm692, %v1881, 0
        %v1927 = vsel %vm692, %v1882, 0
        %v1930 = vsel %vm692, %v1883, 0
        %v1933 = vsel %vm692, %v1884, 0
        %v1936 = vsel %vm692, %v1885, 0
        %v1939 = vsel %vm692, %v1886, 0
        %v1942 = vsel %vm692, %v1887, 0
        %v1945 = vsel %vm692, %v1888, 0
        %v1948 = vsel %vm692, %v1889, 0
        %v1951 = vsel %vm692, %v1890, 0
        %v1954 = vsel %vm692, %v1891, 0
        %v1957 = vsel %vm692, %v1892, 0
        %v1960 = vsel %vm692, %v1893, 0
        %v1963 = vsel %vm692, %v1894, 0
        %v1966 = vsel %vm692, %v1895, 0
        %v1969 = vsel %vm692, %v1896, 0
        %v1972 = vsel %vm692, %v1897, 0
        %v1975 = vsel %vm692, %v1898, 0
        %v1978 = vsel %vm692, %v1899, 0
        %v1981 = vsel %vm692, %v1900, 0
        %v1984 = vsel %vm692, %v1901, 0
        %v1987 = vsel %vm692, %v1902, 0
        %v1990 = vsel %vm692, %v1903, 0
        %v1993 = vsel %vm692, %v1904, 0
        %v1996 = vsel %vm692, %v1905, 0
        %v1999 = vsel %vm692, %v1906, 0
        %v2002 = vsel %vm692, %v1907, 0
        %v2005 = vsel %vm692, %v1908, 0
        %v2008 = vsel %vm934, %v1910, 0
        %2010 = vmatprep.subr.mxu0 0.0
        %2011 = vmatpush1.msra.mxu0 %v2008
        %2012 = vmatprep.subr.mxu0 0.0
        %2013 = vmatpush1.msra.mxu0 0.0
        %2014 = vmatprep.subr.mxu0 0.0
        %2015 = vmatpush1.msra.mxu0 0.0
        %2016 = vmatprep.subr.mxu0 0.0
        %2017 = vmatpush1.msra.mxu0 0.0
        %2018 = vmatprep.subr.mxu0 0.0
        %2019 = vmatpush1.msra.mxu0 0.0
        %2020 = vmatprep.subr.mxu0 0.0
        %2021 = vmatpush1.msra.mxu0 0.0
        %2022 = vmatprep.subr.mxu0 0.0
        %2023 = vmatpush1.msra.mxu0 0.0
        %2024 = vmatprep.subr.mxu0 0.0
        %2025 = vmatpush1.msra.mxu0 0.0
        %2026 = vmatprep.subr.mxu0 0.0
        %2027 = vmatpush1.msra.mxu0 0.0
        %2028 = vmatprep.subr.mxu0 0.0
        %2029 = vmatpush1.msra.mxu0 0.0
        %2030 = vmatprep.subr.mxu0 0.0
        %2031 = vmatpush1.msra.mxu0 0.0
        %2032 = vmatprep.subr.mxu0 0.0
        %2033 = vmatpush1.msra.mxu0 0.0
        %2034 = vmatprep.subr.mxu0 0.0
        %2035 = vmatpush1.msra.mxu0 0.0
        %2036 = vmatprep.subr.mxu0 0.0
        %2037 = vmatpush1.msra.mxu0 0.0
        %2038 = vmatprep.subr.mxu0 0.0
        %2039 = vmatpush1.msra.mxu0 0.0
        %2040 = vmatprep.subr.mxu0 0.0
        %2041 = vmatpush1.msra.mxu0 0.0
        %2042 = vmatprep.subr.mxu0 0.0
        %2043 = vmatpush1.msra.mxu0 0.0
        %2044 = vmatprep.subr.mxu0 0.0
        %2045 = vmatpush1.msra.mxu0 0.0
        %2046 = vmatprep.subr.mxu0 0.0
        %2047 = vmatpush1.msra.mxu0 0.0
        %2048 = vmatprep.subr.mxu0 0.0
        %2049 = vmatpush1.msra.mxu0 0.0
        %2050 = vmatprep.subr.mxu0 0.0
        %2051 = vmatpush1.msra.mxu0 0.0
        %2052 = vmatprep.subr.mxu0 0.0
        %2053 = vmatpush1.msra.mxu0 0.0
        %2054 = vmatprep.subr.mxu0 0.0
        %2055 = vmatpush1.msra.mxu0 0.0
        %2056 = vmatprep.subr.mxu0 0.0
        %2057 = vmatpush1.msra.mxu0 0.0
        %2058 = vmatprep.subr.mxu0 0.0
        %2059 = vmatpush1.msra.mxu0 0.0
        %2060 = vmatprep.subr.mxu0 0.0
        %2061 = vmatpush1.msra.mxu0 0.0
        %2062 = vmatprep.subr.mxu0 0.0
        %2063 = vmatpush1.msra.mxu0 0.0
        %2064 = vmatprep.subr.mxu0 0.0
        %2065 = vmatpush1.msra.mxu0 0.0
        %2066 = vmatprep.subr.mxu0 0.0
        %2067 = vmatpush1.msra.mxu0 0.0
        %2068 = vmatprep.subr.mxu0 0.0
        %2069 = vmatpush1.msra.mxu0 0.0
        %2070 = vmatprep.subr.mxu0 0.0
        %2071 = vmatpush1.msra.mxu0 0.0
        %2072 = vmatprep.subr.mxu0 0.0
        %2073 = vmatpush1.msra.mxu0 0.0
        %2074 = vmatprep.mubr.f32.mxu0 0.0
        %2075 = vmatmul.mubr.f32.gmra.mrb[0].mxu0 %v1912
        %v2076 = vpop.f32.mrb[0].mxu0
        %v2077 = vadd.f32 0.0, %v2076
        %v2078 = vpop.f32.mrb[0].mxu0
        %2079 = vmatprep.mubr.f32.mxu0 0.0
        %2080 = vmatmul.mubr.f32.gmra.mrb[0].mxu0 %v1915
        %v2081 = vpop.f32.mrb[0].mxu0
        %v2082 = vadd.f32 0.0, %v2081
        %v2083 = vpop.f32.mrb[0].mxu0
        %2084 = vmatprep.mubr.f32.mxu0 0.0
        %2085 = vmatmul.mubr.f32.gmra.mrb[0].mxu0 %v1918
        %v2086 = vpop.f32.mrb[0].mxu0
        %v2087 = vadd.f32 0.0, %v2086
        %v2088 = vpop.f32.mrb[0].mxu0
        %2089 = vmatprep.mubr.f32.mxu0 0.0
        %2090 = vmatmul.mubr.f32.gmra.mrb[0].mxu0 %v1921
        %v2091 = vpop.f32.mrb[0].mxu0
        %v2092 = vadd.f32 0.0, %v2091
        %v2093 = vpop.f32.mrb[0].mxu0
        %2094 = vmatprep.mubr.f32.mxu0 0.0
        %2095 = vmatmul.mubr.f32.gmra.mrb[0].mxu0 %v1924
        %v2096 = vpop.f32.mrb[0].mxu0
        %v2097 = vadd.f32 0.0, %v2096
        %v2098 = vpop.f32.mrb[0].mxu0
        %2099 = vmatprep.mubr.f32.mxu0 0.0
        %2100 = vmatmul.mubr.f32.gmra.mrb[0].mxu0 %v1927
        %v2101 = vpop.f32.mrb[0].mxu0
        %v2102 = vadd.f32 0.0, %v2101
        %v2103 = vpop.f32.mrb[0].mxu0
        %2104 = vmatprep.mubr.f32.mxu0 0.0
        %2105 = vmatmul.mubr.f32.gmra.mrb[0].mxu0 %v1930
        %v2106 = vpop.f32.mrb[0].mxu0
        %v2107 = vadd.f32 0.0, %v2106
        %v2108 = vpop.f32.mrb[0].mxu0
        %2109 = vmatprep.mubr.f32.mxu0 0.0
        %2110 = vmatmul.mubr.f32.gmra.mrb[0].mxu0 %v1933
        %v2111 = vpop.f32.mrb[0].mxu0
        %v2112 = vadd.f32 0.0, %v2111
        %v2113 = vpop.f32.mrb[0].mxu0
        %2114 = vmatprep.mubr.f32.mxu0 0.0
        %2115 = vmatmul.mubr.f32.gmra.mrb[0].mxu0 %v1936
        %v2116 = vpop.f32.mrb[0].mxu0
        %v2117 = vadd.f32 0.0, %v2116
        %v2118 = vpop.f32.mrb[0].mxu0
        %2119 = vmatprep.mubr.f32.mxu0 0.0
        %2120 = vmatmul.mubr.f32.gmra.mrb[0].mxu0 %v1939
        %v2121 = vpop.f32.mrb[0].mxu0
        %v2122 = vadd.f32 0.0, %v2121
        %v2123 = vpop.f32.mrb[0].mxu0
        %2124 = vmatprep.mubr.f32.mxu0 0.0
        %2125 = vmatmul.mubr.f32.gmra.mrb[0].mxu0 %v1942
        %v2126 = vpop.f32.mrb[0].mxu0
        %v2127 = vadd.f32 0.0, %v2126
        %v2128 = vpop.f32.mrb[0].mxu0
        %2129 = vmatprep.mubr.f32.mxu0 0.0
        %2130 = vmatmul.mubr.f32.gmra.mrb[0].mxu0 %v1945
        %v2131 = vpop.f32.mrb[0].mxu0
        %v2132 = vadd.f32 0.0, %v2131
        %v2133 = vpop.f32.mrb[0].mxu0
        %2134 = vmatprep.mubr.f32.mxu0 0.0
        %2135 = vmatmul.mubr.f32.gmra.mrb[0].mxu0 %v1948
        %v2136 = vpop.f32.mrb[0].mxu0
        %v2137 = vadd.f32 0.0, %v2136
        %v2138 = vpop.f32.mrb[0].mxu0
        %2139 = vmatprep.mubr.f32.mxu0 0.0
        %2140 = vmatmul.mubr.f32.gmra.mrb[0].mxu0 %v1951
        %v2141 = vpop.f32.mrb[0].mxu0
        %v2142 = vadd.f32 0.0, %v2141
        %v2143 = vpop.f32.mrb[0].mxu0
        %2144 = vmatprep.mubr.f32.mxu0 0.0
        %2145 = vmatmul.mubr.f32.gmra.mrb[0].mxu0 %v1954
        %v2146 = vpop.f32.mrb[0].mxu0
        %v2147 = vadd.f32 0.0, %v2146
        %v2148 = vpop.f32.mrb[0].mxu0
        %2149 = vmatprep.mubr.f32.mxu0 0.0
        %2150 = vmatmul.mubr.f32.gmra.mrb[0].mxu0 %v1957
        %v2151 = vpop.f32.mrb[0].mxu0
        %v2152 = vadd.f32 0.0, %v2151
        %v2153 = vpop.f32.mrb[0].mxu0
        %2154 = vmatprep.mubr.f32.mxu0 0.0
        %2155 = vmatmul.mubr.f32.gmra.mrb[0].mxu0 %v1960
        %v2156 = vpop.f32.mrb[0].mxu0
        %v2157 = vadd.f32 0.0, %v2156
        %v2158 = vpop.f32.mrb[0].mxu0
        %2159 = vmatprep.mubr.f32.mxu0 0.0
        %2160 = vmatmul.mubr.f32.gmra.mrb[0].mxu0 %v1963
        %v2161 = vpop.f32.mrb[0].mxu0
        %v2162 = vadd.f32 0.0, %v2161
        %v2163 = vpop.f32.mrb[0].mxu0
        %2164 = vmatprep.mubr.f32.mxu0 0.0
        %2165 = vmatmul.mubr.f32.gmra.mrb[0].mxu0 %v1966
        %v2166 = vpop.f32.mrb[0].mxu0
        %v2167 = vadd.f32 0.0, %v2166
        %v2168 = vpop.f32.mrb[0].mxu0
        %2169 = vmatprep.mubr.f32.mxu0 0.0
        %2170 = vmatmul.mubr.f32.gmra.mrb[0].mxu0 %v1969
        %v2171 = vpop.f32.mrb[0].mxu0
        %v2172 = vadd.f32 0.0, %v2171
        %v2173 = vpop.f32.mrb[0].mxu0
        %2174 = vmatprep.mubr.f32.mxu0 0.0
        %2175 = vmatmul.mubr.f32.gmra.mrb[0].mxu0 %v1972
        %v2176 = vpop.f32.mrb[0].mxu0
        %v2177 = vadd.f32 0.0, %v2176
        %v2178 = vpop.f32.mrb[0].mxu0
        %2179 = vmatprep.mubr.f32.mxu0 0.0
        %2180 = vmatmul.mubr.f32.gmra.mrb[0].mxu0 %v1975
        %v2181 = vpop.f32.mrb[0].mxu0
        %v2182 = vadd.f32 0.0, %v2181
        %v2183 = vpop.f32.mrb[0].mxu0
        %2184 = vmatprep.mubr.f32.mxu0 0.0
        %2185 = vmatmul.mubr.f32.gmra.mrb[0].mxu0 %v1978
        %v2186 = vpop.f32.mrb[0].mxu0
        %v2187 = vadd.f32 0.0, %v2186
        %v2188 = vpop.f32.mrb[0].mxu0
        %2189 = vmatprep.mubr.f32.mxu0 0.0
        %2190 = vmatmul.mubr.f32.gmra.mrb[0].mxu0 %v1981
        %v2191 = vpop.f32.mrb[0].mxu0
        %v2192 = vadd.f32 0.0, %v2191
        %v2193 = vpop.f32.mrb[0].mxu0
        %2194 = vmatprep.mubr.f32.mxu0 0.0
        %2195 = vmatmul.mubr.f32.gmra.mrb[0].mxu0 %v1984
        %v2196 = vpop.f32.mrb[0].mxu0
        %v2197 = vadd.f32 0.0, %v2196
        %v2198 = vpop.f32.mrb[0].mxu0
        %2199 = vmatprep.mubr.f32.mxu0 0.0
        %2200 = vmatmul.mubr.f32.gmra.mrb[0].mxu0 %v1987
        %v2201 = vpop.f32.mrb[0].mxu0
        %v2202 = vadd.f32 0.0, %v2201
        %v2203 = vpop.f32.mrb[0].mxu0
        %2204 = vmatprep.mubr.f32.mxu0 0.0
        %2205 = vmatmul.mubr.f32.gmra.mrb[0].mxu0 %v1990
        %v2206 = vpop.f32.mrb[0].mxu0
        %v2207 = vadd.f32 0.0, %v2206
        %v2208 = vpop.f32.mrb[0].mxu0
        %2209 = vmatprep.mubr.f32.mxu0 0.0
        %2210 = vmatmul.mubr.f32.gmra.mrb[0].mxu0 %v1993
        %v2211 = vpop.f32.mrb[0].mxu0
        %v2212 = vadd.f32 0.0, %v2211
        %v2213 = vpop.f32.mrb[0].mxu0
        %2214 = vmatprep.mubr.f32.mxu0 0.0
        %2215 = vmatmul.mubr.f32.gmra.mrb[0].mxu0 %v1996
        %v2216 = vpop.f32.mrb[0].mxu0
        %v2217 = vadd.f32 0.0, %v2216
        %v2218 = vpop.f32.mrb[0].mxu0
        %2219 = vmatprep.mubr.f32.mxu0 0.0
        %2220 = vmatmul.mubr.f32.gmra.mrb[0].mxu0 %v1999
        %v2221 = vpop.f32.mrb[0].mxu0
        %v2222 = vadd.f32 0.0, %v2221
        %v2223 = vpop.f32.mrb[0].mxu0
        %2224 = vmatprep.mubr.f32.mxu0 0.0
        %2225 = vmatmul.mubr.f32.gmra.mrb[0].mxu0 %v2002
        %v2226 = vpop.f32.mrb[0].mxu0
        %v2227 = vadd.f32 0.0, %v2226
        %v2228 = vpop.f32.mrb[0].mxu0
        %2229 = vmatprep.mubr.f32.mxu0 0.0
        %2230 = vmatmul.mubr.f32.gmra.mrb[0].mxu0 %v2005
        %v2231 = vpop.f32.mrb[0].mxu0
        %v2232 = vadd.f32 0.0, %v2231
        %v2233 = vpop.f32.mrb[0].mxu0
        %2234 = vdwg.mxu0
        %v2235 = vadd.f32 %v1845, %v2077
        %v2236 = vadd.f32 %v1846, %v2082
        %v2237 = vadd.f32 %v1847, %v2087
        %v2238 = vadd.f32 %v1848, %v2092
        %v2239 = vadd.f32 %v1849, %v2097
        %v2240 = vadd.f32 %v1850, %v2102
        %v2241 = vadd.f32 %v1851, %v2107
        %v2242 = vadd.f32 %v1852, %v2112
        %v2243 = vadd.f32 %v1853, %v2117
        %v2244 = vadd.f32 %v1854, %v2122
        %v2245 = vadd.f32 %v1855, %v2127
        %v2246 = vadd.f32 %v1856, %v2132
        %v2247 = vadd.f32 %v1857, %v2137
        %v2248 = vadd.f32 %v1858, %v2142
        %v2249 = vadd.f32 %v1859, %v2147
        %v2250 = vadd.f32 %v1860, %v2152
        %v2251 = vadd.f32 %v1861, %v2157
        %v2252 = vadd.f32 %v1862, %v2162
        %v2253 = vadd.f32 %v1863, %v2167
        %v2254 = vadd.f32 %v1864, %v2172
        %v2255 = vadd.f32 %v1865, %v2177
        %v2256 = vadd.f32 %v1866, %v2182
        %v2257 = vadd.f32 %v1867, %v2187
        %v2258 = vadd.f32 %v1868, %v2192
        %v2259 = vadd.f32 %v1869, %v2197
        %v2260 = vadd.f32 %v1870, %v2202
        %v2261 = vadd.f32 %v1871, %v2207
        %v2262 = vadd.f32 %v1872, %v2212
        %v2263 = vadd.f32 %v1873, %v2217
        %v2264 = vadd.f32 %v1874, %v2222
        %v2265 = vadd.f32 %v1875, %v2227
        %v2266 = vadd.f32 %v1876, %v2232
        %v2267 = vld [vmem:[%s738 + $0x1] sm:$0xff]
        %v2268 = vld [vmem:[%s738 + $0x9] sm:$0xff]
        %v2269 = vld [vmem:[%s738 + $0x19] sm:$0xff]
        %v2270 = vld [vmem:[%s738 + $0x21] sm:$0xff]
        %v2271 = vld [vmem:[%s738 + $0x31] sm:$0xff]
        %v2272 = vld [vmem:[%s738 + $0x39] sm:$0xff]
        %v2273 = vld [vmem:[%s738 + $0x49] sm:$0xff]
        %v2274 = vld [vmem:[%s738 + $0x51] sm:$0xff]
        %v2275 = vld [vmem:[%s738 + $0x61] sm:$0xff]
        %v2276 = vld [vmem:[%s738 + $0x69] sm:$0xff]
        %v2277 = vld [vmem:[%s738 + $0x79] sm:$0xff]
        %v2278 = vld [vmem:[%s738 + $0x81] sm:$0xff]
        %v2279 = vld [vmem:[%s738 + $0x91] sm:$0xff]
        %v2280 = vld [vmem:[%s738 + $0x99] sm:$0xff]
        %v2281 = vld [vmem:[%s738 + $0xa9] sm:$0xff]
        %v2282 = vld [vmem:[%s738 + $0xb1] sm:$0xff]
        %v2283 = vld [vmem:[%s738 + $0xc1] sm:$0xff]
        %v2284 = vld [vmem:[%s738 + $0xc9] sm:$0xff]
        %v2285 = vld [vmem:[%s738 + $0xd9] sm:$0xff]
        %v2286 = vld [vmem:[%s738 + $0xe1] sm:$0xff]
        %v2287 = vld [vmem:[%s738 + $0xf1] sm:$0xff]
        %v2288 = vld [vmem:[%s738 + $0xf9] sm:$0xff]
        %v2289 = vld [vmem:[%s738 + $0x109] sm:$0xff]
        %v2290 = vld [vmem:[%s738 + $0x111] sm:$0xff]
        %v2291 = vld [vmem:[%s738 + $0x121] sm:$0xff]
        %v2292 = vld [vmem:[%s738 + $0x129] sm:$0xff]
        %v2293 = vld [vmem:[%s738 + $0x139] sm:$0xff]
        %v2294 = vld [vmem:[%s738 + $0x141] sm:$0xff]
        %v2295 = vld [vmem:[%s738 + $0x151] sm:$0xff]
        %v2296 = vld [vmem:[%s738 + $0x159] sm:$0xff]
        %v2297 = vld [vmem:[%s738 + $0x169] sm:$0xff]
        %v2298 = vld [vmem:[%s738 + $0x171] sm:$0xff]
        %s2299 = scalar_lea.vmem %s2, 16
        %v2300 = vld [vmem:[%s2299] sm:$0xf]
        %v2302 = vsel %vm692, %v2267, 0
        %v2305 = vsel %vm692, %v2268, 0
        %v2308 = vsel %vm692, %v2269, 0
        %v2311 = vsel %vm692, %v2270, 0
        %v2314 = vsel %vm692, %v2271, 0
        %v2317 = vsel %vm692, %v2272, 0
        %v2320 = vsel %vm692, %v2273, 0
        %v2323 = vsel %vm692, %v2274, 0
        %v2326 = vsel %vm692, %v2275, 0
        %v2329 = vsel %vm692, %v2276, 0
        %v2332 = vsel %vm692, %v2277, 0
        %v2335 = vsel %vm692, %v2278, 0
        %v2338 = vsel %vm692, %v2279, 0
        %v2341 = vsel %vm692, %v2280, 0
        %v2344 = vsel %vm692, %v2281, 0
        %v2347 = vsel %vm692, %v2282, 0
        %v2350 = vsel %vm692, %v2283, 0
        %v2353 = vsel %vm692, %v2284, 0
        %v2356 = vsel %vm692, %v2285, 0
        %v2359 = vsel %vm692, %v2286, 0
        %v2362 = vsel %vm692, %v2287, 0
        %v2365 = vsel %vm692, %v2288, 0
        %v2368 = vsel %vm692, %v2289, 0
        %v2371 = vsel %vm692, %v2290, 0
        %v2374 = vsel %vm692, %v2291, 0
        %v2377 = vsel %vm692, %v2292, 0
        %v2380 = vsel %vm692, %v2293, 0
        %v2383 = vsel %vm692, %v2294, 0
        %v2386 = vsel %vm692, %v2295, 0
        %v2389 = vsel %vm692, %v2296, 0
        %v2392 = vsel %vm692, %v2297, 0
        %v2395 = vsel %vm692, %v2298, 0
        %v2398 = vsel %vm934, %v2300, 0
        %2400 = vmatprep.subr.mxu0 0.0
        %2401 = vmatpush1.msra.mxu0 %v2398
        %2402 = vmatprep.subr.mxu0 0.0
        %2403 = vmatpush1.msra.mxu0 0.0
        %2404 = vmatprep.subr.mxu0 0.0
        %2405 = vmatpush1.msra.mxu0 0.0
        %2406 = vmatprep.subr.mxu0 0.0
        %2407 = vmatpush1.msra.mxu0 0.0
        %2408 = vmatprep.subr.mxu0 0.0
        %2409 = vmatpush1.msra.mxu0 0.0
        %2410 = vmatprep.subr.mxu0 0.0
        %2411 = vmatpush1.msra.mxu0 0.0
        %2412 = vmatprep.subr.mxu0 0.0
        %2413 = vmatpush1.msra.mxu0 0.0
        %2414 = vmatprep.subr.mxu0 0.0
        %2415 = vmatpush1.msra.mxu0 0.0
        %2416 = vmatprep.subr.mxu0 0.0
        %2417 = vmatpush1.msra.mxu0 0.0
        %2418 = vmatprep.subr.mxu0 0.0
        %2419 = vmatpush1.msra.mxu0 0.0
        %2420 = vmatprep.subr.mxu0 0.0
        %2421 = vmatpush1.msra.mxu0 0.0
        %2422 = vmatprep.subr.mxu0 0.0
        %2423 = vmatpush1.msra.mxu0 0.0
        %2424 = vmatprep.subr.mxu0 0.0
        %2425 = vmatpush1.msra.mxu0 0.0
        %2426 = vmatprep.subr.mxu0 0.0
        %2427 = vmatpush1.msra.mxu0 0.0
        %2428 = vmatprep.subr.mxu0 0.0
        %2429 = vmatpush1.msra.mxu0 0.0
        %2430 = vmatprep.subr.mxu0 0.0
        %2431 = vmatpush1.msra.mxu0 0.0
        %2432 = vmatprep.subr.mxu0 0.0
        %2433 = vmatpush1.msra.mxu0 0.0
        %2434 = vmatprep.subr.mxu0 0.0
        %2435 = vmatpush1.msra.mxu0 0.0
        %2436 = vmatprep.subr.mxu0 0.0
        %2437 = vmatpush1.msra.mxu0 0.0
        %2438 = vmatprep.subr.mxu0 0.0
        %2439 = vmatpush1.msra.mxu0 0.0
        %2440 = vmatprep.subr.mxu0 0.0
        %2441 = vmatpush1.msra.mxu0 0.0
        %2442 = vmatprep.subr.mxu0 0.0
        %2443 = vmatpush1.msra.mxu0 0.0
        %2444 = vmatprep.subr.mxu0 0.0
        %2445 = vmatpush1.msra.mxu0 0.0
        %2446 = vmatprep.subr.mxu0 0.0
        %2447 = vmatpush1.msra.mxu0 0.0
        %2448 = vmatprep.subr.mxu0 0.0
        %2449 = vmatpush1.msra.mxu0 0.0
        %2450 = vmatprep.subr.mxu0 0.0
        %2451 = vmatpush1.msra.mxu0 0.0
        %2452 = vmatprep.subr.mxu0 0.0
        %2453 = vmatpush1.msra.mxu0 0.0
        %2454 = vmatprep.subr.mxu0 0.0
        %2455 = vmatpush1.msra.mxu0 0.0
        %2456 = vmatprep.subr.mxu0 0.0
        %2457 = vmatpush1.msra.mxu0 0.0
        %2458 = vmatprep.subr.mxu0 0.0
        %2459 = vmatpush1.msra.mxu0 0.0
        %2460 = vmatprep.subr.mxu0 0.0
        %2461 = vmatpush1.msra.mxu0 0.0
        %2462 = vmatprep.subr.mxu0 0.0
        %2463 = vmatpush1.msra.mxu0 0.0
        %2464 = vmatprep.mubr.f32.mxu0 0.0
        %2465 = vmatmul.mubr.f32.gmra.mrb[0].mxu0 %v2302
        %v2466 = vpop.f32.mrb[0].mxu0
        %v2467 = vadd.f32 0.0, %v2466
        %v2468 = vpop.f32.mrb[0].mxu0
        %2469 = vmatprep.mubr.f32.mxu0 0.0
        %2470 = vmatmul.mubr.f32.gmra.mrb[0].mxu0 %v2305
        %v2471 = vpop.f32.mrb[0].mxu0
        %v2472 = vadd.f32 0.0, %v2471
        %v2473 = vpop.f32.mrb[0].mxu0
        %2474 = vmatprep.mubr.f32.mxu0 0.0
        %2475 = vmatmul.mubr.f32.gmra.mrb[0].mxu0 %v2308
        %v2476 = vpop.f32.mrb[0].mxu0
        %v2477 = vadd.f32 0.0, %v2476
        %v2478 = vpop.f32.mrb[0].mxu0
        %2479 = vmatprep.mubr.f32.mxu0 0.0
        %2480 = vmatmul.mubr.f32.gmra.mrb[0].mxu0 %v2311
        %v2481 = vpop.f32.mrb[0].mxu0
        %v2482 = vadd.f32 0.0, %v2481
        %v2483 = vpop.f32.mrb[0].mxu0
        %2484 = vmatprep.mubr.f32.mxu0 0.0
        %2485 = vmatmul.mubr.f32.gmra.mrb[0].mxu0 %v2314
        %v2486 = vpop.f32.mrb[0].mxu0
        %v2487 = vadd.f32 0.0, %v2486
        %v2488 = vpop.f32.mrb[0].mxu0
        %2489 = vmatprep.mubr.f32.mxu0 0.0
        %2490 = vmatmul.mubr.f32.gmra.mrb[0].mxu0 %v2317
        %v2491 = vpop.f32.mrb[0].mxu0
        %v2492 = vadd.f32 0.0, %v2491
        %v2493 = vpop.f32.mrb[0].mxu0
        %2494 = vmatprep.mubr.f32.mxu0 0.0
        %2495 = vmatmul.mubr.f32.gmra.mrb[0].mxu0 %v2320
        %v2496 = vpop.f32.mrb[0].mxu0
        %v2497 = vadd.f32 0.0, %v2496
        %v2498 = vpop.f32.mrb[0].mxu0
        %2499 = vmatprep.mubr.f32.mxu0 0.0
        %2500 = vmatmul.mubr.f32.gmra.mrb[0].mxu0 %v2323
        %v2501 = vpop.f32.mrb[0].mxu0
        %v2502 = vadd.f32 0.0, %v2501
        %v2503 = vpop.f32.mrb[0].mxu0
        %2504 = vmatprep.mubr.f32.mxu0 0.0
        %2505 = vmatmul.mubr.f32.gmra.mrb[0].mxu0 %v2326
        %v2506 = vpop.f32.mrb[0].mxu0
        %v2507 = vadd.f32 0.0, %v2506
        %v2508 = vpop.f32.mrb[0].mxu0
        %2509 = vmatprep.mubr.f32.mxu0 0.0
        %2510 = vmatmul.mubr.f32.gmra.mrb[0].mxu0 %v2329
        %v2511 = vpop.f32.mrb[0].mxu0
        %v2512 = vadd.f32 0.0, %v2511
        %v2513 = vpop.f32.mrb[0].mxu0
        %2514 = vmatprep.mubr.f32.mxu0 0.0
        %2515 = vmatmul.mubr.f32.gmra.mrb[0].mxu0 %v2332
        %v2516 = vpop.f32.mrb[0].mxu0
        %v2517 = vadd.f32 0.0, %v2516
        %v2518 = vpop.f32.mrb[0].mxu0
        %2519 = vmatprep.mubr.f32.mxu0 0.0
        %2520 = vmatmul.mubr.f32.gmra.mrb[0].mxu0 %v2335
        %v2521 = vpop.f32.mrb[0].mxu0
        %v2522 = vadd.f32 0.0, %v2521
        %v2523 = vpop.f32.mrb[0].mxu0
        %2524 = vmatprep.mubr.f32.mxu0 0.0
        %2525 = vmatmul.mubr.f32.gmra.mrb[0].mxu0 %v2338
        %v2526 = vpop.f32.mrb[0].mxu0
        %v2527 = vadd.f32 0.0, %v2526
        %v2528 = vpop.f32.mrb[0].mxu0
        %2529 = vmatprep.mubr.f32.mxu0 0.0
        %2530 = vmatmul.mubr.f32.gmra.mrb[0].mxu0 %v2341
        %v2531 = vpop.f32.mrb[0].mxu0
        %v2532 = vadd.f32 0.0, %v2531
        %v2533 = vpop.f32.mrb[0].mxu0
        %2534 = vmatprep.mubr.f32.mxu0 0.0
        %2535 = vmatmul.mubr.f32.gmra.mrb[0].mxu0 %v2344
        %v2536 = vpop.f32.mrb[0].mxu0
        %v2537 = vadd.f32 0.0, %v2536
        %v2538 = vpop.f32.mrb[0].mxu0
        %2539 = vmatprep.mubr.f32.mxu0 0.0
        %2540 = vmatmul.mubr.f32.gmra.mrb[0].mxu0 %v2347
        %v2541 = vpop.f32.mrb[0].mxu0
        %v2542 = vadd.f32 0.0, %v2541
        %v2543 = vpop.f32.mrb[0].mxu0
        %2544 = vmatprep.mubr.f32.mxu0 0.0
        %2545 = vmatmul.mubr.f32.gmra.mrb[0].mxu0 %v2350
        %v2546 = vpop.f32.mrb[0].mxu0
        %v2547 = vadd.f32 0.0, %v2546
        %v2548 = vpop.f32.mrb[0].mxu0
        %2549 = vmatprep.mubr.f32.mxu0 0.0
        %2550 = vmatmul.mubr.f32.gmra.mrb[0].mxu0 %v2353
        %v2551 = vpop.f32.mrb[0].mxu0
        %v2552 = vadd.f32 0.0, %v2551
        %v2553 = vpop.f32.mrb[0].mxu0
        %2554 = vmatprep.mubr.f32.mxu0 0.0
        %2555 = vmatmul.mubr.f32.gmra.mrb[0].mxu0 %v2356
        %v2556 = vpop.f32.mrb[0].mxu0
        %v2557 = vadd.f32 0.0, %v2556
        %v2558 = vpop.f32.mrb[0].mxu0
        %2559 = vmatprep.mubr.f32.mxu0 0.0
        %2560 = vmatmul.mubr.f32.gmra.mrb[0].mxu0 %v2359
        %v2561 = vpop.f32.mrb[0].mxu0
        %v2562 = vadd.f32 0.0, %v2561
        %v2563 = vpop.f32.mrb[0].mxu0
        %2564 = vmatprep.mubr.f32.mxu0 0.0
        %2565 = vmatmul.mubr.f32.gmra.mrb[0].mxu0 %v2362
        %v2566 = vpop.f32.mrb[0].mxu0
        %v2567 = vadd.f32 0.0, %v2566
        %v2568 = vpop.f32.mrb[0].mxu0
        %2569 = vmatprep.mubr.f32.mxu0 0.0
        %2570 = vmatmul.mubr.f32.gmra.mrb[0].mxu0 %v2365
        %v2571 = vpop.f32.mrb[0].mxu0
        %v2572 = vadd.f32 0.0, %v2571
        %v2573 = vpop.f32.mrb[0].mxu0
        %2574 = vmatprep.mubr.f32.mxu0 0.0
        %2575 = vmatmul.mubr.f32.gmra.mrb[0].mxu0 %v2368
        %v2576 = vpop.f32.mrb[0].mxu0
        %v2577 = vadd.f32 0.0, %v2576
        %v2578 = vpop.f32.mrb[0].mxu0
        %2579 = vmatprep.mubr.f32.mxu0 0.0
        %2580 = vmatmul.mubr.f32.gmra.mrb[0].mxu0 %v2371
        %v2581 = vpop.f32.mrb[0].mxu0
        %v2582 = vadd.f32 0.0, %v2581
        %v2583 = vpop.f32.mrb[0].mxu0
        %2584 = vmatprep.mubr.f32.mxu0 0.0
        %2585 = vmatmul.mubr.f32.gmra.mrb[0].mxu0 %v2374
        %v2586 = vpop.f32.mrb[0].mxu0
        %v2587 = vadd.f32 0.0, %v2586
        %v2588 = vpop.f32.mrb[0].mxu0
        %2589 = vmatprep.mubr.f32.mxu0 0.0
        %2590 = vmatmul.mubr.f32.gmra.mrb[0].mxu0 %v2377
        %v2591 = vpop.f32.mrb[0].mxu0
        %v2592 = vadd.f32 0.0, %v2591
        %v2593 = vpop.f32.mrb[0].mxu0
        %2594 = vmatprep.mubr.f32.mxu0 0.0
        %2595 = vmatmul.mubr.f32.gmra.mrb[0].mxu0 %v2380
        %v2596 = vpop.f32.mrb[0].mxu0
        %v2597 = vadd.f32 0.0, %v2596
        %v2598 = vpop.f32.mrb[0].mxu0
        %2599 = vmatprep.mubr.f32.mxu0 0.0
        %2600 = vmatmul.mubr.f32.gmra.mrb[0].mxu0 %v2383
        %v2601 = vpop.f32.mrb[0].mxu0
        %v2602 = vadd.f32 0.0, %v2601
        %v2603 = vpop.f32.mrb[0].mxu0
        %2604 = vmatprep.mubr.f32.mxu0 0.0
        %2605 = vmatmul.mubr.f32.gmra.mrb[0].mxu0 %v2386
        %v2606 = vpop.f32.mrb[0].mxu0
        %v2607 = vadd.f32 0.0, %v2606
        %v2608 = vpop.f32.mrb[0].mxu0
        %2609 = vmatprep.mubr.f32.mxu0 0.0
        %2610 = vmatmul.mubr.f32.gmra.mrb[0].mxu0 %v2389
        %v2611 = vpop.f32.mrb[0].mxu0
        %v2612 = vadd.f32 0.0, %v2611
        %v2613 = vpop.f32.mrb[0].mxu0
        %2614 = vmatprep.mubr.f32.mxu0 0.0
        %2615 = vmatmul.mubr.f32.gmra.mrb[0].mxu0 %v2392
        %v2616 = vpop.f32.mrb[0].mxu0
        %v2617 = vadd.f32 0.0, %v2616
        %v2618 = vpop.f32.mrb[0].mxu0
        %2619 = vmatprep.mubr.f32.mxu0 0.0
        %2620 = vmatmul.mubr.f32.gmra.mrb[0].mxu0 %v2395
        %v2621 = vpop.f32.mrb[0].mxu0
        %v2622 = vadd.f32 0.0, %v2621
        %v2623 = vpop.f32.mrb[0].mxu0
        %2624 = vdwg.mxu0
        %v2625 = vadd.f32 %v2235, %v2467
        %v2626 = vadd.f32 %v2236, %v2472
        %v2627 = vadd.f32 %v2237, %v2477
        %v2628 = vadd.f32 %v2238, %v2482
        %v2629 = vadd.f32 %v2239, %v2487
        %v2630 = vadd.f32 %v2240, %v2492
        %v2631 = vadd.f32 %v2241, %v2497
        %v2632 = vadd.f32 %v2242, %v2502
        %v2633 = vadd.f32 %v2243, %v2507
        %v2634 = vadd.f32 %v2244, %v2512
        %v2635 = vadd.f32 %v2245, %v2517
        %v2636 = vadd.f32 %v2246, %v2522
        %v2637 = vadd.f32 %v2247, %v2527
        %v2638 = vadd.f32 %v2248, %v2532
        %v2639 = vadd.f32 %v2249, %v2537
        %v2640 = vadd.f32 %v2250, %v2542
        %v2641 = vadd.f32 %v2251, %v2547
        %v2642 = vadd.f32 %v2252, %v2552
        %v2643 = vadd.f32 %v2253, %v2557
        %v2644 = vadd.f32 %v2254, %v2562
        %v2645 = vadd.f32 %v2255, %v2567
        %v2646 = vadd.f32 %v2256, %v2572
        %v2647 = vadd.f32 %v2257, %v2577
        %v2648 = vadd.f32 %v2258, %v2582
        %v2649 = vadd.f32 %v2259, %v2587
        %v2650 = vadd.f32 %v2260, %v2592
        %v2651 = vadd.f32 %v2261, %v2597
        %v2652 = vadd.f32 %v2262, %v2602
        %v2653 = vadd.f32 %v2263, %v2607
        %v2654 = vadd.f32 %v2264, %v2612
        %v2655 = vadd.f32 %v2265, %v2617
        %v2656 = vadd.f32 %v2266, %v2622
        %v2657 = vld [vmem:[%s738 + $0x2] sm:$0xff]
        %v2658 = vld [vmem:[%s738 + $0xa] sm:$0xff]
        %v2659 = vld [vmem:[%s738 + $0x1a] sm:$0xff]
        %v2660 = vld [vmem:[%s738 + $0x22] sm:$0xff]
        %v2661 = vld [vmem:[%s738 + $0x32] sm:$0xff]
        %v2662 = vld [vmem:[%s738 + $0x3a] sm:$0xff]
        %v2663 = vld [vmem:[%s738 + $0x4a] sm:$0xff]
        %v2664 = vld [vmem:[%s738 + $0x52] sm:$0xff]
        %v2665 = vld [vmem:[%s738 + $0x62] sm:$0xff]
        %v2666 = vld [vmem:[%s738 + $0x6a] sm:$0xff]
        %v2667 = vld [vmem:[%s738 + $0x7a] sm:$0xff]
        %v2668 = vld [vmem:[%s738 + $0x82] sm:$0xff]
        %v2669 = vld [vmem:[%s738 + $0x92] sm:$0xff]
        %v2670 = vld [vmem:[%s738 + $0x9a] sm:$0xff]
        %v2671 = vld [vmem:[%s738 + $0xaa] sm:$0xff]
        %v2672 = vld [vmem:[%s738 + $0xb2] sm:$0xff]
        %v2673 = vld [vmem:[%s738 + $0xc2] sm:$0xff]
        %v2674 = vld [vmem:[%s738 + $0xca] sm:$0xff]
        %v2675 = vld [vmem:[%s738 + $0xda] sm:$0xff]
        %v2676 = vld [vmem:[%s738 + $0xe2] sm:$0xff]
        %v2677 = vld [vmem:[%s738 + $0xf2] sm:$0xff]
        %v2678 = vld [vmem:[%s738 + $0xfa] sm:$0xff]
        %v2679 = vld [vmem:[%s738 + $0x10a] sm:$0xff]
        %v2680 = vld [vmem:[%s738 + $0x112] sm:$0xff]
        %v2681 = vld [vmem:[%s738 + $0x122] sm:$0xff]
        %v2682 = vld [vmem:[%s738 + $0x12a] sm:$0xff]
        %v2683 = vld [vmem:[%s738 + $0x13a] sm:$0xff]
        %v2684 = vld [vmem:[%s738 + $0x142] sm:$0xff]
        %v2685 = vld [vmem:[%s738 + $0x152] sm:$0xff]
        %v2686 = vld [vmem:[%s738 + $0x15a] sm:$0xff]
        %v2687 = vld [vmem:[%s738 + $0x16a] sm:$0xff]
        %v2688 = vld [vmem:[%s738 + $0x172] sm:$0xff]
        %s2689 = scalar_lea.vmem %s2, 20
        %v2690 = vld [vmem:[%s2689] sm:$0xf]
        %v2692 = vsel %vm692, %v2657, 0
        %v2695 = vsel %vm692, %v2658, 0
        %v2698 = vsel %vm692, %v2659, 0
        %v2701 = vsel %vm692, %v2660, 0
        %v2704 = vsel %vm692, %v2661, 0
        %v2707 = vsel %vm692, %v2662, 0
        %v2710 = vsel %vm692, %v2663, 0
        %v2713 = vsel %vm692, %v2664, 0
        %v2716 = vsel %vm692, %v2665, 0
        %v2719 = vsel %vm692, %v2666, 0
        %v2722 = vsel %vm692, %v2667, 0
        %v2725 = vsel %vm692, %v2668, 0
        %v2728 = vsel %vm692, %v2669, 0
        %v2731 = vsel %vm692, %v2670, 0
        %v2734 = vsel %vm692, %v2671, 0
        %v2737 = vsel %vm692, %v2672, 0
        %v2740 = vsel %vm692, %v2673, 0
        %v2743 = vsel %vm692, %v2674, 0
        %v2746 = vsel %vm692, %v2675, 0
        %v2749 = vsel %vm692, %v2676, 0
        %v2752 = vsel %vm692, %v2677, 0
        %v2755 = vsel %vm692, %v2678, 0
        %v2758 = vsel %vm692, %v2679, 0
        %v2761 = vsel %vm692, %v2680, 0
        %v2764 = vsel %vm692, %v2681, 0
        %v2767 = vsel %vm692, %v2682, 0
        %v2770 = vsel %vm692, %v2683, 0
        %v2773 = vsel %vm692, %v2684, 0
        %v2776 = vsel %vm692, %v2685, 0
        %v2779 = vsel %vm692, %v2686, 0
        %v2782 = vsel %vm692, %v2687, 0
        %v2785 = vsel %vm692, %v2688, 0
        %v2788 = vsel %vm934, %v2690, 0
        %2790 = vmatprep.subr.mxu0 0.0
        %2791 = vmatpush1.msra.mxu0 %v2788
        %2792 = vmatprep.subr.mxu0 0.0
        %2793 = vmatpush1.msra.mxu0 0.0
        %2794 = vmatprep.subr.mxu0 0.0
        %2795 = vmatpush1.msra.mxu0 0.0
        %2796 = vmatprep.subr.mxu0 0.0
        %2797 = vmatpush1.msra.mxu0 0.0
        %2798 = vmatprep.subr.mxu0 0.0
        %2799 = vmatpush1.msra.mxu0 0.0
        %2800 = vmatprep.subr.mxu0 0.0
        %2801 = vmatpush1.msra.mxu0 0.0
        %2802 = vmatprep.subr.mxu0 0.0
        %2803 = vmatpush1.msra.mxu0 0.0
        %2804 = vmatprep.subr.mxu0 0.0
        %2805 = vmatpush1.msra.mxu0 0.0
        %2806 = vmatprep.subr.mxu0 0.0
        %2807 = vmatpush1.msra.mxu0 0.0
        %2808 = vmatprep.subr.mxu0 0.0
        %2809 = vmatpush1.msra.mxu0 0.0
        %2810 = vmatprep.subr.mxu0 0.0
        %2811 = vmatpush1.msra.mxu0 0.0
        %2812 = vmatprep.subr.mxu0 0.0
        %2813 = vmatpush1.msra.mxu0 0.0
        %2814 = vmatprep.subr.mxu0 0.0
        %2815 = vmatpush1.msra.mxu0 0.0
        %2816 = vmatprep.subr.mxu0 0.0
        %2817 = vmatpush1.msra.mxu0 0.0
        %2818 = vmatprep.subr.mxu0 0.0
        %2819 = vmatpush1.msra.mxu0 0.0
        %2820 = vmatprep.subr.mxu0 0.0
        %2821 = vmatpush1.msra.mxu0 0.0
        %2822 = vmatprep.subr.mxu0 0.0
        %2823 = vmatpush1.msra.mxu0 0.0
        %2824 = vmatprep.subr.mxu0 0.0
        %2825 = vmatpush1.msra.mxu0 0.0
        %2826 = vmatprep.subr.mxu0 0.0
        %2827 = vmatpush1.msra.mxu0 0.0
        %2828 = vmatprep.subr.mxu0 0.0
        %2829 = vmatpush1.msra.mxu0 0.0
        %2830 = vmatprep.subr.mxu0 0.0
        %2831 = vmatpush1.msra.mxu0 0.0
        %2832 = vmatprep.subr.mxu0 0.0
        %2833 = vmatpush1.msra.mxu0 0.0
        %2834 = vmatprep.subr.mxu0 0.0
        %2835 = vmatpush1.msra.mxu0 0.0
        %2836 = vmatprep.subr.mxu0 0.0
        %2837 = vmatpush1.msra.mxu0 0.0
        %2838 = vmatprep.subr.mxu0 0.0
        %2839 = vmatpush1.msra.mxu0 0.0
        %2840 = vmatprep.subr.mxu0 0.0
        %2841 = vmatpush1.msra.mxu0 0.0
        %2842 = vmatprep.subr.mxu0 0.0
        %2843 = vmatpush1.msra.mxu0 0.0
        %2844 = vmatprep.subr.mxu0 0.0
        %2845 = vmatpush1.msra.mxu0 0.0
        %2846 = vmatprep.subr.mxu0 0.0
        %2847 = vmatpush1.msra.mxu0 0.0
        %2848 = vmatprep.subr.mxu0 0.0
        %2849 = vmatpush1.msra.mxu0 0.0
        %2850 = vmatprep.subr.mxu0 0.0
        %2851 = vmatpush1.msra.mxu0 0.0
        %2852 = vmatprep.subr.mxu0 0.0
        %2853 = vmatpush1.msra.mxu0 0.0
        %2854 = vmatprep.mubr.f32.mxu0 0.0
        %2855 = vmatmul.mubr.f32.gmra.mrb[0].mxu0 %v2692
        %v2856 = vpop.f32.mrb[0].mxu0
        %v2857 = vadd.f32 0.0, %v2856
        %v2858 = vpop.f32.mrb[0].mxu0
        %2859 = vmatprep.mubr.f32.mxu0 0.0
        %2860 = vmatmul.mubr.f32.gmra.mrb[0].mxu0 %v2695
        %v2861 = vpop.f32.mrb[0].mxu0
        %v2862 = vadd.f32 0.0, %v2861
        %v2863 = vpop.f32.mrb[0].mxu0
        %2864 = vmatprep.mubr.f32.mxu0 0.0
        %2865 = vmatmul.mubr.f32.gmra.mrb[0].mxu0 %v2698
        %v2866 = vpop.f32.mrb[0].mxu0
        %v2867 = vadd.f32 0.0, %v2866
        %v2868 = vpop.f32.mrb[0].mxu0
        %2869 = vmatprep.mubr.f32.mxu0 0.0
        %2870 = vmatmul.mubr.f32.gmra.mrb[0].mxu0 %v2701
        %v2871 = vpop.f32.mrb[0].mxu0
        %v2872 = vadd.f32 0.0, %v2871
        %v2873 = vpop.f32.mrb[0].mxu0
        %2874 = vmatprep.mubr.f32.mxu0 0.0
        %2875 = vmatmul.mubr.f32.gmra.mrb[0].mxu0 %v2704
        %v2876 = vpop.f32.mrb[0].mxu0
        %v2877 = vadd.f32 0.0, %v2876
        %v2878 = vpop.f32.mrb[0].mxu0
        %2879 = vmatprep.mubr.f32.mxu0 0.0
        %2880 = vmatmul.mubr.f32.gmra.mrb[0].mxu0 %v2707
        %v2881 = vpop.f32.mrb[0].mxu0
        %v2882 = vadd.f32 0.0, %v2881
        %v2883 = vpop.f32.mrb[0].mxu0
        %2884 = vmatprep.mubr.f32.mxu0 0.0
        %2885 = vmatmul.mubr.f32.gmra.mrb[0].mxu0 %v2710
        %v2886 = vpop.f32.mrb[0].mxu0
        %v2887 = vadd.f32 0.0, %v2886
        %v2888 = vpop.f32.mrb[0].mxu0
        %2889 = vmatprep.mubr.f32.mxu0 0.0
        %2890 = vmatmul.mubr.f32.gmra.mrb[0].mxu0 %v2713
        %v2891 = vpop.f32.mrb[0].mxu0
        %v2892 = vadd.f32 0.0, %v2891
        %v2893 = vpop.f32.mrb[0].mxu0
        %2894 = vmatprep.mubr.f32.mxu0 0.0
        %2895 = vmatmul.mubr.f32.gmra.mrb[0].mxu0 %v2716
        %v2896 = vpop.f32.mrb[0].mxu0
        %v2897 = vadd.f32 0.0, %v2896
        %v2898 = vpop.f32.mrb[0].mxu0
        %2899 = vmatprep.mubr.f32.mxu0 0.0
        %2900 = vmatmul.mubr.f32.gmra.mrb[0].mxu0 %v2719
        %v2901 = vpop.f32.mrb[0].mxu0
        %v2902 = vadd.f32 0.0, %v2901
        %v2903 = vpop.f32.mrb[0].mxu0
        %2904 = vmatprep.mubr.f32.mxu0 0.0
        %2905 = vmatmul.mubr.f32.gmra.mrb[0].mxu0 %v2722
        %v2906 = vpop.f32.mrb[0].mxu0
        %v2907 = vadd.f32 0.0, %v2906
        %v2908 = vpop.f32.mrb[0].mxu0
        %2909 = vmatprep.mubr.f32.mxu0 0.0
        %2910 = vmatmul.mubr.f32.gmra.mrb[0].mxu0 %v2725
        %v2911 = vpop.f32.mrb[0].mxu0
        %v2912 = vadd.f32 0.0, %v2911
        %v2913 = vpop.f32.mrb[0].mxu0
        %2914 = vmatprep.mubr.f32.mxu0 0.0
        %2915 = vmatmul.mubr.f32.gmra.mrb[0].mxu0 %v2728
        %v2916 = vpop.f32.mrb[0].mxu0
        %v2917 = vadd.f32 0.0, %v2916
        %v2918 = vpop.f32.mrb[0].mxu0
        %2919 = vmatprep.mubr.f32.mxu0 0.0
        %2920 = vmatmul.mubr.f32.gmra.mrb[0].mxu0 %v2731
        %v2921 = vpop.f32.mrb[0].mxu0
        %v2922 = vadd.f32 0.0, %v2921
        %v2923 = vpop.f32.mrb[0].mxu0
        %2924 = vmatprep.mubr.f32.mxu0 0.0
        %2925 = vmatmul.mubr.f32.gmra.mrb[0].mxu0 %v2734
        %v2926 = vpop.f32.mrb[0].mxu0
        %v2927 = vadd.f32 0.0, %v2926
        %v2928 = vpop.f32.mrb[0].mxu0
        %2929 = vmatprep.mubr.f32.mxu0 0.0
        %2930 = vmatmul.mubr.f32.gmra.mrb[0].mxu0 %v2737
        %v2931 = vpop.f32.mrb[0].mxu0
        %v2932 = vadd.f32 0.0, %v2931
        %v2933 = vpop.f32.mrb[0].mxu0
        %2934 = vmatprep.mubr.f32.mxu0 0.0
        %2935 = vmatmul.mubr.f32.gmra.mrb[0].mxu0 %v2740
        %v2936 = vpop.f32.mrb[0].mxu0
        %v2937 = vadd.f32 0.0, %v2936
        %v2938 = vpop.f32.mrb[0].mxu0
        %2939 = vmatprep.mubr.f32.mxu0 0.0
        %2940 = vmatmul.mubr.f32.gmra.mrb[0].mxu0 %v2743
        %v2941 = vpop.f32.mrb[0].mxu0
        %v2942 = vadd.f32 0.0, %v2941
        %v2943 = vpop.f32.mrb[0].mxu0
        %2944 = vmatprep.mubr.f32.mxu0 0.0
        %2945 = vmatmul.mubr.f32.gmra.mrb[0].mxu0 %v2746
        %v2946 = vpop.f32.mrb[0].mxu0
        %v2947 = vadd.f32 0.0, %v2946
        %v2948 = vpop.f32.mrb[0].mxu0
        %2949 = vmatprep.mubr.f32.mxu0 0.0
        %2950 = vmatmul.mubr.f32.gmra.mrb[0].mxu0 %v2749
        %v2951 = vpop.f32.mrb[0].mxu0
        %v2952 = vadd.f32 0.0, %v2951
        %v2953 = vpop.f32.mrb[0].mxu0
        %2954 = vmatprep.mubr.f32.mxu0 0.0
        %2955 = vmatmul.mubr.f32.gmra.mrb[0].mxu0 %v2752
        %v2956 = vpop.f32.mrb[0].mxu0
        %v2957 = vadd.f32 0.0, %v2956
        %v2958 = vpop.f32.mrb[0].mxu0
        %2959 = vmatprep.mubr.f32.mxu0 0.0
        %2960 = vmatmul.mubr.f32.gmra.mrb[0].mxu0 %v2755
        %v2961 = vpop.f32.mrb[0].mxu0
        %v2962 = vadd.f32 0.0, %v2961
        %v2963 = vpop.f32.mrb[0].mxu0
        %2964 = vmatprep.mubr.f32.mxu0 0.0
        %2965 = vmatmul.mubr.f32.gmra.mrb[0].mxu0 %v2758
        %v2966 = vpop.f32.mrb[0].mxu0
        %v2967 = vadd.f32 0.0, %v2966
        %v2968 = vpop.f32.mrb[0].mxu0
        %2969 = vmatprep.mubr.f32.mxu0 0.0
        %2970 = vmatmul.mubr.f32.gmra.mrb[0].mxu0 %v2761
        %v2971 = vpop.f32.mrb[0].mxu0
        %v2972 = vadd.f32 0.0, %v2971
        %v2973 = vpop.f32.mrb[0].mxu0
        %2974 = vmatprep.mubr.f32.mxu0 0.0
        %2975 = vmatmul.mubr.f32.gmra.mrb[0].mxu0 %v2764
        %v2976 = vpop.f32.mrb[0].mxu0
        %v2977 = vadd.f32 0.0, %v2976
        %v2978 = vpop.f32.mrb[0].mxu0
        %2979 = vmatprep.mubr.f32.mxu0 0.0
        %2980 = vmatmul.mubr.f32.gmra.mrb[0].mxu0 %v2767
        %v2981 = vpop.f32.mrb[0].mxu0
        %v2982 = vadd.f32 0.0, %v2981
        %v2983 = vpop.f32.mrb[0].mxu0
        %2984 = vmatprep.mubr.f32.mxu0 0.0
        %2985 = vmatmul.mubr.f32.gmra.mrb[0].mxu0 %v2770
        %v2986 = vpop.f32.mrb[0].mxu0
        %v2987 = vadd.f32 0.0, %v2986
        %v2988 = vpop.f32.mrb[0].mxu0
        %2989 = vmatprep.mubr.f32.mxu0 0.0
        %2990 = vmatmul.mubr.f32.gmra.mrb[0].mxu0 %v2773
        %v2991 = vpop.f32.mrb[0].mxu0
        %v2992 = vadd.f32 0.0, %v2991
        %v2993 = vpop.f32.mrb[0].mxu0
        %2994 = vmatprep.mubr.f32.mxu0 0.0
        %2995 = vmatmul.mubr.f32.gmra.mrb[0].mxu0 %v2776
        %v2996 = vpop.f32.mrb[0].mxu0
        %v2997 = vadd.f32 0.0, %v2996
        %v2998 = vpop.f32.mrb[0].mxu0
        %2999 = vmatprep.mubr.f32.mxu0 0.0
        %3000 = vmatmul.mubr.f32.gmra.mrb[0].mxu0 %v2779
        %v3001 = vpop.f32.mrb[0].mxu0
        %v3002 = vadd.f32 0.0, %v3001
        %v3003 = vpop.f32.mrb[0].mxu0
        %3004 = vmatprep.mubr.f32.mxu0 0.0
        %3005 = vmatmul.mubr.f32.gmra.mrb[0].mxu0 %v2782
        %v3006 = vpop.f32.mrb[0].mxu0
        %v3007 = vadd.f32 0.0, %v3006
        %v3008 = vpop.f32.mrb[0].mxu0
        %3009 = vmatprep.mubr.f32.mxu0 0.0
        %3010 = vmatmul.mubr.f32.gmra.mrb[0].mxu0 %v2785
        %v3011 = vpop.f32.mrb[0].mxu0
        %v3012 = vadd.f32 0.0, %v3011
        %v3013 = vpop.f32.mrb[0].mxu0
        %3014 = vdwg.mxu0
        %v3015 = vadd.f32 %v2625, %v2857
        %v3016 = vadd.f32 %v2626, %v2862
        %v3017 = vadd.f32 %v2627, %v2867
        %v3018 = vadd.f32 %v2628, %v2872
        %v3019 = vadd.f32 %v2629, %v2877
        %v3020 = vadd.f32 %v2630, %v2882
        %v3021 = vadd.f32 %v2631, %v2887
        %v3022 = vadd.f32 %v2632, %v2892
        %v3023 = vadd.f32 %v2633, %v2897
        %v3024 = vadd.f32 %v2634, %v2902
        %v3025 = vadd.f32 %v2635, %v2907
        %v3026 = vadd.f32 %v2636, %v2912
        %v3027 = vadd.f32 %v2637, %v2917
        %v3028 = vadd.f32 %v2638, %v2922
        %v3029 = vadd.f32 %v2639, %v2927
        %v3030 = vadd.f32 %v2640, %v2932
        %v3031 = vadd.f32 %v2641, %v2937
        %v3032 = vadd.f32 %v2642, %v2942
        %v3033 = vadd.f32 %v2643, %v2947
        %v3034 = vadd.f32 %v2644, %v2952
        %v3035 = vadd.f32 %v2645, %v2957
        %v3036 = vadd.f32 %v2646, %v2962
        %v3037 = vadd.f32 %v2647, %v2967
        %v3038 = vadd.f32 %v2648, %v2972
        %v3039 = vadd.f32 %v2649, %v2977
        %v3040 = vadd.f32 %v2650, %v2982
        %v3041 = vadd.f32 %v2651, %v2987
        %v3042 = vadd.f32 %v2652, %v2992
        %v3043 = vadd.f32 %v2653, %v2997
        %v3044 = vadd.f32 %v2654, %v3002
        %v3045 = vadd.f32 %v2655, %v3007
        %v3046 = vadd.f32 %v2656, %v3012
        %s3047 = scalar_lea.vmem [#allocation2], 48
        %v3048 = vld [vmem:[%s3047] sm:$0xff]
        %v3049 = vld [vmem:[%s3047 + $0x8] sm:$0xff]
        %v3050 = vld [vmem:[%s3047 + $0x18] sm:$0xff]
        %v3051 = vld [vmem:[%s3047 + $0x20] sm:$0xff]
        %v3052 = vld [vmem:[%s3047 + $0x30] sm:$0xff]
        %v3053 = vld [vmem:[%s3047 + $0x38] sm:$0xff]
        %v3054 = vld [vmem:[%s3047 + $0x48] sm:$0xff]
        %v3055 = vld [vmem:[%s3047 + $0x50] sm:$0xff]
        %v3056 = vld [vmem:[%s3047 + $0x60] sm:$0xff]
        %v3057 = vld [vmem:[%s3047 + $0x68] sm:$0xff]
        %v3058 = vld [vmem:[%s3047 + $0x78] sm:$0xff]
        %v3059 = vld [vmem:[%s3047 + $0x80] sm:$0xff]
        %v3060 = vld [vmem:[%s3047 + $0x90] sm:$0xff]
        %v3061 = vld [vmem:[%s3047 + $0x98] sm:$0xff]
        %v3062 = vld [vmem:[%s3047 + $0xa8] sm:$0xff]
        %v3063 = vld [vmem:[%s3047 + $0xb0] sm:$0xff]
        %v3064 = vld [vmem:[%s3047 + $0xc0] sm:$0xff]
        %v3065 = vld [vmem:[%s3047 + $0xc8] sm:$0xff]
        %v3066 = vld [vmem:[%s3047 + $0xd8] sm:$0xff]
        %v3067 = vld [vmem:[%s3047 + $0xe0] sm:$0xff]
        %v3068 = vld [vmem:[%s3047 + $0xf0] sm:$0xff]
        %v3069 = vld [vmem:[%s3047 + $0xf8] sm:$0xff]
        %v3070 = vld [vmem:[%s3047 + $0x108] sm:$0xff]
        %v3071 = vld [vmem:[%s3047 + $0x110] sm:$0xff]
        %v3072 = vld [vmem:[%s3047 + $0x120] sm:$0xff]
        %v3073 = vld [vmem:[%s3047 + $0x128] sm:$0xff]
        %v3074 = vld [vmem:[%s3047 + $0x138] sm:$0xff]
        %v3075 = vld [vmem:[%s3047 + $0x140] sm:$0xff]
        %v3076 = vld [vmem:[%s3047 + $0x150] sm:$0xff]
        %v3077 = vld [vmem:[%s3047 + $0x158] sm:$0xff]
        %v3078 = vld [vmem:[%s3047 + $0x168] sm:$0xff]
        %v3079 = vld [vmem:[%s3047 + $0x170] sm:$0xff]
        %s3080 = scalar_lea.vmem %s2, 24
        %v3081 = vld [vmem:[%s3080] sm:$0xf]
        %v3083 = vsel %vm692, %v3048, 0
        %v3086 = vsel %vm692, %v3049, 0
        %v3089 = vsel %vm692, %v3050, 0
        %v3092 = vsel %vm692, %v3051, 0
        %v3095 = vsel %vm692, %v3052, 0
        %v3098 = vsel %vm692, %v3053, 0
        %v3101 = vsel %vm692, %v3054, 0
        %v3104 = vsel %vm692, %v3055, 0
        %v3107 = vsel %vm692, %v3056, 0
        %v3110 = vsel %vm692, %v3057, 0
        %v3113 = vsel %vm692, %v3058, 0
        %v3116 = vsel %vm692, %v3059, 0
        %v3119 = vsel %vm692, %v3060, 0
        %v3122 = vsel %vm692, %v3061, 0
        %v3125 = vsel %vm692, %v3062, 0
        %v3128 = vsel %vm692, %v3063, 0
        %v3131 = vsel %vm692, %v3064, 0
        %v3134 = vsel %vm692, %v3065, 0
        %v3137 = vsel %vm692, %v3066, 0
        %v3140 = vsel %vm692, %v3067, 0
        %v3143 = vsel %vm692, %v3068, 0
        %v3146 = vsel %vm692, %v3069, 0
        %v3149 = vsel %vm692, %v3070, 0
        %v3152 = vsel %vm692, %v3071, 0
        %v3155 = vsel %vm692, %v3072, 0
        %v3158 = vsel %vm692, %v3073, 0
        %v3161 = vsel %vm692, %v3074, 0
        %v3164 = vsel %vm692, %v3075, 0
        %v3167 = vsel %vm692, %v3076, 0
        %v3170 = vsel %vm692, %v3077, 0
        %v3173 = vsel %vm692, %v3078, 0
        %v3176 = vsel %vm692, %v3079, 0
        %v3179 = vsel %vm934, %v3081, 0
        %3181 = vmatprep.subr.mxu0 0.0
        %3182 = vmatpush1.msra.mxu0 %v3179
        %3183 = vmatprep.subr.mxu0 0.0
        %3184 = vmatpush1.msra.mxu0 0.0
        %3185 = vmatprep.subr.mxu0 0.0
        %3186 = vmatpush1.msra.mxu0 0.0
        %3187 = vmatprep.subr.mxu0 0.0
        %3188 = vmatpush1.msra.mxu0 0.0
        %3189 = vmatprep.subr.mxu0 0.0
        %3190 = vmatpush1.msra.mxu0 0.0
        %3191 = vmatprep.subr.mxu0 0.0
        %3192 = vmatpush1.msra.mxu0 0.0
        %3193 = vmatprep.subr.mxu0 0.0
        %3194 = vmatpush1.msra.mxu0 0.0
        %3195 = vmatprep.subr.mxu0 0.0
        %3196 = vmatpush1.msra.mxu0 0.0
        %3197 = vmatprep.subr.mxu0 0.0
        %3198 = vmatpush1.msra.mxu0 0.0
        %3199 = vmatprep.subr.mxu0 0.0
        %3200 = vmatpush1.msra.mxu0 0.0
        %3201 = vmatprep.subr.mxu0 0.0
        %3202 = vmatpush1.msra.mxu0 0.0
        %3203 = vmatprep.subr.mxu0 0.0
        %3204 = vmatpush1.msra.mxu0 0.0
        %3205 = vmatprep.subr.mxu0 0.0
        %3206 = vmatpush1.msra.mxu0 0.0
        %3207 = vmatprep.subr.mxu0 0.0
        %3208 = vmatpush1.msra.mxu0 0.0
        %3209 = vmatprep.subr.mxu0 0.0
        %3210 = vmatpush1.msra.mxu0 0.0
        %3211 = vmatprep.subr.mxu0 0.0
        %3212 = vmatpush1.msra.mxu0 0.0
        %3213 = vmatprep.subr.mxu0 0.0
        %3214 = vmatpush1.msra.mxu0 0.0
        %3215 = vmatprep.subr.mxu0 0.0
        %3216 = vmatpush1.msra.mxu0 0.0
        %3217 = vmatprep.subr.mxu0 0.0
        %3218 = vmatpush1.msra.mxu0 0.0
        %3219 = vmatprep.subr.mxu0 0.0
        %3220 = vmatpush1.msra.mxu0 0.0
        %3221 = vmatprep.subr.mxu0 0.0
        %3222 = vmatpush1.msra.mxu0 0.0
        %3223 = vmatprep.subr.mxu0 0.0
        %3224 = vmatpush1.msra.mxu0 0.0
        %3225 = vmatprep.subr.mxu0 0.0
        %3226 = vmatpush1.msra.mxu0 0.0
        %3227 = vmatprep.subr.mxu0 0.0
        %3228 = vmatpush1.msra.mxu0 0.0
        %3229 = vmatprep.subr.mxu0 0.0
        %3230 = vmatpush1.msra.mxu0 0.0
        %3231 = vmatprep.subr.mxu0 0.0
        %3232 = vmatpush1.msra.mxu0 0.0
        %3233 = vmatprep.subr.mxu0 0.0
        %3234 = vmatpush1.msra.mxu0 0.0
        %3235 = vmatprep.subr.mxu0 0.0
        %3236 = vmatpush1.msra.mxu0 0.0
        %3237 = vmatprep.subr.mxu0 0.0
        %3238 = vmatpush1.msra.mxu0 0.0
        %3239 = vmatprep.subr.mxu0 0.0
        %3240 = vmatpush1.msra.mxu0 0.0
        %3241 = vmatprep.subr.mxu0 0.0
        %3242 = vmatpush1.msra.mxu0 0.0
        %3243 = vmatprep.subr.mxu0 0.0
        %3244 = vmatpush1.msra.mxu0 0.0
        %3245 = vmatprep.mubr.f32.mxu0 0.0
        %3246 = vmatmul.mubr.f32.gmra.mrb[0].mxu0 %v3083
        %v3247 = vpop.f32.mrb[0].mxu0
        %v3248 = vadd.f32 0.0, %v3247
        %v3249 = vpop.f32.mrb[0].mxu0
        %3250 = vmatprep.mubr.f32.mxu0 0.0
        %3251 = vmatmul.mubr.f32.gmra.mrb[0].mxu0 %v3086
        %v3252 = vpop.f32.mrb[0].mxu0
        %v3253 = vadd.f32 0.0, %v3252
        %v3254 = vpop.f32.mrb[0].mxu0
        %3255 = vmatprep.mubr.f32.mxu0 0.0
        %3256 = vmatmul.mubr.f32.gmra.mrb[0].mxu0 %v3089
        %v3257 = vpop.f32.mrb[0].mxu0
        %v3258 = vadd.f32 0.0, %v3257
        %v3259 = vpop.f32.mrb[0].mxu0
        %3260 = vmatprep.mubr.f32.mxu0 0.0
        %3261 = vmatmul.mubr.f32.gmra.mrb[0].mxu0 %v3092
        %v3262 = vpop.f32.mrb[0].mxu0
        %v3263 = vadd.f32 0.0, %v3262
        %v3264 = vpop.f32.mrb[0].mxu0
        %3265 = vmatprep.mubr.f32.mxu0 0.0
        %3266 = vmatmul.mubr.f32.gmra.mrb[0].mxu0 %v3095
        %v3267 = vpop.f32.mrb[0].mxu0
        %v3268 = vadd.f32 0.0, %v3267
        %v3269 = vpop.f32.mrb[0].mxu0
        %3270 = vmatprep.mubr.f32.mxu0 0.0
        %3271 = vmatmul.mubr.f32.gmra.mrb[0].mxu0 %v3098
        %v3272 = vpop.f32.mrb[0].mxu0
        %v3273 = vadd.f32 0.0, %v3272
        %v3274 = vpop.f32.mrb[0].mxu0
        %3275 = vmatprep.mubr.f32.mxu0 0.0
        %3276 = vmatmul.mubr.f32.gmra.mrb[0].mxu0 %v3101
        %v3277 = vpop.f32.mrb[0].mxu0
        %v3278 = vadd.f32 0.0, %v3277
        %v3279 = vpop.f32.mrb[0].mxu0
        %3280 = vmatprep.mubr.f32.mxu0 0.0
        %3281 = vmatmul.mubr.f32.gmra.mrb[0].mxu0 %v3104
        %v3282 = vpop.f32.mrb[0].mxu0
        %v3283 = vadd.f32 0.0, %v3282
        %v3284 = vpop.f32.mrb[0].mxu0
        %3285 = vmatprep.mubr.f32.mxu0 0.0
        %3286 = vmatmul.mubr.f32.gmra.mrb[0].mxu0 %v3107
        %v3287 = vpop.f32.mrb[0].mxu0
        %v3288 = vadd.f32 0.0, %v3287
        %v3289 = vpop.f32.mrb[0].mxu0
        %3290 = vmatprep.mubr.f32.mxu0 0.0
        %3291 = vmatmul.mubr.f32.gmra.mrb[0].mxu0 %v3110
        %v3292 = vpop.f32.mrb[0].mxu0
        %v3293 = vadd.f32 0.0, %v3292
        %v3294 = vpop.f32.mrb[0].mxu0
        %3295 = vmatprep.mubr.f32.mxu0 0.0
        %3296 = vmatmul.mubr.f32.gmra.mrb[0].mxu0 %v3113
        %v3297 = vpop.f32.mrb[0].mxu0
        %v3298 = vadd.f32 0.0, %v3297
        %v3299 = vpop.f32.mrb[0].mxu0
        %3300 = vmatprep.mubr.f32.mxu0 0.0
        %3301 = vmatmul.mubr.f32.gmra.mrb[0].mxu0 %v3116
        %v3302 = vpop.f32.mrb[0].mxu0
        %v3303 = vadd.f32 0.0, %v3302
        %v3304 = vpop.f32.mrb[0].mxu0
        %3305 = vmatprep.mubr.f32.mxu0 0.0
        %3306 = vmatmul.mubr.f32.gmra.mrb[0].mxu0 %v3119
        %v3307 = vpop.f32.mrb[0].mxu0
        %v3308 = vadd.f32 0.0, %v3307
        %v3309 = vpop.f32.mrb[0].mxu0
        %3310 = vmatprep.mubr.f32.mxu0 0.0
        %3311 = vmatmul.mubr.f32.gmra.mrb[0].mxu0 %v3122
        %v3312 = vpop.f32.mrb[0].mxu0
        %v3313 = vadd.f32 0.0, %v3312
        %v3314 = vpop.f32.mrb[0].mxu0
        %3315 = vmatprep.mubr.f32.mxu0 0.0
        %3316 = vmatmul.mubr.f32.gmra.mrb[0].mxu0 %v3125
        %v3317 = vpop.f32.mrb[0].mxu0
        %v3318 = vadd.f32 0.0, %v3317
        %v3319 = vpop.f32.mrb[0].mxu0
        %3320 = vmatprep.mubr.f32.mxu0 0.0
        %3321 = vmatmul.mubr.f32.gmra.mrb[0].mxu0 %v3128
        %v3322 = vpop.f32.mrb[0].mxu0
        %v3323 = vadd.f32 0.0, %v3322
        %v3324 = vpop.f32.mrb[0].mxu0
        %3325 = vmatprep.mubr.f32.mxu0 0.0
        %3326 = vmatmul.mubr.f32.gmra.mrb[0].mxu0 %v3131
        %v3327 = vpop.f32.mrb[0].mxu0
        %v3328 = vadd.f32 0.0, %v3327
        %v3329 = vpop.f32.mrb[0].mxu0
        %3330 = vmatprep.mubr.f32.mxu0 0.0
        %3331 = vmatmul.mubr.f32.gmra.mrb[0].mxu0 %v3134
        %v3332 = vpop.f32.mrb[0].mxu0
        %v3333 = vadd.f32 0.0, %v3332
        %v3334 = vpop.f32.mrb[0].mxu0
        %3335 = vmatprep.mubr.f32.mxu0 0.0
        %3336 = vmatmul.mubr.f32.gmra.mrb[0].mxu0 %v3137
        %v3337 = vpop.f32.mrb[0].mxu0
        %v3338 = vadd.f32 0.0, %v3337
        %v3339 = vpop.f32.mrb[0].mxu0
        %3340 = vmatprep.mubr.f32.mxu0 0.0
        %3341 = vmatmul.mubr.f32.gmra.mrb[0].mxu0 %v3140
        %v3342 = vpop.f32.mrb[0].mxu0
        %v3343 = vadd.f32 0.0, %v3342
        %v3344 = vpop.f32.mrb[0].mxu0
        %3345 = vmatprep.mubr.f32.mxu0 0.0
        %3346 = vmatmul.mubr.f32.gmra.mrb[0].mxu0 %v3143
        %v3347 = vpop.f32.mrb[0].mxu0
        %v3348 = vadd.f32 0.0, %v3347
        %v3349 = vpop.f32.mrb[0].mxu0
        %3350 = vmatprep.mubr.f32.mxu0 0.0
        %3351 = vmatmul.mubr.f32.gmra.mrb[0].mxu0 %v3146
        %v3352 = vpop.f32.mrb[0].mxu0
        %v3353 = vadd.f32 0.0, %v3352
        %v3354 = vpop.f32.mrb[0].mxu0
        %3355 = vmatprep.mubr.f32.mxu0 0.0
        %3356 = vmatmul.mubr.f32.gmra.mrb[0].mxu0 %v3149
        %v3357 = vpop.f32.mrb[0].mxu0
        %v3358 = vadd.f32 0.0, %v3357
        %v3359 = vpop.f32.mrb[0].mxu0
        %3360 = vmatprep.mubr.f32.mxu0 0.0
        %3361 = vmatmul.mubr.f32.gmra.mrb[0].mxu0 %v3152
        %v3362 = vpop.f32.mrb[0].mxu0
        %v3363 = vadd.f32 0.0, %v3362
        %v3364 = vpop.f32.mrb[0].mxu0
        %3365 = vmatprep.mubr.f32.mxu0 0.0
        %3366 = vmatmul.mubr.f32.gmra.mrb[0].mxu0 %v3155
        %v3367 = vpop.f32.mrb[0].mxu0
        %v3368 = vadd.f32 0.0, %v3367
        %v3369 = vpop.f32.mrb[0].mxu0
        %3370 = vmatprep.mubr.f32.mxu0 0.0
        %3371 = vmatmul.mubr.f32.gmra.mrb[0].mxu0 %v3158
        %v3372 = vpop.f32.mrb[0].mxu0
        %v3373 = vadd.f32 0.0, %v3372
        %v3374 = vpop.f32.mrb[0].mxu0
        %3375 = vmatprep.mubr.f32.mxu0 0.0
        %3376 = vmatmul.mubr.f32.gmra.mrb[0].mxu0 %v3161
        %v3377 = vpop.f32.mrb[0].mxu0
        %v3378 = vadd.f32 0.0, %v3377
        %v3379 = vpop.f32.mrb[0].mxu0
        %3380 = vmatprep.mubr.f32.mxu0 0.0
        %3381 = vmatmul.mubr.f32.gmra.mrb[0].mxu0 %v3164
        %v3382 = vpop.f32.mrb[0].mxu0
        %v3383 = vadd.f32 0.0, %v3382
        %v3384 = vpop.f32.mrb[0].mxu0
        %3385 = vmatprep.mubr.f32.mxu0 0.0
        %3386 = vmatmul.mubr.f32.gmra.mrb[0].mxu0 %v3167
        %v3387 = vpop.f32.mrb[0].mxu0
        %v3388 = vadd.f32 0.0, %v3387
        %v3389 = vpop.f32.mrb[0].mxu0
        %3390 = vmatprep.mubr.f32.mxu0 0.0
        %3391 = vmatmul.mubr.f32.gmra.mrb[0].mxu0 %v3170
        %v3392 = vpop.f32.mrb[0].mxu0
        %v3393 = vadd.f32 0.0, %v3392
        %v3394 = vpop.f32.mrb[0].mxu0
        %3395 = vmatprep.mubr.f32.mxu0 0.0
        %3396 = vmatmul.mubr.f32.gmra.mrb[0].mxu0 %v3173
        %v3397 = vpop.f32.mrb[0].mxu0
        %v3398 = vadd.f32 0.0, %v3397
        %v3399 = vpop.f32.mrb[0].mxu0
        %3400 = vmatprep.mubr.f32.mxu0 0.0
        %3401 = vmatmul.mubr.f32.gmra.mrb[0].mxu0 %v3176
        %v3402 = vpop.f32.mrb[0].mxu0
        %v3403 = vadd.f32 0.0, %v3402
        %v3404 = vpop.f32.mrb[0].mxu0
        %3405 = vdwg.mxu0
        %v3406 = vadd.f32 %v3015, %v3248
        %v3407 = vadd.f32 %v3016, %v3253
        %v3408 = vadd.f32 %v3017, %v3258
        %v3409 = vadd.f32 %v3018, %v3263
        %v3410 = vadd.f32 %v3019, %v3268
        %v3411 = vadd.f32 %v3020, %v3273
        %v3412 = vadd.f32 %v3021, %v3278
        %v3413 = vadd.f32 %v3022, %v3283
        %v3414 = vadd.f32 %v3023, %v3288
        %v3415 = vadd.f32 %v3024, %v3293
        %v3416 = vadd.f32 %v3025, %v3298
        %v3417 = vadd.f32 %v3026, %v3303
        %v3418 = vadd.f32 %v3027, %v3308
        %v3419 = vadd.f32 %v3028, %v3313
        %v3420 = vadd.f32 %v3029, %v3318
        %v3421 = vadd.f32 %v3030, %v3323
        %v3422 = vadd.f32 %v3031, %v3328
        %v3423 = vadd.f32 %v3032, %v3333
        %v3424 = vadd.f32 %v3033, %v3338
        %v3425 = vadd.f32 %v3034, %v3343
        %v3426 = vadd.f32 %v3035, %v3348
        %v3427 = vadd.f32 %v3036, %v3353
        %v3428 = vadd.f32 %v3037, %v3358
        %v3429 = vadd.f32 %v3038, %v3363
        %v3430 = vadd.f32 %v3039, %v3368
        %v3431 = vadd.f32 %v3040, %v3373
        %v3432 = vadd.f32 %v3041, %v3378
        %v3433 = vadd.f32 %v3042, %v3383
        %v3434 = vadd.f32 %v3043, %v3388
        %v3435 = vadd.f32 %v3044, %v3393
        %v3436 = vadd.f32 %v3045, %v3398
        %v3437 = vadd.f32 %v3046, %v3403
        %v3438 = vld [vmem:[%s3047 + $0x1] sm:$0xff]
        %v3439 = vld [vmem:[%s3047 + $0x9] sm:$0xff]
        %v3440 = vld [vmem:[%s3047 + $0x19] sm:$0xff]
        %v3441 = vld [vmem:[%s3047 + $0x21] sm:$0xff]
        %v3442 = vld [vmem:[%s3047 + $0x31] sm:$0xff]
        %v3443 = vld [vmem:[%s3047 + $0x39] sm:$0xff]
        %v3444 = vld [vmem:[%s3047 + $0x49] sm:$0xff]
        %v3445 = vld [vmem:[%s3047 + $0x51] sm:$0xff]
        %v3446 = vld [vmem:[%s3047 + $0x61] sm:$0xff]
        %v3447 = vld [vmem:[%s3047 + $0x69] sm:$0xff]
        %v3448 = vld [vmem:[%s3047 + $0x79] sm:$0xff]
        %v3449 = vld [vmem:[%s3047 + $0x81] sm:$0xff]
        %v3450 = vld [vmem:[%s3047 + $0x91] sm:$0xff]
        %v3451 = vld [vmem:[%s3047 + $0x99] sm:$0xff]
        %v3452 = vld [vmem:[%s3047 + $0xa9] sm:$0xff]
        %v3453 = vld [vmem:[%s3047 + $0xb1] sm:$0xff]
        %v3454 = vld [vmem:[%s3047 + $0xc1] sm:$0xff]
        %v3455 = vld [vmem:[%s3047 + $0xc9] sm:$0xff]
        %v3456 = vld [vmem:[%s3047 + $0xd9] sm:$0xff]
        %v3457 = vld [vmem:[%s3047 + $0xe1] sm:$0xff]
        %v3458 = vld [vmem:[%s3047 + $0xf1] sm:$0xff]
        %v3459 = vld [vmem:[%s3047 + $0xf9] sm:$0xff]
        %v3460 = vld [vmem:[%s3047 + $0x109] sm:$0xff]
        %v3461 = vld [vmem:[%s3047 + $0x111] sm:$0xff]
        %v3462 = vld [vmem:[%s3047 + $0x121] sm:$0xff]
        %v3463 = vld [vmem:[%s3047 + $0x129] sm:$0xff]
        %v3464 = vld [vmem:[%s3047 + $0x139] sm:$0xff]
        %v3465 = vld [vmem:[%s3047 + $0x141] sm:$0xff]
        %v3466 = vld [vmem:[%s3047 + $0x151] sm:$0xff]
        %v3467 = vld [vmem:[%s3047 + $0x159] sm:$0xff]
        %v3468 = vld [vmem:[%s3047 + $0x169] sm:$0xff]
        %v3469 = vld [vmem:[%s3047 + $0x171] sm:$0xff]
        %s3470 = scalar_lea.vmem %s2, 28
        %v3471 = vld [vmem:[%s3470] sm:$0xf]
        %v3473 = vsel %vm692, %v3438, 0
        %v3476 = vsel %vm692, %v3439, 0
        %v3479 = vsel %vm692, %v3440, 0
        %v3482 = vsel %vm692, %v3441, 0
        %v3485 = vsel %vm692, %v3442, 0
        %v3488 = vsel %vm692, %v3443, 0
        %v3491 = vsel %vm692, %v3444, 0
        %v3494 = vsel %vm692, %v3445, 0
        %v3497 = vsel %vm692, %v3446, 0
        %v3500 = vsel %vm692, %v3447, 0
        %v3503 = vsel %vm692, %v3448, 0
        %v3506 = vsel %vm692, %v3449, 0
        %v3509 = vsel %vm692, %v3450, 0
        %v3512 = vsel %vm692, %v3451, 0
        %v3515 = vsel %vm692, %v3452, 0
        %v3518 = vsel %vm692, %v3453, 0
        %v3521 = vsel %vm692, %v3454, 0
        %v3524 = vsel %vm692, %v3455, 0
        %v3527 = vsel %vm692, %v3456, 0
        %v3530 = vsel %vm692, %v3457, 0
        %v3533 = vsel %vm692, %v3458, 0
        %v3536 = vsel %vm692, %v3459, 0
        %v3539 = vsel %vm692, %v3460, 0
        %v3542 = vsel %vm692, %v3461, 0
        %v3545 = vsel %vm692, %v3462, 0
        %v3548 = vsel %vm692, %v3463, 0
        %v3551 = vsel %vm692, %v3464, 0
        %v3554 = vsel %vm692, %v3465, 0
        %v3557 = vsel %vm692, %v3466, 0
        %v3560 = vsel %vm692, %v3467, 0
        %v3563 = vsel %vm692, %v3468, 0
        %v3566 = vsel %vm692, %v3469, 0
        %v3569 = vsel %vm934, %v3471, 0
        %3571 = vmatprep.subr.mxu0 0.0
        %3572 = vmatpush1.msra.mxu0 %v3569
        %3573 = vmatprep.subr.mxu0 0.0
        %3574 = vmatpush1.msra.mxu0 0.0
        %3575 = vmatprep.subr.mxu0 0.0
        %3576 = vmatpush1.msra.mxu0 0.0
        %3577 = vmatprep.subr.mxu0 0.0
        %3578 = vmatpush1.msra.mxu0 0.0
        %3579 = vmatprep.subr.mxu0 0.0
        %3580 = vmatpush1.msra.mxu0 0.0
        %3581 = vmatprep.subr.mxu0 0.0
        %3582 = vmatpush1.msra.mxu0 0.0
        %3583 = vmatprep.subr.mxu0 0.0
        %3584 = vmatpush1.msra.mxu0 0.0
        %3585 = vmatprep.subr.mxu0 0.0
        %3586 = vmatpush1.msra.mxu0 0.0
        %3587 = vmatprep.subr.mxu0 0.0
        %3588 = vmatpush1.msra.mxu0 0.0
        %3589 = vmatprep.subr.mxu0 0.0
        %3590 = vmatpush1.msra.mxu0 0.0
        %3591 = vmatprep.subr.mxu0 0.0
        %3592 = vmatpush1.msra.mxu0 0.0
        %3593 = vmatprep.subr.mxu0 0.0
        %3594 = vmatpush1.msra.mxu0 0.0
        %3595 = vmatprep.subr.mxu0 0.0
        %3596 = vmatpush1.msra.mxu0 0.0
        %3597 = vmatprep.subr.mxu0 0.0
        %3598 = vmatpush1.msra.mxu0 0.0
        %3599 = vmatprep.subr.mxu0 0.0
        %3600 = vmatpush1.msra.mxu0 0.0
        %3601 = vmatprep.subr.mxu0 0.0
        %3602 = vmatpush1.msra.mxu0 0.0
        %3603 = vmatprep.subr.mxu0 0.0
        %3604 = vmatpush1.msra.mxu0 0.0
        %3605 = vmatprep.subr.mxu0 0.0
        %3606 = vmatpush1.msra.mxu0 0.0
        %3607 = vmatprep.subr.mxu0 0.0
        %3608 = vmatpush1.msra.mxu0 0.0
        %3609 = vmatprep.subr.mxu0 0.0
        %3610 = vmatpush1.msra.mxu0 0.0
        %3611 = vmatprep.subr.mxu0 0.0
        %3612 = vmatpush1.msra.mxu0 0.0
        %3613 = vmatprep.subr.mxu0 0.0
        %3614 = vmatpush1.msra.mxu0 0.0
        %3615 = vmatprep.subr.mxu0 0.0
        %3616 = vmatpush1.msra.mxu0 0.0
        %3617 = vmatprep.subr.mxu0 0.0
        %3618 = vmatpush1.msra.mxu0 0.0
        %3619 = vmatprep.subr.mxu0 0.0
        %3620 = vmatpush1.msra.mxu0 0.0
        %3621 = vmatprep.subr.mxu0 0.0
        %3622 = vmatpush1.msra.mxu0 0.0
        %3623 = vmatprep.subr.mxu0 0.0
        %3624 = vmatpush1.msra.mxu0 0.0
        %3625 = vmatprep.subr.mxu0 0.0
        %3626 = vmatpush1.msra.mxu0 0.0
        %3627 = vmatprep.subr.mxu0 0.0
        %3628 = vmatpush1.msra.mxu0 0.0
        %3629 = vmatprep.subr.mxu0 0.0
        %3630 = vmatpush1.msra.mxu0 0.0
        %3631 = vmatprep.subr.mxu0 0.0
        %3632 = vmatpush1.msra.mxu0 0.0
        %3633 = vmatprep.subr.mxu0 0.0
        %3634 = vmatpush1.msra.mxu0 0.0
        %3635 = vmatprep.mubr.f32.mxu0 0.0
        %3636 = vmatmul.mubr.f32.gmra.mrb[0].mxu0 %v3473
        %v3637 = vpop.f32.mrb[0].mxu0
        %v3638 = vadd.f32 0.0, %v3637
        %v3639 = vpop.f32.mrb[0].mxu0
        %3640 = vmatprep.mubr.f32.mxu0 0.0
        %3641 = vmatmul.mubr.f32.gmra.mrb[0].mxu0 %v3476
        %v3642 = vpop.f32.mrb[0].mxu0
        %v3643 = vadd.f32 0.0, %v3642
        %v3644 = vpop.f32.mrb[0].mxu0
        %3645 = vmatprep.mubr.f32.mxu0 0.0
        %3646 = vmatmul.mubr.f32.gmra.mrb[0].mxu0 %v3479
        %v3647 = vpop.f32.mrb[0].mxu0
        %v3648 = vadd.f32 0.0, %v3647
        %v3649 = vpop.f32.mrb[0].mxu0
        %3650 = vmatprep.mubr.f32.mxu0 0.0
        %3651 = vmatmul.mubr.f32.gmra.mrb[0].mxu0 %v3482
        %v3652 = vpop.f32.mrb[0].mxu0
        %v3653 = vadd.f32 0.0, %v3652
        %v3654 = vpop.f32.mrb[0].mxu0
        %3655 = vmatprep.mubr.f32.mxu0 0.0
        %3656 = vmatmul.mubr.f32.gmra.mrb[0].mxu0 %v3485
        %v3657 = vpop.f32.mrb[0].mxu0
        %v3658 = vadd.f32 0.0, %v3657
        %v3659 = vpop.f32.mrb[0].mxu0
        %3660 = vmatprep.mubr.f32.mxu0 0.0
        %3661 = vmatmul.mubr.f32.gmra.mrb[0].mxu0 %v3488
        %v3662 = vpop.f32.mrb[0].mxu0
        %v3663 = vadd.f32 0.0, %v3662
        %v3664 = vpop.f32.mrb[0].mxu0
        %3665 = vmatprep.mubr.f32.mxu0 0.0
        %3666 = vmatmul.mubr.f32.gmra.mrb[0].mxu0 %v3491
        %v3667 = vpop.f32.mrb[0].mxu0
        %v3668 = vadd.f32 0.0, %v3667
        %v3669 = vpop.f32.mrb[0].mxu0
        %3670 = vmatprep.mubr.f32.mxu0 0.0
        %3671 = vmatmul.mubr.f32.gmra.mrb[0].mxu0 %v3494
        %v3672 = vpop.f32.mrb[0].mxu0
        %v3673 = vadd.f32 0.0, %v3672
        %v3674 = vpop.f32.mrb[0].mxu0
        %3675 = vmatprep.mubr.f32.mxu0 0.0
        %3676 = vmatmul.mubr.f32.gmra.mrb[0].mxu0 %v3497
        %v3677 = vpop.f32.mrb[0].mxu0
        %v3678 = vadd.f32 0.0, %v3677
        %v3679 = vpop.f32.mrb[0].mxu0
        %3680 = vmatprep.mubr.f32.mxu0 0.0
        %3681 = vmatmul.mubr.f32.gmra.mrb[0].mxu0 %v3500
        %v3682 = vpop.f32.mrb[0].mxu0
        %v3683 = vadd.f32 0.0, %v3682
        %v3684 = vpop.f32.mrb[0].mxu0
        %3685 = vmatprep.mubr.f32.mxu0 0.0
        %3686 = vmatmul.mubr.f32.gmra.mrb[0].mxu0 %v3503
        %v3687 = vpop.f32.mrb[0].mxu0
        %v3688 = vadd.f32 0.0, %v3687
        %v3689 = vpop.f32.mrb[0].mxu0
        %3690 = vmatprep.mubr.f32.mxu0 0.0
        %3691 = vmatmul.mubr.f32.gmra.mrb[0].mxu0 %v3506
        %v3692 = vpop.f32.mrb[0].mxu0
        %v3693 = vadd.f32 0.0, %v3692
        %v3694 = vpop.f32.mrb[0].mxu0
        %3695 = vmatprep.mubr.f32.mxu0 0.0
        %3696 = vmatmul.mubr.f32.gmra.mrb[0].mxu0 %v3509
        %v3697 = vpop.f32.mrb[0].mxu0
        %v3698 = vadd.f32 0.0, %v3697
        %v3699 = vpop.f32.mrb[0].mxu0
        %3700 = vmatprep.mubr.f32.mxu0 0.0
        %3701 = vmatmul.mubr.f32.gmra.mrb[0].mxu0 %v3512
        %v3702 = vpop.f32.mrb[0].mxu0
        %v3703 = vadd.f32 0.0, %v3702
        %v3704 = vpop.f32.mrb[0].mxu0
        %3705 = vmatprep.mubr.f32.mxu0 0.0
        %3706 = vmatmul.mubr.f32.gmra.mrb[0].mxu0 %v3515
        %v3707 = vpop.f32.mrb[0].mxu0
        %v3708 = vadd.f32 0.0, %v3707
        %v3709 = vpop.f32.mrb[0].mxu0
        %3710 = vmatprep.mubr.f32.mxu0 0.0
        %3711 = vmatmul.mubr.f32.gmra.mrb[0].mxu0 %v3518
        %v3712 = vpop.f32.mrb[0].mxu0
        %v3713 = vadd.f32 0.0, %v3712
        %v3714 = vpop.f32.mrb[0].mxu0
        %3715 = vmatprep.mubr.f32.mxu0 0.0
        %3716 = vmatmul.mubr.f32.gmra.mrb[0].mxu0 %v3521
        %v3717 = vpop.f32.mrb[0].mxu0
        %v3718 = vadd.f32 0.0, %v3717
        %v3719 = vpop.f32.mrb[0].mxu0
        %3720 = vmatprep.mubr.f32.mxu0 0.0
        %3721 = vmatmul.mubr.f32.gmra.mrb[0].mxu0 %v3524
        %v3722 = vpop.f32.mrb[0].mxu0
        %v3723 = vadd.f32 0.0, %v3722
        %v3724 = vpop.f32.mrb[0].mxu0
        %3725 = vmatprep.mubr.f32.mxu0 0.0
        %3726 = vmatmul.mubr.f32.gmra.mrb[0].mxu0 %v3527
        %v3727 = vpop.f32.mrb[0].mxu0
        %v3728 = vadd.f32 0.0, %v3727
        %v3729 = vpop.f32.mrb[0].mxu0
        %3730 = vmatprep.mubr.f32.mxu0 0.0
        %3731 = vmatmul.mubr.f32.gmra.mrb[0].mxu0 %v3530
        %v3732 = vpop.f32.mrb[0].mxu0
        %v3733 = vadd.f32 0.0, %v3732
        %v3734 = vpop.f32.mrb[0].mxu0
        %3735 = vmatprep.mubr.f32.mxu0 0.0
        %3736 = vmatmul.mubr.f32.gmra.mrb[0].mxu0 %v3533
        %v3737 = vpop.f32.mrb[0].mxu0
        %v3738 = vadd.f32 0.0, %v3737
        %v3739 = vpop.f32.mrb[0].mxu0
        %3740 = vmatprep.mubr.f32.mxu0 0.0
        %3741 = vmatmul.mubr.f32.gmra.mrb[0].mxu0 %v3536
        %v3742 = vpop.f32.mrb[0].mxu0
        %v3743 = vadd.f32 0.0, %v3742
        %v3744 = vpop.f32.mrb[0].mxu0
        %3745 = vmatprep.mubr.f32.mxu0 0.0
        %3746 = vmatmul.mubr.f32.gmra.mrb[0].mxu0 %v3539
        %v3747 = vpop.f32.mrb[0].mxu0
        %v3748 = vadd.f32 0.0, %v3747
        %v3749 = vpop.f32.mrb[0].mxu0
        %3750 = vmatprep.mubr.f32.mxu0 0.0
        %3751 = vmatmul.mubr.f32.gmra.mrb[0].mxu0 %v3542
        %v3752 = vpop.f32.mrb[0].mxu0
        %v3753 = vadd.f32 0.0, %v3752
        %v3754 = vpop.f32.mrb[0].mxu0
        %3755 = vmatprep.mubr.f32.mxu0 0.0
        %3756 = vmatmul.mubr.f32.gmra.mrb[0].mxu0 %v3545
        %v3757 = vpop.f32.mrb[0].mxu0
        %v3758 = vadd.f32 0.0, %v3757
        %v3759 = vpop.f32.mrb[0].mxu0
        %3760 = vmatprep.mubr.f32.mxu0 0.0
        %3761 = vmatmul.mubr.f32.gmra.mrb[0].mxu0 %v3548
        %v3762 = vpop.f32.mrb[0].mxu0
        %v3763 = vadd.f32 0.0, %v3762
        %v3764 = vpop.f32.mrb[0].mxu0
        %3765 = vmatprep.mubr.f32.mxu0 0.0
        %3766 = vmatmul.mubr.f32.gmra.mrb[0].mxu0 %v3551
        %v3767 = vpop.f32.mrb[0].mxu0
        %v3768 = vadd.f32 0.0, %v3767
        %v3769 = vpop.f32.mrb[0].mxu0
        %3770 = vmatprep.mubr.f32.mxu0 0.0
        %3771 = vmatmul.mubr.f32.gmra.mrb[0].mxu0 %v3554
        %v3772 = vpop.f32.mrb[0].mxu0
        %v3773 = vadd.f32 0.0, %v3772
        %v3774 = vpop.f32.mrb[0].mxu0
        %3775 = vmatprep.mubr.f32.mxu0 0.0
        %3776 = vmatmul.mubr.f32.gmra.mrb[0].mxu0 %v3557
        %v3777 = vpop.f32.mrb[0].mxu0
        %v3778 = vadd.f32 0.0, %v3777
        %v3779 = vpop.f32.mrb[0].mxu0
        %3780 = vmatprep.mubr.f32.mxu0 0.0
        %3781 = vmatmul.mubr.f32.gmra.mrb[0].mxu0 %v3560
        %v3782 = vpop.f32.mrb[0].mxu0
        %v3783 = vadd.f32 0.0, %v3782
        %v3784 = vpop.f32.mrb[0].mxu0
        %3785 = vmatprep.mubr.f32.mxu0 0.0
        %3786 = vmatmul.mubr.f32.gmra.mrb[0].mxu0 %v3563
        %v3787 = vpop.f32.mrb[0].mxu0
        %v3788 = vadd.f32 0.0, %v3787
        %v3789 = vpop.f32.mrb[0].mxu0
        %3790 = vmatprep.mubr.f32.mxu0 0.0
        %3791 = vmatmul.mubr.f32.gmra.mrb[0].mxu0 %v3566
        %v3792 = vpop.f32.mrb[0].mxu0
        %v3793 = vadd.f32 0.0, %v3792
        %v3794 = vpop.f32.mrb[0].mxu0
        %3795 = vdwg.mxu0
        %v3796 = vadd.f32 %v3406, %v3638
        %v3797 = vadd.f32 %v3407, %v3643
        %v3798 = vadd.f32 %v3408, %v3648
        %v3799 = vadd.f32 %v3409, %v3653
        %v3800 = vadd.f32 %v3410, %v3658
        %v3801 = vadd.f32 %v3411, %v3663
        %v3802 = vadd.f32 %v3412, %v3668
        %v3803 = vadd.f32 %v3413, %v3673
        %v3804 = vadd.f32 %v3414, %v3678
        %v3805 = vadd.f32 %v3415, %v3683
        %v3806 = vadd.f32 %v3416, %v3688
        %v3807 = vadd.f32 %v3417, %v3693
        %v3808 = vadd.f32 %v3418, %v3698
        %v3809 = vadd.f32 %v3419, %v3703
        %v3810 = vadd.f32 %v3420, %v3708
        %v3811 = vadd.f32 %v3421, %v3713
        %v3812 = vadd.f32 %v3422, %v3718
        %v3813 = vadd.f32 %v3423, %v3723
        %v3814 = vadd.f32 %v3424, %v3728
        %v3815 = vadd.f32 %v3425, %v3733
        %v3816 = vadd.f32 %v3426, %v3738
        %v3817 = vadd.f32 %v3427, %v3743
        %v3818 = vadd.f32 %v3428, %v3748
        %v3819 = vadd.f32 %v3429, %v3753
        %v3820 = vadd.f32 %v3430, %v3758
        %v3821 = vadd.f32 %v3431, %v3763
        %v3822 = vadd.f32 %v3432, %v3768
        %v3823 = vadd.f32 %v3433, %v3773
        %v3824 = vadd.f32 %v3434, %v3778
        %v3825 = vadd.f32 %v3435, %v3783
        %v3826 = vadd.f32 %v3436, %v3788
        %v3827 = vadd.f32 %v3437, %v3793
        %v3828 = vld [vmem:[%s3047 + $0x2] sm:$0xff]
        %v3829 = vld [vmem:[%s3047 + $0xa] sm:$0xff]
        %v3830 = vld [vmem:[%s3047 + $0x1a] sm:$0xff]
        %v3831 = vld [vmem:[%s3047 + $0x22] sm:$0xff]
        %v3832 = vld [vmem:[%s3047 + $0x32] sm:$0xff]
        %v3833 = vld [vmem:[%s3047 + $0x3a] sm:$0xff]
        %v3834 = vld [vmem:[%s3047 + $0x4a] sm:$0xff]
        %v3835 = vld [vmem:[%s3047 + $0x52] sm:$0xff]
        %v3836 = vld [vmem:[%s3047 + $0x62] sm:$0xff]
        %v3837 = vld [vmem:[%s3047 + $0x6a] sm:$0xff]
        %v3838 = vld [vmem:[%s3047 + $0x7a] sm:$0xff]
        %v3839 = vld [vmem:[%s3047 + $0x82] sm:$0xff]
        %v3840 = vld [vmem:[%s3047 + $0x92] sm:$0xff]
        %v3841 = vld [vmem:[%s3047 + $0x9a] sm:$0xff]
        %v3842 = vld [vmem:[%s3047 + $0xaa] sm:$0xff]
        %v3843 = vld [vmem:[%s3047 + $0xb2] sm:$0xff]
        %v3844 = vld [vmem:[%s3047 + $0xc2] sm:$0xff]
        %v3845 = vld [vmem:[%s3047 + $0xca] sm:$0xff]
        %v3846 = vld [vmem:[%s3047 + $0xda] sm:$0xff]
        %v3847 = vld [vmem:[%s3047 + $0xe2] sm:$0xff]
        %v3848 = vld [vmem:[%s3047 + $0xf2] sm:$0xff]
        %v3849 = vld [vmem:[%s3047 + $0xfa] sm:$0xff]
        %v3850 = vld [vmem:[%s3047 + $0x10a] sm:$0xff]
        %v3851 = vld [vmem:[%s3047 + $0x112] sm:$0xff]
        %v3852 = vld [vmem:[%s3047 + $0x122] sm:$0xff]
        %v3853 = vld [vmem:[%s3047 + $0x12a] sm:$0xff]
        %v3854 = vld [vmem:[%s3047 + $0x13a] sm:$0xff]
        %v3855 = vld [vmem:[%s3047 + $0x142] sm:$0xff]
        %v3856 = vld [vmem:[%s3047 + $0x152] sm:$0xff]
        %v3857 = vld [vmem:[%s3047 + $0x15a] sm:$0xff]
        %v3858 = vld [vmem:[%s3047 + $0x16a] sm:$0xff]
        %v3859 = vld [vmem:[%s3047 + $0x172] sm:$0xff]
        %s3860 = scalar_lea.vmem %s2, 32
        %v3861 = vld [vmem:[%s3860] sm:$0xf]
        %v3863 = vsel %vm692, %v3828, 0
        %v3866 = vsel %vm692, %v3829, 0
        %v3869 = vsel %vm692, %v3830, 0
        %v3872 = vsel %vm692, %v3831, 0
        %v3875 = vsel %vm692, %v3832, 0
        %v3878 = vsel %vm692, %v3833, 0
        %v3881 = vsel %vm692, %v3834, 0
        %v3884 = vsel %vm692, %v3835, 0
        %v3887 = vsel %vm692, %v3836, 0
        %v3890 = vsel %vm692, %v3837, 0
        %v3893 = vsel %vm692, %v3838, 0
        %v3896 = vsel %vm692, %v3839, 0
        %v3899 = vsel %vm692, %v3840, 0
        %v3902 = vsel %vm692, %v3841, 0
        %v3905 = vsel %vm692, %v3842, 0
        %v3908 = vsel %vm692, %v3843, 0
        %v3911 = vsel %vm692, %v3844, 0
        %v3914 = vsel %vm692, %v3845, 0
        %v3917 = vsel %vm692, %v3846, 0
        %v3920 = vsel %vm692, %v3847, 0
        %v3923 = vsel %vm692, %v3848, 0
        %v3926 = vsel %vm692, %v3849, 0
        %v3929 = vsel %vm692, %v3850, 0
        %v3932 = vsel %vm692, %v3851, 0
        %v3935 = vsel %vm692, %v3852, 0
        %v3938 = vsel %vm692, %v3853, 0
        %v3941 = vsel %vm692, %v3854, 0
        %v3944 = vsel %vm692, %v3855, 0
        %v3947 = vsel %vm692, %v3856, 0
        %v3950 = vsel %vm692, %v3857, 0
        %v3953 = vsel %vm692, %v3858, 0
        %v3956 = vsel %vm692, %v3859, 0
        %v3959 = vsel %vm934, %v3861, 0
        %3961 = vmatprep.subr.mxu0 0.0
        %3962 = vmatpush1.msra.mxu0 %v3959
        %3963 = vmatprep.subr.mxu0 0.0
        %3964 = vmatpush1.msra.mxu0 0.0
        %3965 = vmatprep.subr.mxu0 0.0
        %3966 = vmatpush1.msra.mxu0 0.0
        %3967 = vmatprep.subr.mxu0 0.0
        %3968 = vmatpush1.msra.mxu0 0.0
        %3969 = vmatprep.subr.mxu0 0.0
        %3970 = vmatpush1.msra.mxu0 0.0
        %3971 = vmatprep.subr.mxu0 0.0
        %3972 = vmatpush1.msra.mxu0 0.0
        %3973 = vmatprep.subr.mxu0 0.0
        %3974 = vmatpush1.msra.mxu0 0.0
        %3975 = vmatprep.subr.mxu0 0.0
        %3976 = vmatpush1.msra.mxu0 0.0
        %3977 = vmatprep.subr.mxu0 0.0
        %3978 = vmatpush1.msra.mxu0 0.0
        %3979 = vmatprep.subr.mxu0 0.0
        %3980 = vmatpush1.msra.mxu0 0.0
        %3981 = vmatprep.subr.mxu0 0.0
        %3982 = vmatpush1.msra.mxu0 0.0
        %3983 = vmatprep.subr.mxu0 0.0
        %3984 = vmatpush1.msra.mxu0 0.0
        %3985 = vmatprep.subr.mxu0 0.0
        %3986 = vmatpush1.msra.mxu0 0.0
        %3987 = vmatprep.subr.mxu0 0.0
        %3988 = vmatpush1.msra.mxu0 0.0
        %3989 = vmatprep.subr.mxu0 0.0
        %3990 = vmatpush1.msra.mxu0 0.0
        %3991 = vmatprep.subr.mxu0 0.0
        %3992 = vmatpush1.msra.mxu0 0.0
        %3993 = vmatprep.subr.mxu0 0.0
        %3994 = vmatpush1.msra.mxu0 0.0
        %3995 = vmatprep.subr.mxu0 0.0
        %3996 = vmatpush1.msra.mxu0 0.0
        %3997 = vmatprep.subr.mxu0 0.0
        %3998 = vmatpush1.msra.mxu0 0.0
        %3999 = vmatprep.subr.mxu0 0.0
        %4000 = vmatpush1.msra.mxu0 0.0
        %4001 = vmatprep.subr.mxu0 0.0
        %4002 = vmatpush1.msra.mxu0 0.0
        %4003 = vmatprep.subr.mxu0 0.0
        %4004 = vmatpush1.msra.mxu0 0.0
        %4005 = vmatprep.subr.mxu0 0.0
        %4006 = vmatpush1.msra.mxu0 0.0
        %4007 = vmatprep.subr.mxu0 0.0
        %4008 = vmatpush1.msra.mxu0 0.0
        %4009 = vmatprep.subr.mxu0 0.0
        %4010 = vmatpush1.msra.mxu0 0.0
        %4011 = vmatprep.subr.mxu0 0.0
        %4012 = vmatpush1.msra.mxu0 0.0
        %4013 = vmatprep.subr.mxu0 0.0
        %4014 = vmatpush1.msra.mxu0 0.0
        %4015 = vmatprep.subr.mxu0 0.0
        %4016 = vmatpush1.msra.mxu0 0.0
        %4017 = vmatprep.subr.mxu0 0.0
        %4018 = vmatpush1.msra.mxu0 0.0
        %4019 = vmatprep.subr.mxu0 0.0
        %4020 = vmatpush1.msra.mxu0 0.0
        %4021 = vmatprep.subr.mxu0 0.0
        %4022 = vmatpush1.msra.mxu0 0.0
        %4023 = vmatprep.subr.mxu0 0.0
        %4024 = vmatpush1.msra.mxu0 0.0
        %4025 = vmatprep.mubr.f32.mxu0 0.0
        %4026 = vmatmul.mubr.f32.gmra.mrb[0].mxu0 %v3863
        %v4027 = vpop.f32.mrb[0].mxu0
        %v4028 = vadd.f32 0.0, %v4027
        %v4029 = vpop.f32.mrb[0].mxu0
        %4030 = vmatprep.mubr.f32.mxu0 0.0
        %4031 = vmatmul.mubr.f32.gmra.mrb[0].mxu0 %v3866
        %v4032 = vpop.f32.mrb[0].mxu0
        %v4033 = vadd.f32 0.0, %v4032
        %v4034 = vpop.f32.mrb[0].mxu0
        %4035 = vmatprep.mubr.f32.mxu0 0.0
        %4036 = vmatmul.mubr.f32.gmra.mrb[0].mxu0 %v3869
        %v4037 = vpop.f32.mrb[0].mxu0
        %v4038 = vadd.f32 0.0, %v4037
        %v4039 = vpop.f32.mrb[0].mxu0
        %4040 = vmatprep.mubr.f32.mxu0 0.0
        %4041 = vmatmul.mubr.f32.gmra.mrb[0].mxu0 %v3872
        %v4042 = vpop.f32.mrb[0].mxu0
        %v4043 = vadd.f32 0.0, %v4042
        %v4044 = vpop.f32.mrb[0].mxu0
        %4045 = vmatprep.mubr.f32.mxu0 0.0
        %4046 = vmatmul.mubr.f32.gmra.mrb[0].mxu0 %v3875
        %v4047 = vpop.f32.mrb[0].mxu0
        %v4048 = vadd.f32 0.0, %v4047
        %v4049 = vpop.f32.mrb[0].mxu0
        %4050 = vmatprep.mubr.f32.mxu0 0.0
        %4051 = vmatmul.mubr.f32.gmra.mrb[0].mxu0 %v3878
        %v4052 = vpop.f32.mrb[0].mxu0
        %v4053 = vadd.f32 0.0, %v4052
        %v4054 = vpop.f32.mrb[0].mxu0
        %4055 = vmatprep.mubr.f32.mxu0 0.0
        %4056 = vmatmul.mubr.f32.gmra.mrb[0].mxu0 %v3881
        %v4057 = vpop.f32.mrb[0].mxu0
        %v4058 = vadd.f32 0.0, %v4057
        %v4059 = vpop.f32.mrb[0].mxu0
        %4060 = vmatprep.mubr.f32.mxu0 0.0
        %4061 = vmatmul.mubr.f32.gmra.mrb[0].mxu0 %v3884
        %v4062 = vpop.f32.mrb[0].mxu0
        %v4063 = vadd.f32 0.0, %v4062
        %v4064 = vpop.f32.mrb[0].mxu0
        %4065 = vmatprep.mubr.f32.mxu0 0.0
        %4066 = vmatmul.mubr.f32.gmra.mrb[0].mxu0 %v3887
        %v4067 = vpop.f32.mrb[0].mxu0
        %v4068 = vadd.f32 0.0, %v4067
        %v4069 = vpop.f32.mrb[0].mxu0
        %4070 = vmatprep.mubr.f32.mxu0 0.0
        %4071 = vmatmul.mubr.f32.gmra.mrb[0].mxu0 %v3890
        %v4072 = vpop.f32.mrb[0].mxu0
        %v4073 = vadd.f32 0.0, %v4072
        %v4074 = vpop.f32.mrb[0].mxu0
        %4075 = vmatprep.mubr.f32.mxu0 0.0
        %4076 = vmatmul.mubr.f32.gmra.mrb[0].mxu0 %v3893
        %v4077 = vpop.f32.mrb[0].mxu0
        %v4078 = vadd.f32 0.0, %v4077
        %v4079 = vpop.f32.mrb[0].mxu0
        %4080 = vmatprep.mubr.f32.mxu0 0.0
        %4081 = vmatmul.mubr.f32.gmra.mrb[0].mxu0 %v3896
        %v4082 = vpop.f32.mrb[0].mxu0
        %v4083 = vadd.f32 0.0, %v4082
        %v4084 = vpop.f32.mrb[0].mxu0
        %4085 = vmatprep.mubr.f32.mxu0 0.0
        %4086 = vmatmul.mubr.f32.gmra.mrb[0].mxu0 %v3899
        %v4087 = vpop.f32.mrb[0].mxu0
        %v4088 = vadd.f32 0.0, %v4087
        %v4089 = vpop.f32.mrb[0].mxu0
        %4090 = vmatprep.mubr.f32.mxu0 0.0
        %4091 = vmatmul.mubr.f32.gmra.mrb[0].mxu0 %v3902
        %v4092 = vpop.f32.mrb[0].mxu0
        %v4093 = vadd.f32 0.0, %v4092
        %v4094 = vpop.f32.mrb[0].mxu0
        %4095 = vmatprep.mubr.f32.mxu0 0.0
        %4096 = vmatmul.mubr.f32.gmra.mrb[0].mxu0 %v3905
        %v4097 = vpop.f32.mrb[0].mxu0
        %v4098 = vadd.f32 0.0, %v4097
        %v4099 = vpop.f32.mrb[0].mxu0
        %4100 = vmatprep.mubr.f32.mxu0 0.0
        %4101 = vmatmul.mubr.f32.gmra.mrb[0].mxu0 %v3908
        %v4102 = vpop.f32.mrb[0].mxu0
        %v4103 = vadd.f32 0.0, %v4102
        %v4104 = vpop.f32.mrb[0].mxu0
        %4105 = vmatprep.mubr.f32.mxu0 0.0
        %4106 = vmatmul.mubr.f32.gmra.mrb[0].mxu0 %v3911
        %v4107 = vpop.f32.mrb[0].mxu0
        %v4108 = vadd.f32 0.0, %v4107
        %v4109 = vpop.f32.mrb[0].mxu0
        %4110 = vmatprep.mubr.f32.mxu0 0.0
        %4111 = vmatmul.mubr.f32.gmra.mrb[0].mxu0 %v3914
        %v4112 = vpop.f32.mrb[0].mxu0
        %v4113 = vadd.f32 0.0, %v4112
        %v4114 = vpop.f32.mrb[0].mxu0
        %4115 = vmatprep.mubr.f32.mxu0 0.0
        %4116 = vmatmul.mubr.f32.gmra.mrb[0].mxu0 %v3917
        %v4117 = vpop.f32.mrb[0].mxu0
        %v4118 = vadd.f32 0.0, %v4117
        %v4119 = vpop.f32.mrb[0].mxu0
        %4120 = vmatprep.mubr.f32.mxu0 0.0
        %4121 = vmatmul.mubr.f32.gmra.mrb[0].mxu0 %v3920
        %v4122 = vpop.f32.mrb[0].mxu0
        %v4123 = vadd.f32 0.0, %v4122
        %v4124 = vpop.f32.mrb[0].mxu0
        %4125 = vmatprep.mubr.f32.mxu0 0.0
        %4126 = vmatmul.mubr.f32.gmra.mrb[0].mxu0 %v3923
        %v4127 = vpop.f32.mrb[0].mxu0
        %v4128 = vadd.f32 0.0, %v4127
        %v4129 = vpop.f32.mrb[0].mxu0
        %4130 = vmatprep.mubr.f32.mxu0 0.0
        %4131 = vmatmul.mubr.f32.gmra.mrb[0].mxu0 %v3926
        %v4132 = vpop.f32.mrb[0].mxu0
        %v4133 = vadd.f32 0.0, %v4132
        %v4134 = vpop.f32.mrb[0].mxu0
        %4135 = vmatprep.mubr.f32.mxu0 0.0
        %4136 = vmatmul.mubr.f32.gmra.mrb[0].mxu0 %v3929
        %v4137 = vpop.f32.mrb[0].mxu0
        %v4138 = vadd.f32 0.0, %v4137
        %v4139 = vpop.f32.mrb[0].mxu0
        %4140 = vmatprep.mubr.f32.mxu0 0.0
        %4141 = vmatmul.mubr.f32.gmra.mrb[0].mxu0 %v3932
        %v4142 = vpop.f32.mrb[0].mxu0
        %v4143 = vadd.f32 0.0, %v4142
        %v4144 = vpop.f32.mrb[0].mxu0
        %4145 = vmatprep.mubr.f32.mxu0 0.0
        %4146 = vmatmul.mubr.f32.gmra.mrb[0].mxu0 %v3935
        %v4147 = vpop.f32.mrb[0].mxu0
        %v4148 = vadd.f32 0.0, %v4147
        %v4149 = vpop.f32.mrb[0].mxu0
        %4150 = vmatprep.mubr.f32.mxu0 0.0
        %4151 = vmatmul.mubr.f32.gmra.mrb[0].mxu0 %v3938
        %v4152 = vpop.f32.mrb[0].mxu0
        %v4153 = vadd.f32 0.0, %v4152
        %v4154 = vpop.f32.mrb[0].mxu0
        %4155 = vmatprep.mubr.f32.mxu0 0.0
        %4156 = vmatmul.mubr.f32.gmra.mrb[0].mxu0 %v3941
        %v4157 = vpop.f32.mrb[0].mxu0
        %v4158 = vadd.f32 0.0, %v4157
        %v4159 = vpop.f32.mrb[0].mxu0
        %4160 = vmatprep.mubr.f32.mxu0 0.0
        %4161 = vmatmul.mubr.f32.gmra.mrb[0].mxu0 %v3944
        %v4162 = vpop.f32.mrb[0].mxu0
        %v4163 = vadd.f32 0.0, %v4162
        %v4164 = vpop.f32.mrb[0].mxu0
        %4165 = vmatprep.mubr.f32.mxu0 0.0
        %4166 = vmatmul.mubr.f32.gmra.mrb[0].mxu0 %v3947
        %v4167 = vpop.f32.mrb[0].mxu0
        %v4168 = vadd.f32 0.0, %v4167
        %v4169 = vpop.f32.mrb[0].mxu0
        %4170 = vmatprep.mubr.f32.mxu0 0.0
        %4171 = vmatmul.mubr.f32.gmra.mrb[0].mxu0 %v3950
        %v4172 = vpop.f32.mrb[0].mxu0
        %v4173 = vadd.f32 0.0, %v4172
        %v4174 = vpop.f32.mrb[0].mxu0
        %4175 = vmatprep.mubr.f32.mxu0 0.0
        %4176 = vmatmul.mubr.f32.gmra.mrb[0].mxu0 %v3953
        %v4177 = vpop.f32.mrb[0].mxu0
        %v4178 = vadd.f32 0.0, %v4177
        %v4179 = vpop.f32.mrb[0].mxu0
        %4180 = vmatprep.mubr.f32.mxu0 0.0
        %4181 = vmatmul.mubr.f32.gmra.mrb[0].mxu0 %v3956
        %v4182 = vpop.f32.mrb[0].mxu0
        %v4183 = vadd.f32 0.0, %v4182
        %v4184 = vpop.f32.mrb[0].mxu0
        %4185 = vdwg.mxu0
        %v4186 = vadd.f32 %v3796, %v4028
        %v4187 = vadd.f32 %v3797, %v4033
        %v4188 = vadd.f32 %v3798, %v4038
        %v4189 = vadd.f32 %v3799, %v4043
        %v4190 = vadd.f32 %v3800, %v4048
        %v4191 = vadd.f32 %v3801, %v4053
        %v4192 = vadd.f32 %v3802, %v4058
        %v4193 = vadd.f32 %v3803, %v4063
        %v4194 = vadd.f32 %v3804, %v4068
        %v4195 = vadd.f32 %v3805, %v4073
        %v4196 = vadd.f32 %v3806, %v4078
        %v4197 = vadd.f32 %v3807, %v4083
        %v4198 = vadd.f32 %v3808, %v4088
        %v4199 = vadd.f32 %v3809, %v4093
        %v4200 = vadd.f32 %v3810, %v4098
        %v4201 = vadd.f32 %v3811, %v4103
        %v4202 = vadd.f32 %v3812, %v4108
        %v4203 = vadd.f32 %v3813, %v4113
        %v4204 = vadd.f32 %v3814, %v4118
        %v4205 = vadd.f32 %v3815, %v4123
        %v4206 = vadd.f32 %v3816, %v4128
        %v4207 = vadd.f32 %v3817, %v4133
        %v4208 = vadd.f32 %v3818, %v4138
        %v4209 = vadd.f32 %v3819, %v4143
        %v4210 = vadd.f32 %v3820, %v4148
        %v4211 = vadd.f32 %v3821, %v4153
        %v4212 = vadd.f32 %v3822, %v4158
        %v4213 = vadd.f32 %v3823, %v4163
        %v4214 = vadd.f32 %v3824, %v4168
        %v4215 = vadd.f32 %v3825, %v4173
        %v4216 = vadd.f32 %v3826, %v4178
        %v4217 = vadd.f32 %v3827, %v4183
        %v4218 = vld [vmem:[%s5] sm:$0x1]
        %v4220 = vlaneseq
        %v4221 = vshrl.u32 %v4220, 7
        %v4222 = vsub.s32 0, %v4221
        %v4223 = vrot.slane %v4218, %v4222
        %v4225 = vadd.f32 %v4186, %v4223
        %v4226 = vadd.f32 %v4187, %v4223
        %v4227 = vadd.f32 %v4188, %v4223
        %v4228 = vadd.f32 %v4189, %v4223
        %v4229 = vadd.f32 %v4190, %v4223
        %v4230 = vadd.f32 %v4191, %v4223
        %v4231 = vadd.f32 %v4192, %v4223
        %v4232 = vadd.f32 %v4193, %v4223
        %v4233 = vadd.f32 %v4194, %v4223
        %v4234 = vadd.f32 %v4195, %v4223
        %v4235 = vadd.f32 %v4196, %v4223
        %v4236 = vadd.f32 %v4197, %v4223
        %v4237 = vadd.f32 %v4198, %v4223
        %v4238 = vadd.f32 %v4199, %v4223
        %v4239 = vadd.f32 %v4200, %v4223
        %v4240 = vadd.f32 %v4201, %v4223
        %v4241 = vadd.f32 %v4202, %v4223
        %v4242 = vadd.f32 %v4203, %v4223
        %v4243 = vadd.f32 %v4204, %v4223
        %v4244 = vadd.f32 %v4205, %v4223
        %v4245 = vadd.f32 %v4206, %v4223
        %v4246 = vadd.f32 %v4207, %v4223
        %v4247 = vadd.f32 %v4208, %v4223
        %v4248 = vadd.f32 %v4209, %v4223
        %v4249 = vadd.f32 %v4210, %v4223
        %v4250 = vadd.f32 %v4211, %v4223
        %v4251 = vadd.f32 %v4212, %v4223
        %v4252 = vadd.f32 %v4213, %v4223
        %v4253 = vadd.f32 %v4214, %v4223
        %v4254 = vadd.f32 %v4215, %v4223
        %v4255 = vadd.f32 %v4216, %v4223
        %v4256 = vadd.f32 %v4217, %v4223
        %v4257 = vmax.f32 %v4225, 0.0
        %v4258 = vmax.f32 %v4226, 0.0
        %v4259 = vmax.f32 %v4227, 0.0
        %v4260 = vmax.f32 %v4228, 0.0
        %v4261 = vmax.f32 %v4229, 0.0
        %v4262 = vmax.f32 %v4230, 0.0
        %v4263 = vmax.f32 %v4231, 0.0
        %v4264 = vmax.f32 %v4232, 0.0
        %v4265 = vmax.f32 %v4233, 0.0
        %v4266 = vmax.f32 %v4234, 0.0
        %v4267 = vmax.f32 %v4235, 0.0
        %v4268 = vmax.f32 %v4236, 0.0
        %v4269 = vmax.f32 %v4237, 0.0
        %v4270 = vmax.f32 %v4238, 0.0
        %v4271 = vmax.f32 %v4239, 0.0
        %v4272 = vmax.f32 %v4240, 0.0
        %v4273 = vmax.f32 %v4241, 0.0
        %v4274 = vmax.f32 %v4242, 0.0
        %v4275 = vmax.f32 %v4243, 0.0
        %v4276 = vmax.f32 %v4244, 0.0
        %v4277 = vmax.f32 %v4245, 0.0
        %v4278 = vmax.f32 %v4246, 0.0
        %v4279 = vmax.f32 %v4247, 0.0
        %v4280 = vmax.f32 %v4248, 0.0
        %v4281 = vmax.f32 %v4249, 0.0
        %v4282 = vmax.f32 %v4250, 0.0
        %v4283 = vmax.f32 %v4251, 0.0
        %v4284 = vmax.f32 %v4252, 0.0
        %v4285 = vmax.f32 %v4253, 0.0
        %v4286 = vmax.f32 %v4254, 0.0
        %v4287 = vmax.f32 %v4255, 0.0
        %v4288 = vmax.f32 %v4256, 0.0
        %v4289 = vld [vmem:[%s3] sm:$0xf]
        %v4290 = vld [vmem:[%s6] sm:$0x1]
        %v4292 = vlaneseq
        %v4293 = vshrl.u32 %v4292, 7
        %v4294 = vsub.s32 0, %v4293
        %v4295 = vrot.slane %v4290, %v4294
        %v4298 = vsel %vm692, %v4257, 0
        %v4301 = vsel %vm692, %v4258, 0
        %v4304 = vsel %vm692, %v4259, 0
        %v4307 = vsel %vm692, %v4260, 0
        %v4310 = vsel %vm692, %v4261, 0
        %v4313 = vsel %vm692, %v4262, 0
        %v4316 = vsel %vm692, %v4263, 0
        %v4319 = vsel %vm692, %v4264, 0
        %v4322 = vsel %vm692, %v4265, 0
        %v4325 = vsel %vm692, %v4266, 0
        %v4328 = vsel %vm692, %v4267, 0
        %v4331 = vsel %vm692, %v4268, 0
        %v4334 = vsel %vm692, %v4269, 0
        %v4337 = vsel %vm692, %v4270, 0
        %v4340 = vsel %vm692, %v4271, 0
        %v4343 = vsel %vm692, %v4272, 0
        %v4346 = vsel %vm692, %v4273, 0
        %v4349 = vsel %vm692, %v4274, 0
        %v4352 = vsel %vm692, %v4275, 0
        %v4355 = vsel %vm692, %v4276, 0
        %v4358 = vsel %vm692, %v4277, 0
        %v4361 = vsel %vm692, %v4278, 0
        %v4364 = vsel %vm692, %v4279, 0
        %v4367 = vsel %vm692, %v4280, 0
        %v4370 = vsel %vm692, %v4281, 0
        %v4373 = vsel %vm692, %v4282, 0
        %v4376 = vsel %vm692, %v4283, 0
        %v4379 = vsel %vm692, %v4284, 0
        %v4382 = vsel %vm692, %v4285, 0
        %v4385 = vsel %vm692, %v4286, 0
        %v4388 = vsel %vm692, %v4287, 0
        %v4391 = vsel %vm692, %v4288, 0
        %v4394 = vsel %vm934, %v4289, 0
        %4396 = vmatprep.subr.mxu0 0.0
        %4397 = vmatpush1.msra.mxu0 %v4394
        %4398 = vmatprep.subr.mxu0 0.0
        %4399 = vmatpush1.msra.mxu0 0.0
        %4400 = vmatprep.subr.mxu0 0.0
        %4401 = vmatpush1.msra.mxu0 0.0
        %4402 = vmatprep.subr.mxu0 0.0
        %4403 = vmatpush1.msra.mxu0 0.0
        %4404 = vmatprep.subr.mxu0 0.0
        %4405 = vmatpush1.msra.mxu0 0.0
        %4406 = vmatprep.subr.mxu0 0.0
        %4407 = vmatpush1.msra.mxu0 0.0
        %4408 = vmatprep.subr.mxu0 0.0
        %4409 = vmatpush1.msra.mxu0 0.0
        %4410 = vmatprep.subr.mxu0 0.0
        %4411 = vmatpush1.msra.mxu0 0.0
        %4412 = vmatprep.subr.mxu0 0.0
        %4413 = vmatpush1.msra.mxu0 0.0
        %4414 = vmatprep.subr.mxu0 0.0
        %4415 = vmatpush1.msra.mxu0 0.0
        %4416 = vmatprep.subr.mxu0 0.0
        %4417 = vmatpush1.msra.mxu0 0.0
        %4418 = vmatprep.subr.mxu0 0.0
        %4419 = vmatpush1.msra.mxu0 0.0
        %4420 = vmatprep.subr.mxu0 0.0
        %4421 = vmatpush1.msra.mxu0 0.0
        %4422 = vmatprep.subr.mxu0 0.0
        %4423 = vmatpush1.msra.mxu0 0.0
        %4424 = vmatprep.subr.mxu0 0.0
        %4425 = vmatpush1.msra.mxu0 0.0
        %4426 = vmatprep.subr.mxu0 0.0
        %4427 = vmatpush1.msra.mxu0 0.0
        %4428 = vmatprep.subr.mxu0 0.0
        %4429 = vmatpush1.msra.mxu0 0.0
        %4430 = vmatprep.subr.mxu0 0.0
        %4431 = vmatpush1.msra.mxu0 0.0
        %4432 = vmatprep.subr.mxu0 0.0
        %4433 = vmatpush1.msra.mxu0 0.0
        %4434 = vmatprep.subr.mxu0 0.0
        %4435 = vmatpush1.msra.mxu0 0.0
        %4436 = vmatprep.subr.mxu0 0.0
        %4437 = vmatpush1.msra.mxu0 0.0
        %4438 = vmatprep.subr.mxu0 0.0
        %4439 = vmatpush1.msra.mxu0 0.0
        %4440 = vmatprep.subr.mxu0 0.0
        %4441 = vmatpush1.msra.mxu0 0.0
        %4442 = vmatprep.subr.mxu0 0.0
        %4443 = vmatpush1.msra.mxu0 0.0
        %4444 = vmatprep.subr.mxu0 0.0
        %4445 = vmatpush1.msra.mxu0 0.0
        %4446 = vmatprep.subr.mxu0 0.0
        %4447 = vmatpush1.msra.mxu0 0.0
        %4448 = vmatprep.subr.mxu0 0.0
        %4449 = vmatpush1.msra.mxu0 0.0
        %4450 = vmatprep.subr.mxu0 0.0
        %4451 = vmatpush1.msra.mxu0 0.0
        %4452 = vmatprep.subr.mxu0 0.0
        %4453 = vmatpush1.msra.mxu0 0.0
        %4454 = vmatprep.subr.mxu0 0.0
        %4455 = vmatpush1.msra.mxu0 0.0
        %4456 = vmatprep.subr.mxu0 0.0
        %4457 = vmatpush1.msra.mxu0 0.0
        %4458 = vmatprep.subr.mxu0 0.0
        %4459 = vmatpush1.msra.mxu0 0.0
        %4460 = vmatprep.mubr.f32.mxu0 0.0
        %4461 = vmatmul.mubr.f32.gmra.mrb[0].mxu0 %v4298
        %v4462 = vpop.f32.mrb[0].mxu0
        %v4463 = vadd.f32 %v4295, %v4462
        %v4464 = vpop.f32.mrb[0].mxu0
        %4465 = vmatprep.mubr.f32.mxu0 0.0
        %4466 = vmatmul.mubr.f32.gmra.mrb[0].mxu0 %v4301
        %v4467 = vpop.f32.mrb[0].mxu0
        %v4468 = vadd.f32 %v4295, %v4467
        %v4469 = vpop.f32.mrb[0].mxu0
        %4470 = vmatprep.mubr.f32.mxu0 0.0
        %4471 = vmatmul.mubr.f32.gmra.mrb[0].mxu0 %v4304
        %v4472 = vpop.f32.mrb[0].mxu0
        %v4473 = vadd.f32 %v4295, %v4472
        %v4474 = vpop.f32.mrb[0].mxu0
        %4475 = vmatprep.mubr.f32.mxu0 0.0
        %4476 = vmatmul.mubr.f32.gmra.mrb[0].mxu0 %v4307
        %v4477 = vpop.f32.mrb[0].mxu0
        %v4478 = vadd.f32 %v4295, %v4477
        %v4479 = vpop.f32.mrb[0].mxu0
        %4480 = vmatprep.mubr.f32.mxu0 0.0
        %4481 = vmatmul.mubr.f32.gmra.mrb[0].mxu0 %v4310
        %v4482 = vpop.f32.mrb[0].mxu0
        %v4483 = vadd.f32 %v4295, %v4482
        %v4484 = vpop.f32.mrb[0].mxu0
        %4485 = vmatprep.mubr.f32.mxu0 0.0
        %4486 = vmatmul.mubr.f32.gmra.mrb[0].mxu0 %v4313
        %v4487 = vpop.f32.mrb[0].mxu0
        %v4488 = vadd.f32 %v4295, %v4487
        %v4489 = vpop.f32.mrb[0].mxu0
        %4490 = vmatprep.mubr.f32.mxu0 0.0
        %4491 = vmatmul.mubr.f32.gmra.mrb[0].mxu0 %v4316
        %v4492 = vpop.f32.mrb[0].mxu0
        %v4493 = vadd.f32 %v4295, %v4492
        %v4494 = vpop.f32.mrb[0].mxu0
        %4495 = vmatprep.mubr.f32.mxu0 0.0
        %4496 = vmatmul.mubr.f32.gmra.mrb[0].mxu0 %v4319
        %v4497 = vpop.f32.mrb[0].mxu0
        %v4498 = vadd.f32 %v4295, %v4497
        %v4499 = vpop.f32.mrb[0].mxu0
        %4500 = vmatprep.mubr.f32.mxu0 0.0
        %4501 = vmatmul.mubr.f32.gmra.mrb[0].mxu0 %v4322
        %v4502 = vpop.f32.mrb[0].mxu0
        %v4503 = vadd.f32 %v4295, %v4502
        %v4504 = vpop.f32.mrb[0].mxu0
        %4505 = vmatprep.mubr.f32.mxu0 0.0
        %4506 = vmatmul.mubr.f32.gmra.mrb[0].mxu0 %v4325
        %v4507 = vpop.f32.mrb[0].mxu0
        %v4508 = vadd.f32 %v4295, %v4507
        %v4509 = vpop.f32.mrb[0].mxu0
        %4510 = vmatprep.mubr.f32.mxu0 0.0
        %4511 = vmatmul.mubr.f32.gmra.mrb[0].mxu0 %v4328
        %v4512 = vpop.f32.mrb[0].mxu0
        %v4513 = vadd.f32 %v4295, %v4512
        %v4514 = vpop.f32.mrb[0].mxu0
        %4515 = vmatprep.mubr.f32.mxu0 0.0
        %4516 = vmatmul.mubr.f32.gmra.mrb[0].mxu0 %v4331
        %v4517 = vpop.f32.mrb[0].mxu0
        %v4518 = vadd.f32 %v4295, %v4517
        %v4519 = vpop.f32.mrb[0].mxu0
        %4520 = vmatprep.mubr.f32.mxu0 0.0
        %4521 = vmatmul.mubr.f32.gmra.mrb[0].mxu0 %v4334
        %v4522 = vpop.f32.mrb[0].mxu0
        %v4523 = vadd.f32 %v4295, %v4522
        %v4524 = vpop.f32.mrb[0].mxu0
        %4525 = vmatprep.mubr.f32.mxu0 0.0
        %4526 = vmatmul.mubr.f32.gmra.mrb[0].mxu0 %v4337
        %v4527 = vpop.f32.mrb[0].mxu0
        %v4528 = vadd.f32 %v4295, %v4527
        %v4529 = vpop.f32.mrb[0].mxu0
        %4530 = vmatprep.mubr.f32.mxu0 0.0
        %4531 = vmatmul.mubr.f32.gmra.mrb[0].mxu0 %v4340
        %v4532 = vpop.f32.mrb[0].mxu0
        %v4533 = vadd.f32 %v4295, %v4532
        %v4534 = vpop.f32.mrb[0].mxu0
        %4535 = vmatprep.mubr.f32.mxu0 0.0
        %4536 = vmatmul.mubr.f32.gmra.mrb[0].mxu0 %v4343
        %v4537 = vpop.f32.mrb[0].mxu0
        %v4538 = vadd.f32 %v4295, %v4537
        %v4539 = vpop.f32.mrb[0].mxu0
        %4540 = vmatprep.mubr.f32.mxu0 0.0
        %4541 = vmatmul.mubr.f32.gmra.mrb[0].mxu0 %v4346
        %v4542 = vpop.f32.mrb[0].mxu0
        %v4543 = vadd.f32 %v4295, %v4542
        %v4544 = vpop.f32.mrb[0].mxu0
        %4545 = vmatprep.mubr.f32.mxu0 0.0
        %4546 = vmatmul.mubr.f32.gmra.mrb[0].mxu0 %v4349
        %v4547 = vpop.f32.mrb[0].mxu0
        %v4548 = vadd.f32 %v4295, %v4547
        %v4549 = vpop.f32.mrb[0].mxu0
        %4550 = vmatprep.mubr.f32.mxu0 0.0
        %4551 = vmatmul.mubr.f32.gmra.mrb[0].mxu0 %v4352
        %v4552 = vpop.f32.mrb[0].mxu0
        %v4553 = vadd.f32 %v4295, %v4552
        %v4554 = vpop.f32.mrb[0].mxu0
        %4555 = vmatprep.mubr.f32.mxu0 0.0
        %4556 = vmatmul.mubr.f32.gmra.mrb[0].mxu0 %v4355
        %v4557 = vpop.f32.mrb[0].mxu0
        %v4558 = vadd.f32 %v4295, %v4557
        %v4559 = vpop.f32.mrb[0].mxu0
        %4560 = vmatprep.mubr.f32.mxu0 0.0
        %4561 = vmatmul.mubr.f32.gmra.mrb[0].mxu0 %v4358
        %v4562 = vpop.f32.mrb[0].mxu0
        %v4563 = vadd.f32 %v4295, %v4562
        %v4564 = vpop.f32.mrb[0].mxu0
        %4565 = vmatprep.mubr.f32.mxu0 0.0
        %4566 = vmatmul.mubr.f32.gmra.mrb[0].mxu0 %v4361
        %v4567 = vpop.f32.mrb[0].mxu0
        %v4568 = vadd.f32 %v4295, %v4567
        %v4569 = vpop.f32.mrb[0].mxu0
        %4570 = vmatprep.mubr.f32.mxu0 0.0
        %4571 = vmatmul.mubr.f32.gmra.mrb[0].mxu0 %v4364
        %v4572 = vpop.f32.mrb[0].mxu0
        %v4573 = vadd.f32 %v4295, %v4572
        %v4574 = vpop.f32.mrb[0].mxu0
        %4575 = vmatprep.mubr.f32.mxu0 0.0
        %4576 = vmatmul.mubr.f32.gmra.mrb[0].mxu0 %v4367
        %v4577 = vpop.f32.mrb[0].mxu0
        %v4578 = vadd.f32 %v4295, %v4577
        %v4579 = vpop.f32.mrb[0].mxu0
        %4580 = vmatprep.mubr.f32.mxu0 0.0
        %4581 = vmatmul.mubr.f32.gmra.mrb[0].mxu0 %v4370
        %v4582 = vpop.f32.mrb[0].mxu0
        %v4583 = vadd.f32 %v4295, %v4582
        %v4584 = vpop.f32.mrb[0].mxu0
        %4585 = vmatprep.mubr.f32.mxu0 0.0
        %4586 = vmatmul.mubr.f32.gmra.mrb[0].mxu0 %v4373
        %v4587 = vpop.f32.mrb[0].mxu0
        %v4588 = vadd.f32 %v4295, %v4587
        %v4589 = vpop.f32.mrb[0].mxu0
        %4590 = vmatprep.mubr.f32.mxu0 0.0
        %4591 = vmatmul.mubr.f32.gmra.mrb[0].mxu0 %v4376
        %v4592 = vpop.f32.mrb[0].mxu0
        %v4593 = vadd.f32 %v4295, %v4592
        %v4594 = vpop.f32.mrb[0].mxu0
        %4595 = vmatprep.mubr.f32.mxu0 0.0
        %4596 = vmatmul.mubr.f32.gmra.mrb[0].mxu0 %v4379
        %v4597 = vpop.f32.mrb[0].mxu0
        %v4598 = vadd.f32 %v4295, %v4597
        %v4599 = vpop.f32.mrb[0].mxu0
        %4600 = vmatprep.mubr.f32.mxu0 0.0
        %4601 = vmatmul.mubr.f32.gmra.mrb[0].mxu0 %v4382
        %v4602 = vpop.f32.mrb[0].mxu0
        %v4603 = vadd.f32 %v4295, %v4602
        %v4604 = vpop.f32.mrb[0].mxu0
        %4605 = vmatprep.mubr.f32.mxu0 0.0
        %4606 = vmatmul.mubr.f32.gmra.mrb[0].mxu0 %v4385
        %v4607 = vpop.f32.mrb[0].mxu0
        %v4608 = vadd.f32 %v4295, %v4607
        %v4609 = vpop.f32.mrb[0].mxu0
        %4610 = vmatprep.mubr.f32.mxu0 0.0
        %4611 = vmatmul.mubr.f32.gmra.mrb[0].mxu0 %v4388
        %v4612 = vpop.f32.mrb[0].mxu0
        %v4613 = vadd.f32 %v4295, %v4612
        %v4614 = vpop.f32.mrb[0].mxu0
        %4615 = vmatprep.mubr.f32.mxu0 0.0
        %4616 = vmatmul.mubr.f32.gmra.mrb[0].mxu0 %v4391
        %v4617 = vpop.f32.mrb[0].mxu0
        %v4618 = vadd.f32 %v4295, %v4617
        %v4619 = vpop.f32.mrb[0].mxu0
        %4620 = vdwg.mxu0
        %v4621 = vadd.f32 %v4463, %v297
        %v4622 = vadd.f32 %v4468, %v298
        %v4623 = vadd.f32 %v4473, %v299
        %v4624 = vadd.f32 %v4478, %v300
        %v4625 = vadd.f32 %v4483, %v301
        %v4626 = vadd.f32 %v4488, %v302
        %v4627 = vadd.f32 %v4493, %v303
        %v4628 = vadd.f32 %v4498, %v304
        %v4629 = vadd.f32 %v4503, %v305
        %v4630 = vadd.f32 %v4508, %v306
        %v4631 = vadd.f32 %v4513, %v307
        %v4632 = vadd.f32 %v4518, %v308
        %v4633 = vadd.f32 %v4523, %v309
        %v4634 = vadd.f32 %v4528, %v310
        %v4635 = vadd.f32 %v4533, %v311
        %v4636 = vadd.f32 %v4538, %v312
        %v4637 = vadd.f32 %v4543, %v313
        %v4638 = vadd.f32 %v4548, %v314
        %v4639 = vadd.f32 %v4553, %v315
        %v4640 = vadd.f32 %v4558, %v316
        %v4641 = vadd.f32 %v4563, %v317
        %v4642 = vadd.f32 %v4568, %v318
        %v4643 = vadd.f32 %v4573, %v319
        %v4644 = vadd.f32 %v4578, %v320
        %v4645 = vadd.f32 %v4583, %v321
        %v4646 = vadd.f32 %v4588, %v322
        %v4647 = vadd.f32 %v4593, %v323
        %v4648 = vadd.f32 %v4598, %v324
        %v4649 = vadd.f32 %v4603, %v325
        %v4650 = vadd.f32 %v4608, %v326
        %v4651 = vadd.f32 %v4613, %v327
        %v4652 = vadd.f32 %v4618, %v328
        %v4653 = vmax.f32 %v4621, 0.0
        %v4654 = vmax.f32 %v4622, 0.0
        %v4655 = vmax.f32 %v4623, 0.0
        %v4656 = vmax.f32 %v4624, 0.0
        %v4657 = vmax.f32 %v4625, 0.0
        %v4658 = vmax.f32 %v4626, 0.0
        %v4659 = vmax.f32 %v4627, 0.0
        %v4660 = vmax.f32 %v4628, 0.0
        %v4661 = vmax.f32 %v4629, 0.0
        %v4662 = vmax.f32 %v4630, 0.0
        %v4663 = vmax.f32 %v4631, 0.0
        %v4664 = vmax.f32 %v4632, 0.0
        %v4665 = vmax.f32 %v4633, 0.0
        %v4666 = vmax.f32 %v4634, 0.0
        %v4667 = vmax.f32 %v4635, 0.0
        %v4668 = vmax.f32 %v4636, 0.0
        %v4669 = vmax.f32 %v4637, 0.0
        %v4670 = vmax.f32 %v4638, 0.0
        %v4671 = vmax.f32 %v4639, 0.0
        %v4672 = vmax.f32 %v4640, 0.0
        %v4673 = vmax.f32 %v4641, 0.0
        %v4674 = vmax.f32 %v4642, 0.0
        %v4675 = vmax.f32 %v4643, 0.0
        %v4676 = vmax.f32 %v4644, 0.0
        %v4677 = vmax.f32 %v4645, 0.0
        %v4678 = vmax.f32 %v4646, 0.0
        %v4679 = vmax.f32 %v4647, 0.0
        %v4680 = vmax.f32 %v4648, 0.0
        %v4681 = vmax.f32 %v4649, 0.0
        %v4682 = vmax.f32 %v4650, 0.0
        %v4683 = vmax.f32 %v4651, 0.0
        %v4684 = vmax.f32 %v4652, 0.0
        %4685 = vst.msk [vmem:[%s296] sm:$0xff] %vm338, %v4653
        %4686 = vst.msk [vmem:[%s296 + $0x8] sm:$0xff] %vm338, %v4654
        %4687 = vst.msk [vmem:[%s296 + $0x10] sm:$0xff] %vm338, %v4655
        %4688 = vst.msk [vmem:[%s296 + $0x18] sm:$0xff] %vm338, %v4656
        %4689 = vst.msk [vmem:[%s296 + $0x20] sm:$0xff] %vm338, %v4657
        %4690 = vst.msk [vmem:[%s296 + $0x28] sm:$0xff] %vm338, %v4658
        %4691 = vst.msk [vmem:[%s296 + $0x30] sm:$0xff] %vm338, %v4659
        %4692 = vst.msk [vmem:[%s296 + $0x38] sm:$0xff] %vm338, %v4660
        %4693 = vst.msk [vmem:[%s296 + $0x40] sm:$0xff] %vm338, %v4661
        %4694 = vst.msk [vmem:[%s296 + $0x48] sm:$0xff] %vm338, %v4662
        %4695 = vst.msk [vmem:[%s296 + $0x50] sm:$0xff] %vm338, %v4663
        %4696 = vst.msk [vmem:[%s296 + $0x58] sm:$0xff] %vm338, %v4664
        %4697 = vst.msk [vmem:[%s296 + $0x60] sm:$0xff] %vm338, %v4665
        %4698 = vst.msk [vmem:[%s296 + $0x68] sm:$0xff] %vm338, %v4666
        %4699 = vst.msk [vmem:[%s296 + $0x70] sm:$0xff] %vm338, %v4667
        %4700 = vst.msk [vmem:[%s296 + $0x78] sm:$0xff] %vm338, %v4668
        %4701 = vst.msk [vmem:[%s296 + $0x80] sm:$0xff] %vm338, %v4669
        %4702 = vst.msk [vmem:[%s296 + $0x88] sm:$0xff] %vm338, %v4670
        %4703 = vst.msk [vmem:[%s296 + $0x90] sm:$0xff] %vm338, %v4671
        %4704 = vst.msk [vmem:[%s296 + $0x98] sm:$0xff] %vm338, %v4672
        %4705 = vst.msk [vmem:[%s296 + $0xa0] sm:$0xff] %vm338, %v4673
        %4706 = vst.msk [vmem:[%s296 + $0xa8] sm:$0xff] %vm338, %v4674
        %4707 = vst.msk [vmem:[%s296 + $0xb0] sm:$0xff] %vm338, %v4675
        %4708 = vst.msk [vmem:[%s296 + $0xb8] sm:$0xff] %vm338, %v4676
        %4709 = vst.msk [vmem:[%s296 + $0xc0] sm:$0xff] %vm338, %v4677
        %4710 = vst.msk [vmem:[%s296 + $0xc8] sm:$0xff] %vm338, %v4678
        %4711 = vst.msk [vmem:[%s296 + $0xd0] sm:$0xff] %vm338, %v4679
        %4712 = vst.msk [vmem:[%s296 + $0xd8] sm:$0xff] %vm338, %v4680
        %4713 = vst.msk [vmem:[%s296 + $0xe0] sm:$0xff] %vm338, %v4681
        %4714 = vst.msk [vmem:[%s296 + $0xe8] sm:$0xff] %vm338, %v4682
        %4715 = vst.msk [vmem:[%s296 + $0xf0] sm:$0xff] %vm338, %v4683
        %4716 = vst.msk [vmem:[%s296 + $0xf8] sm:$0xff] %vm338, %v4684
        %s4717 = sand.u32 %s184, 1
        %s4718 = scalar_lea.sflag [#allocation5], %s4717
        %s4719 = sand.u32 %s184, 1
        %s4720 = smul.addr %s4719, 256
        %s4721 = scalar_lea.vmem [#allocation6], %s4720
        // Predicated region
        $region53: #{tpu_custom_call.1} parent=47 // pred_check
          %p4722 = pneg %p194
        $region54: #{tpu_custom_call.1} parent=47 // pred_check_branch
          %4724 = sbr.rel (%p4722) target = $region56
        $region55: #{tpu_custom_call.1} parent=47 // pred_region
          %s4726 = ssub.s32 4096, 4096
          %4727 = vsyncadd %s4718, %s4726
          %s4728 = smul.addr %s24, 32
          %s4729 = smul.addr %s4728, 128
          %s4730 = scalar_lea.hbm %s7, %s4729
          %s4731 = sshll.u32 %s4721, 4
          %s4732 = int_to_ptr.vmem [resolvable:$true] %s4731
          %4737 = dma.vmem_to_hbm [thread:$0]  %s4732, 4096, %s4730, %s4718, 128, 128, 8
        $region56: #{tpu_custom_call.1} parent=47 // pred_fallthru
          _
      $region48: #{tpu_custom_call.1} parent=5 // pred_fallthru
        _
      %p4738 = scmp.le.s32.totalorder 2, %s19
      // Predicated region
      $region57: #{tpu_custom_call.1} parent=5 // pred_check
        %p4739 = pneg %p4738
      $region58: #{tpu_custom_call.1} parent=5 // pred_check_branch
        %4741 = sbr.rel (%p4739) target = $region60
      $region59: #{tpu_custom_call.1} parent=5 // pred_region
        %s4742 = ssub.s32 %s19, 2
        // Predicated region
        $region61: #{tpu_custom_call.1} parent=59 // pred_check
          %p4743 = pneg %p200
        $region62: #{tpu_custom_call.1} parent=59 // pred_check_branch
          %4745 = sbr.rel (%p4743) target = $region64
        $region63: #{tpu_custom_call.1} parent=59 // pred_region
          %s4746 = sand.u32 %s185, 1
          %s4747 = scalar_lea.sflag [#allocation5], %s4746
          %s4748 = sand.u32 %s185, 1
          %s4749 = smul.addr %s4748, 256
          %s4750 = scalar_lea.vmem [#allocation6], %s4749
          %4751 = dma.done %s4747, 4096
        $region64: #{tpu_custom_call.1} parent=59 // pred_fallthru
          _
      $region60: #{tpu_custom_call.1} parent=5 // pred_fallthru
        _
    $region6: #{tpu_custom_call.1} parent=1 // loop_footer
      %s23 = sadd.s32 1, %s19
    $region7: #{tpu_custom_call.1} parent=1 // loop_footer_branch
      %18 = sbr.rel target = $region3
    $region8: #{tpu_custom_call.1} parent=1 // loop_exit
      _
    %4752 = vsyncpa [#allocation4], 1
    %s4753 = scalar_lea.sflag [#allocation4], 1
    %4754 = vsyncpa %s4753, 1
    %4755 = vsyncpa [#allocation5], 1
    %s4756 = scalar_lea.sflag [#allocation5], 1
    %4757 = vsyncpa %s4756, 1

</llo_original>
